<compile_context>
chip_gen: v6e
topology: v6e:2x2x1
jax: 0.10.0
libtpu: 0.0.40
codegen_flags: <defaults>
</compile_context>

<pallas_src>
import jax
import jax.numpy as jnp
from jax.experimental import pallas as pl
from jax.experimental.pallas import tpu as pltpu

POOL = 20          # max_pool1d kernel_size == stride == 20 (from the module)
CONV_K = 10        # Conv1d kernel size == `stride` global in the module


def conv_relu_pool_kernel(x1_ref, x2_ref, w_ref, b_ref, o_ref):
    # x1_ref, x2_ref: (B, C_in, L)      -- PyTorch NCL, untouched by the wrapper
    # w_ref:          (K, C_in, C_out)  -- conv weight, tap-major
    # b_ref:          (1, C_out)
    # o_ref:          (2, L_pool, B, C_out)
    B, C_in, L = x1_ref.shape
    K, _, C_out = w_ref.shape
    L_pool = o_ref.shape[1]
    L_out = L - K + 1
    rows = 2 * B * L_out

    # Fold both sequences into one batch axis and go channels-last in-kernel.
    x = jnp.concatenate([x1_ref[...], x2_ref[...]], axis=0)   # (2B, C_in, L)
    xt = jnp.transpose(x, (0, 2, 1))                          # (2B, L, C_in)

    w = w_ref[...]                                            # (K, C_in, C_out)
    b = b_ref[...]                                            # (1, C_out)

    # Valid 1D conv as K shifted matmuls into a single f32 accumulator.
    acc = jnp.zeros((rows, C_out), jnp.float32)
    for k in range(K):
        xs = xt[:, k:k + L_out, :].reshape(rows, C_in)        # (2B*L_out, C_in)
        acc = acc + jnp.dot(xs, w[k], preferred_element_type=jnp.float32)

    acc = jnp.maximum(acc + b, 0.0)                           # bias + ReLU (VPU)

    # max_pool1d(kernel=20, stride=20): floor-truncate the tail, then pool.
    acc = acc.reshape(2, B, L_out, C_out)[:, :, : L_pool * POOL, :]
    acc = acc.reshape(2, B, L_pool, POOL, C_out)

    # Emit directly in (input, L_pool, B, C_out) order so the wrapper only
    # needs a free reshape (no XLA transpose op after the kernel).
    pooled = [acc[:, :, g, :, :].max(axis=2) for g in range(L_pool)]  # each (2, B, C_out)
    o_ref[...] = jnp.stack(pooled, axis=1).astype(o_ref.dtype)        # (2, L_pool, B, C_out)


@jax.jit
def conv_forward(x1, x2, weight, bias):
    """x1, x2: (B, 4, L) float32 (PyTorch NCL). weight: (C_out, 4, K). bias: (C_out,)."""
    B, C_in, L = x1.shape
    C_out, _, K = weight.shape
    L_out = L - K + 1
    L_pool = (L_out - POOL) // POOL + 1

    # Only tiny parameter-side reshapes in the wrapper (no activation transposes).
    w_taps = jnp.transpose(weight, (2, 1, 0)).astype(jnp.float32)   # (K, C_in, C_out)
    b_row = bias.reshape(1, C_out).astype(jnp.float32)

    vmem = pl.BlockSpec(memory_space=pltpu.MemorySpace.VMEM)
    out = pl.pallas_call(
        conv_relu_pool_kernel,
        out_shape=jax.ShapeDtypeStruct((2, L_pool, B, C_out), jnp.float32),
        in_specs=[vmem, vmem, vmem, vmem],
        out_specs=vmem,
    )(x1.astype(jnp.float32), x2.astype(jnp.float32), w_taps, b_row)

    # (2, L_pool, B, C_out) -> (2*L_pool, B, C_out): layout-compatible reshape
    # matching torch.cat((x1.T(2,1).T(0,1), x2.T(2,1).T(0,1)), dim=0).
    return out.reshape(2 * L_pool, B, C_out)


def reference(x1, x2, weight, bias):
    def one(x):
        y = jax.lax.conv_general_dilated(
            x, weight, window_strides=(1,), padding="VALID",
            dimension_numbers=("NCH", "OIH", "NCH"))
        y = y + bias[None, :, None]
        y = jnp.maximum(y, 0.0)
        B, C, Lo = y.shape
        Lp = (Lo - POOL) // POOL + 1
        y = y[:, :, : Lp * POOL].reshape(B, C, Lp, POOL).max(axis=3)  # (B, C, Lp)
        return jnp.transpose(y, (2, 0, 1))                            # (Lp, B, C)
    return jnp.concatenate([one(x1), one(x2)], axis=0)


if __name__ == "__main__":
    key = jax.random.PRNGKey(0)
    k1, k2, kw, kb = jax.random.split(key, 4)

    B = 2
    C_in = 4
    L = 89                 # conv out = 80, pooled length = 4
    num_kernels = 8        # C_out

    x1 = jax.random.normal(k1, (B, C_in, L), dtype=jnp.float32)
    x2 = jax.random.normal(k2, (B, C_in, L), dtype=jnp.float32)
    # Deterministic synthetic Conv1d parameters (shapes from nn.Conv1d(4, num_kernels, 10)).
    weight = 0.1 * jax.random.normal(kw, (num_kernels, C_in, CONV_K), dtype=jnp.float32)
    bias = 0.1 * jax.random.normal(kb, (num_kernels,), dtype=jnp.float32)

    out = jax.block_until_ready(conv_forward(x1, x2, weight, bias))
    ref = jax.block_until_ready(reference(x1, x2, weight, bias))

    assert out.shape == ref.shape, (out.shape, ref.shape)
    assert jnp.allclose(out, ref, rtol=1e-4, atol=1e-4), float(jnp.max(jnp.abs(out - ref)))
    print("KERNEL_OK")
</pallas_src>

<mosaic_0001>
module attributes {stable_mosaic.version = 11 : i64} {
  func.func @conv_relu_pool_kernel(%arg0: memref<2x4x89xf32, #tpu.memory_space<vmem>>, %arg1: memref<2x4x89xf32, #tpu.memory_space<vmem>>, %arg2: memref<10x4x8xf32, #tpu.memory_space<vmem>>, %arg3: memref<1x8xf32, #tpu.memory_space<vmem>>, %arg4: memref<2x4x2x8xf32, #tpu.memory_space<vmem>>) attributes {dimension_semantics = [], scalar_prefetch = 0 : i64, scratch_operands = 0 : i64, tpu.core_type = #tpu.core_type<tc>} {
    %c0 = arith.constant 0 : index
    %c0_0 = arith.constant 0 : index
    %c0_1 = arith.constant 0 : index
    %0 = vector.load %arg0[%c0, %c0_0, %c0_1] : memref<2x4x89xf32, #tpu.memory_space<vmem>>, vector<2x4x89xf32>
    %c0_2 = arith.constant 0 : index
    %c0_3 = arith.constant 0 : index
    %c0_4 = arith.constant 0 : index
    %1 = vector.load %arg1[%c0_2, %c0_3, %c0_4] : memref<2x4x89xf32, #tpu.memory_space<vmem>>, vector<2x4x89xf32>
    %2 = tpu.concatenate %0, %1 in 0 : vector<2x4x89xf32>, vector<2x4x89xf32> -> vector<4x4x89xf32>
    %3 = tpu.transpose %2, [0, 2, 1] : vector<4x4x89xf32> -> vector<4x89x4xf32>
    %c0_5 = arith.constant 0 : index
    %c0_6 = arith.constant 0 : index
    %c0_7 = arith.constant 0 : index
    %4 = vector.load %arg2[%c0_5, %c0_6, %c0_7] : memref<10x4x8xf32, #tpu.memory_space<vmem>>, vector<10x4x8xf32>
    %c0_8 = arith.constant 0 : index
    %c0_9 = arith.constant 0 : index
    %5 = vector.load %arg3[%c0_8, %c0_9] : memref<1x8xf32, #tpu.memory_space<vmem>>, vector<1x8xf32>
    %cst = arith.constant 0.000000e+00 : f32
    %6 = vector.broadcast %cst : f32 to vector<320x8xf32>
    %7 = vector.extract_strided_slice %3 {offsets = [0, 0, 0], sizes = [4, 80, 4], strides = [1, 1, 1]} : vector<4x89x4xf32> to vector<4x80x4xf32>
    %8 = vector.shape_cast %7 : vector<4x80x4xf32> to vector<320x4xf32>
    %9 = vector.extract_strided_slice %4 {offsets = [0, 0, 0], sizes = [1, 4, 8], strides = [1, 1, 1]} : vector<10x4x8xf32> to vector<1x4x8xf32>
    %10 = vector.shape_cast %9 : vector<1x4x8xf32> to vector<4x8xf32>
    %cst_10 = arith.constant dense<0.000000e+00> : vector<320x8xf32>
    %11 = tpu.matmul %8, %10, %cst_10 {dimension_numbers = #tpu.dot_dimension_numbers<[1], [0], [0], [1], [0, 0, 1, 1], [], []>} : vector<320x4xf32>, vector<4x8xf32>, vector<320x8xf32> -> vector<320x8xf32>
    %12 = arith.addf %6, %11 : vector<320x8xf32>
    %13 = vector.extract_strided_slice %3 {offsets = [0, 1, 0], sizes = [4, 80, 4], strides = [1, 1, 1]} : vector<4x89x4xf32> to vector<4x80x4xf32>
    %14 = vector.shape_cast %13 : vector<4x80x4xf32> to vector<320x4xf32>
    %15 = vector.extract_strided_slice %4 {offsets = [1, 0, 0], sizes = [1, 4, 8], strides = [1, 1, 1]} : vector<10x4x8xf32> to vector<1x4x8xf32>
    %16 = vector.shape_cast %15 : vector<1x4x8xf32> to vector<4x8xf32>
    %cst_11 = arith.constant dense<0.000000e+00> : vector<320x8xf32>
    %17 = tpu.matmul %14, %16, %cst_11 {dimension_numbers = #tpu.dot_dimension_numbers<[1], [0], [0], [1], [0, 0, 1, 1], [], []>} : vector<320x4xf32>, vector<4x8xf32>, vector<320x8xf32> -> vector<320x8xf32>
    %18 = arith.addf %12, %17 : vector<320x8xf32>
    %19 = vector.extract_strided_slice %3 {offsets = [0, 2, 0], sizes = [4, 80, 4], strides = [1, 1, 1]} : vector<4x89x4xf32> to vector<4x80x4xf32>
    %20 = vector.shape_cast %19 : vector<4x80x4xf32> to vector<320x4xf32>
    %21 = vector.extract_strided_slice %4 {offsets = [2, 0, 0], sizes = [1, 4, 8], strides = [1, 1, 1]} : vector<10x4x8xf32> to vector<1x4x8xf32>
    %22 = vector.shape_cast %21 : vector<1x4x8xf32> to vector<4x8xf32>
    %cst_12 = arith.constant dense<0.000000e+00> : vector<320x8xf32>
    %23 = tpu.matmul %20, %22, %cst_12 {dimension_numbers = #tpu.dot_dimension_numbers<[1], [0], [0], [1], [0, 0, 1, 1], [], []>} : vector<320x4xf32>, vector<4x8xf32>, vector<320x8xf32> -> vector<320x8xf32>
    %24 = arith.addf %18, %23 : vector<320x8xf32>
    %25 = vector.extract_strided_slice %3 {offsets = [0, 3, 0], sizes = [4, 80, 4], strides = [1, 1, 1]} : vector<4x89x4xf32> to vector<4x80x4xf32>
    %26 = vector.shape_cast %25 : vector<4x80x4xf32> to vector<320x4xf32>
    %27 = vector.extract_strided_slice %4 {offsets = [3, 0, 0], sizes = [1, 4, 8], strides = [1, 1, 1]} : vector<10x4x8xf32> to vector<1x4x8xf32>
    %28 = vector.shape_cast %27 : vector<1x4x8xf32> to vector<4x8xf32>
    %cst_13 = arith.constant dense<0.000000e+00> : vector<320x8xf32>
    %29 = tpu.matmul %26, %28, %cst_13 {dimension_numbers = #tpu.dot_dimension_numbers<[1], [0], [0], [1], [0, 0, 1, 1], [], []>} : vector<320x4xf32>, vector<4x8xf32>, vector<320x8xf32> -> vector<320x8xf32>
    %30 = arith.addf %24, %29 : vector<320x8xf32>
    %31 = vector.extract_strided_slice %3 {offsets = [0, 4, 0], sizes = [4, 80, 4], strides = [1, 1, 1]} : vector<4x89x4xf32> to vector<4x80x4xf32>
    %32 = vector.shape_cast %31 : vector<4x80x4xf32> to vector<320x4xf32>
    %33 = vector.extract_strided_slice %4 {offsets = [4, 0, 0], sizes = [1, 4, 8], strides = [1, 1, 1]} : vector<10x4x8xf32> to vector<1x4x8xf32>
    %34 = vector.shape_cast %33 : vector<1x4x8xf32> to vector<4x8xf32>
    %cst_14 = arith.constant dense<0.000000e+00> : vector<320x8xf32>
    %35 = tpu.matmul %32, %34, %cst_14 {dimension_numbers = #tpu.dot_dimension_numbers<[1], [0], [0], [1], [0, 0, 1, 1], [], []>} : vector<320x4xf32>, vector<4x8xf32>, vector<320x8xf32> -> vector<320x8xf32>
    %36 = arith.addf %30, %35 : vector<320x8xf32>
    %37 = vector.extract_strided_slice %3 {offsets = [0, 5, 0], sizes = [4, 80, 4], strides = [1, 1, 1]} : vector<4x89x4xf32> to vector<4x80x4xf32>
    %38 = vector.shape_cast %37 : vector<4x80x4xf32> to vector<320x4xf32>
    %39 = vector.extract_strided_slice %4 {offsets = [5, 0, 0], sizes = [1, 4, 8], strides = [1, 1, 1]} : vector<10x4x8xf32> to vector<1x4x8xf32>
    %40 = vector.shape_cast %39 : vector<1x4x8xf32> to vector<4x8xf32>
    %cst_15 = arith.constant dense<0.000000e+00> : vector<320x8xf32>
    %41 = tpu.matmul %38, %40, %cst_15 {dimension_numbers = #tpu.dot_dimension_numbers<[1], [0], [0], [1], [0, 0, 1, 1], [], []>} : vector<320x4xf32>, vector<4x8xf32>, vector<320x8xf32> -> vector<320x8xf32>
    %42 = arith.addf %36, %41 : vector<320x8xf32>
    %43 = vector.extract_strided_slice %3 {offsets = [0, 6, 0], sizes = [4, 80, 4], strides = [1, 1, 1]} : vector<4x89x4xf32> to vector<4x80x4xf32>
    %44 = vector.shape_cast %43 : vector<4x80x4xf32> to vector<320x4xf32>
    %45 = vector.extract_strided_slice %4 {offsets = [6, 0, 0], sizes = [1, 4, 8], strides = [1, 1, 1]} : vector<10x4x8xf32> to vector<1x4x8xf32>
    %46 = vector.shape_cast %45 : vector<1x4x8xf32> to vector<4x8xf32>
    %cst_16 = arith.constant dense<0.000000e+00> : vector<320x8xf32>
    %47 = tpu.matmul %44, %46, %cst_16 {dimension_numbers = #tpu.dot_dimension_numbers<[1], [0], [0], [1], [0, 0, 1, 1], [], []>} : vector<320x4xf32>, vector<4x8xf32>, vector<320x8xf32> -> vector<320x8xf32>
    %48 = arith.addf %42, %47 : vector<320x8xf32>
    %49 = vector.extract_strided_slice %3 {offsets = [0, 7, 0], sizes = [4, 80, 4], strides = [1, 1, 1]} : vector<4x89x4xf32> to vector<4x80x4xf32>
    %50 = vector.shape_cast %49 : vector<4x80x4xf32> to vector<320x4xf32>
    %51 = vector.extract_strided_slice %4 {offsets = [7, 0, 0], sizes = [1, 4, 8], strides = [1, 1, 1]} : vector<10x4x8xf32> to vector<1x4x8xf32>
    %52 = vector.shape_cast %51 : vector<1x4x8xf32> to vector<4x8xf32>
    %cst_17 = arith.constant dense<0.000000e+00> : vector<320x8xf32>
    %53 = tpu.matmul %50, %52, %cst_17 {dimension_numbers = #tpu.dot_dimension_numbers<[1], [0], [0], [1], [0, 0, 1, 1], [], []>} : vector<320x4xf32>, vector<4x8xf32>, vector<320x8xf32> -> vector<320x8xf32>
    %54 = arith.addf %48, %53 : vector<320x8xf32>
    %55 = vector.extract_strided_slice %3 {offsets = [0, 8, 0], sizes = [4, 80, 4], strides = [1, 1, 1]} : vector<4x89x4xf32> to vector<4x80x4xf32>
    %56 = vector.shape_cast %55 : vector<4x80x4xf32> to vector<320x4xf32>
    %57 = vector.extract_strided_slice %4 {offsets = [8, 0, 0], sizes = [1, 4, 8], strides = [1, 1, 1]} : vector<10x4x8xf32> to vector<1x4x8xf32>
    %58 = vector.shape_cast %57 : vector<1x4x8xf32> to vector<4x8xf32>
    %cst_18 = arith.constant dense<0.000000e+00> : vector<320x8xf32>
    %59 = tpu.matmul %56, %58, %cst_18 {dimension_numbers = #tpu.dot_dimension_numbers<[1], [0], [0], [1], [0, 0, 1, 1], [], []>} : vector<320x4xf32>, vector<4x8xf32>, vector<320x8xf32> -> vector<320x8xf32>
    %60 = arith.addf %54, %59 : vector<320x8xf32>
    %61 = vector.extract_strided_slice %3 {offsets = [0, 9, 0], sizes = [4, 80, 4], strides = [1, 1, 1]} : vector<4x89x4xf32> to vector<4x80x4xf32>
    %62 = vector.shape_cast %61 : vector<4x80x4xf32> to vector<320x4xf32>
    %63 = vector.extract_strided_slice %4 {offsets = [9, 0, 0], sizes = [1, 4, 8], strides = [1, 1, 1]} : vector<10x4x8xf32> to vector<1x4x8xf32>
    %64 = vector.shape_cast %63 : vector<1x4x8xf32> to vector<4x8xf32>
    %cst_19 = arith.constant dense<0.000000e+00> : vector<320x8xf32>
    %65 = tpu.matmul %62, %64, %cst_19 {dimension_numbers = #tpu.dot_dimension_numbers<[1], [0], [0], [1], [0, 0, 1, 1], [], []>} : vector<320x4xf32>, vector<4x8xf32>, vector<320x8xf32> -> vector<320x8xf32>
    %66 = arith.addf %60, %65 : vector<320x8xf32>
    %67 = vector.broadcast %5 : vector<1x8xf32> to vector<320x8xf32>
    %68 = arith.addf %66, %67 : vector<320x8xf32>
    %cst_20 = arith.constant 0.000000e+00 : f32
    %69 = vector.broadcast %cst_20 : f32 to vector<320x8xf32>
    %70 = arith.maximumf %68, %69 : vector<320x8xf32>
    %71 = vector.shape_cast %70 : vector<320x8xf32> to vector<2x2x80x8xf32>
    %72 = vector.shape_cast %71 : vector<2x2x80x8xf32> to vector<2x2x4x20x8xf32>
    %73 = vector.extract_strided_slice %72 {offsets = [0, 0, 0, 0, 0], sizes = [2, 2, 1, 20, 8], strides = [1, 1, 1, 1, 1]} : vector<2x2x4x20x8xf32> to vector<2x2x1x20x8xf32>
    %74 = vector.shape_cast %73 : vector<2x2x1x20x8xf32> to vector<2x2x20x8xf32>
    %cst_21 = arith.constant dense<0xFF800000> : vector<2x2x8xf32>
    %75 = vector.multi_reduction <maximumf>, %74, %cst_21 [2] : vector<2x2x20x8xf32> to vector<2x2x8xf32>
    %76 = vector.extract_strided_slice %72 {offsets = [0, 0, 1, 0, 0], sizes = [2, 2, 1, 20, 8], strides = [1, 1, 1, 1, 1]} : vector<2x2x4x20x8xf32> to vector<2x2x1x20x8xf32>
    %77 = vector.shape_cast %76 : vector<2x2x1x20x8xf32> to vector<2x2x20x8xf32>
    %cst_22 = arith.constant dense<0xFF800000> : vector<2x2x8xf32>
    %78 = vector.multi_reduction <maximumf>, %77, %cst_22 [2] : vector<2x2x20x8xf32> to vector<2x2x8xf32>
    %79 = vector.extract_strided_slice %72 {offsets = [0, 0, 2, 0, 0], sizes = [2, 2, 1, 20, 8], strides = [1, 1, 1, 1, 1]} : vector<2x2x4x20x8xf32> to vector<2x2x1x20x8xf32>
    %80 = vector.shape_cast %79 : vector<2x2x1x20x8xf32> to vector<2x2x20x8xf32>
    %cst_23 = arith.constant dense<0xFF800000> : vector<2x2x8xf32>
    %81 = vector.multi_reduction <maximumf>, %80, %cst_23 [2] : vector<2x2x20x8xf32> to vector<2x2x8xf32>
    %82 = vector.extract_strided_slice %72 {offsets = [0, 0, 3, 0, 0], sizes = [2, 2, 1, 20, 8], strides = [1, 1, 1, 1, 1]} : vector<2x2x4x20x8xf32> to vector<2x2x1x20x8xf32>
    %83 = vector.shape_cast %82 : vector<2x2x1x20x8xf32> to vector<2x2x20x8xf32>
    %cst_24 = arith.constant dense<0xFF800000> : vector<2x2x8xf32>
    %84 = vector.multi_reduction <maximumf>, %83, %cst_24 [2] : vector<2x2x20x8xf32> to vector<2x2x8xf32>
    %85 = vector.shape_cast %75 : vector<2x2x8xf32> to vector<2x1x2x8xf32>
    %86 = vector.shape_cast %78 : vector<2x2x8xf32> to vector<2x1x2x8xf32>
    %87 = vector.shape_cast %81 : vector<2x2x8xf32> to vector<2x1x2x8xf32>
    %88 = vector.shape_cast %84 : vector<2x2x8xf32> to vector<2x1x2x8xf32>
    %89 = tpu.concatenate %85, %86, %87, %88 in 1 : vector<2x1x2x8xf32>, vector<2x1x2x8xf32>, vector<2x1x2x8xf32>, vector<2x1x2x8xf32> -> vector<2x4x2x8xf32>
    %c0_25 = arith.constant 0 : index
    %c0_26 = arith.constant 0 : index
    %c0_27 = arith.constant 0 : index
    %c0_28 = arith.constant 0 : index
    %90 = vector.load %arg4[%c0_25, %c0_26, %c0_27, %c0_28] : memref<2x4x2x8xf32, #tpu.memory_space<vmem>>, vector<2x4x2x8xf32>
    tpu.vector_store %arg4[%c0_25, %c0_26, %c0_27, %c0_28], %89 {strides = array<i32>} : memref<2x4x2x8xf32, #tpu.memory_space<vmem>>, vector<2x4x2x8xf32>,
    return
  }
}

</mosaic_0001>

<llo_original>
// kernel: conv_forward.1
$region0: #{conv_forward.1}
  #allocation0 [shape = 'u32[]', space=smem, size = 0x4, offset = 0x4, fixed_abs, tag = 'smem constant byte address 0x4 - core index']
  #allocation1 [shape = 'u32[144,128]{1,0:T(1,128)}', space=vmem, size = 0x12000, scoped, tag = 'internal scratch']
  %s0 = inlined_call_operand.vmem [shape: f32[2,4,89], index: 0, kind: input, shape index: {}]
  %s1 = inlined_call_operand.vmem [shape: f32[2,4,89], index: 1, kind: input, shape index: {}]
  %s2 = inlined_call_operand.vmem [shape: f32[10,4,8], index: 2, kind: input, shape index: {}]
  %s3 = inlined_call_operand.vmem [shape: f32[1,8], index: 3, kind: input, shape index: {}]
  %s4 = inlined_call_operand.hbm [shape: f32[2,4,2,8], index: 4, kind: output, shape index: {}]
  %s5 = sld [smem:[#allocation0]]
  $region26: #{conv_forward.1} parent=0
    _
  %s7 = ssub.s32 1, %s5
  %s8 = scalar_select 0, %s7, %s5
  $region1: #{conv_forward.1} parent=0
    #allocation2 [shape = 'u8[8192]{0}', space=vmem, size = 0x2000, scoped, tag = 'output window, operand 0, single buffered']
    #allocation3 [shape = 's32[1]{0}', space=sflag, size = 0x4, scoped, tag = 'scoped memory for conv_forward.1']
    %9 = vsyncpa [#allocation3], 0
    // Predicated region
    $region2: #{conv_forward.1} parent=1 // pred_check
      _
    $region3: #{conv_forward.1} parent=1 // pred_check_branch
      %11 = sbr.rel (0) target = $region5
    $region4: #{conv_forward.1} parent=1 // pred_region
      _
    $region5: #{conv_forward.1} parent=1 // pred_fallthru
      _
    // Predicated region
    $region6: #{conv_forward.1} parent=1 // pred_check
      _
    $region7: #{conv_forward.1} parent=1 // pred_check_branch
      %13 = sbr.rel (0) target = $region9
    $region8: #{conv_forward.1} parent=1 // pred_region
      _
    $region9: #{conv_forward.1} parent=1 // pred_fallthru
      _
    // Predicated region
    $region10: #{conv_forward.1} parent=1 // pred_check
      _
    $region11: #{conv_forward.1} parent=1 // pred_check_branch
      %15 = sbr.rel (0) target = $region13
    $region12: #{conv_forward.1} parent=1 // pred_region
      _
    $region13: #{conv_forward.1} parent=1 // pred_fallthru
      _
    // Predicated region
    $region14: #{conv_forward.1} parent=1 // pred_check
      _
    $region15: #{conv_forward.1} parent=1 // pred_check_branch
      %17 = sbr.rel (0) target = $region17
    $region16: #{conv_forward.1} parent=1 // pred_region
      _
    $region17: #{conv_forward.1} parent=1 // pred_fallthru
      _
    %v18 = vld [vmem:[%s0] sm:$0xf]
    %v19 = vld [vmem:[%s0 + $0x4] sm:$0xf]
    %v20 = vld [vmem:[%s1] sm:$0xf]
    %v21 = vld [vmem:[%s1 + $0x4] sm:$0xf]
    %22 = vxpose.xlu0.b32.start [1/16] %v18, 128
    %23 = vxpose.xlu0.b32.cont [2/16] 0.0, 128
    %24 = vxpose.xlu0.b32.cont [3/16] 0.0, 128
    %25 = vxpose.xlu0.b32.cont [4/16] 0.0, 128
    %26 = vxpose.xlu0.b32.cont [5/16] 0.0, 128
    %27 = vxpose.xlu0.b32.cont [6/16] 0.0, 128
    %28 = vxpose.xlu0.b32.cont [7/16] 0.0, 128
    %29 = vxpose.xlu0.b32.cont [8/16] 0.0, 128
    %30 = vxpose.xlu0.b32.cont [9/16] 0.0, 128
    %31 = vxpose.xlu0.b32.cont [10/16] 0.0, 128
    %32 = vxpose.xlu0.b32.cont [11/16] 0.0, 128
    %33 = vxpose.xlu0.b32.cont [12/16] 0.0, 128
    %34 = vxpose.xlu0.b32.cont [13/16] 0.0, 128
    %35 = vxpose.xlu0.b32.cont [14/16] 0.0, 128
    %36 = vxpose.xlu0.b32.cont [15/16] 0.0, 128
    %37 = vxpose.xlu0.b32.end [16/16] 0.0, 128
    %v38 = vpop.trf.xlu0
    %v39 = vpop.trf.xlu0
    %v40 = vpop.trf.xlu0
    %v41 = vpop.trf.xlu0
    %v42 = vpop.trf.xlu0
    %v43 = vpop.trf.xlu0
    %v44 = vpop.trf.xlu0
    %v45 = vpop.trf.xlu0
    %v46 = vpop.trf.xlu0
    %v47 = vpop.trf.xlu0
    %v48 = vpop.trf.xlu0
    %v49 = vpop.trf.xlu0
    %v50 = vpop.trf.xlu0
    %v51 = vpop.trf.xlu0
    %v52 = vpop.trf.xlu0
    %v53 = vpop.trf.xlu0
    %54 = vxpose.xlu0.b32.start [1/16] %v19, 128
    %55 = vxpose.xlu0.b32.cont [2/16] 0.0, 128
    %56 = vxpose.xlu0.b32.cont [3/16] 0.0, 128
    %57 = vxpose.xlu0.b32.cont [4/16] 0.0, 128
    %58 = vxpose.xlu0.b32.cont [5/16] 0.0, 128
    %59 = vxpose.xlu0.b32.cont [6/16] 0.0, 128
    %60 = vxpose.xlu0.b32.cont [7/16] 0.0, 128
    %61 = vxpose.xlu0.b32.cont [8/16] 0.0, 128
    %62 = vxpose.xlu0.b32.cont [9/16] 0.0, 128
    %63 = vxpose.xlu0.b32.cont [10/16] 0.0, 128
    %64 = vxpose.xlu0.b32.cont [11/16] 0.0, 128
    %65 = vxpose.xlu0.b32.cont [12/16] 0.0, 128
    %66 = vxpose.xlu0.b32.cont [13/16] 0.0, 128
    %67 = vxpose.xlu0.b32.cont [14/16] 0.0, 128
    %68 = vxpose.xlu0.b32.cont [15/16] 0.0, 128
    %69 = vxpose.xlu0.b32.end [16/16] 0.0, 128
    %v70 = vpop.trf.xlu0
    %v71 = vpop.trf.xlu0
    %v72 = vpop.trf.xlu0
    %v73 = vpop.trf.xlu0
    %v74 = vpop.trf.xlu0
    %v75 = vpop.trf.xlu0
    %v76 = vpop.trf.xlu0
    %v77 = vpop.trf.xlu0
    %v78 = vpop.trf.xlu0
    %v79 = vpop.trf.xlu0
    %v80 = vpop.trf.xlu0
    %v81 = vpop.trf.xlu0
    %v82 = vpop.trf.xlu0
    %v83 = vpop.trf.xlu0
    %v84 = vpop.trf.xlu0
    %v85 = vpop.trf.xlu0
    %86 = vxpose.xlu0.b32.start [1/16] %v20, 128
    %87 = vxpose.xlu0.b32.cont [2/16] 0.0, 128
    %88 = vxpose.xlu0.b32.cont [3/16] 0.0, 128
    %89 = vxpose.xlu0.b32.cont [4/16] 0.0, 128
    %90 = vxpose.xlu0.b32.cont [5/16] 0.0, 128
    %91 = vxpose.xlu0.b32.cont [6/16] 0.0, 128
    %92 = vxpose.xlu0.b32.cont [7/16] 0.0, 128
    %93 = vxpose.xlu0.b32.cont [8/16] 0.0, 128
    %94 = vxpose.xlu0.b32.cont [9/16] 0.0, 128
    %95 = vxpose.xlu0.b32.cont [10/16] 0.0, 128
    %96 = vxpose.xlu0.b32.cont [11/16] 0.0, 128
    %97 = vxpose.xlu0.b32.cont [12/16] 0.0, 128
    %98 = vxpose.xlu0.b32.cont [13/16] 0.0, 128
    %99 = vxpose.xlu0.b32.cont [14/16] 0.0, 128
    %100 = vxpose.xlu0.b32.cont [15/16] 0.0, 128
    %101 = vxpose.xlu0.b32.end [16/16] 0.0, 128
    %v102 = vpop.trf.xlu0
    %v103 = vpop.trf.xlu0
    %v104 = vpop.trf.xlu0
    %v105 = vpop.trf.xlu0
    %v106 = vpop.trf.xlu0
    %v107 = vpop.trf.xlu0
    %v108 = vpop.trf.xlu0
    %v109 = vpop.trf.xlu0
    %v110 = vpop.trf.xlu0
    %v111 = vpop.trf.xlu0
    %v112 = vpop.trf.xlu0
    %v113 = vpop.trf.xlu0
    %v114 = vpop.trf.xlu0
    %v115 = vpop.trf.xlu0
    %v116 = vpop.trf.xlu0
    %v117 = vpop.trf.xlu0
    %118 = vxpose.xlu0.b32.start [1/16] %v21, 128
    %119 = vxpose.xlu0.b32.cont [2/16] 0.0, 128
    %120 = vxpose.xlu0.b32.cont [3/16] 0.0, 128
    %121 = vxpose.xlu0.b32.cont [4/16] 0.0, 128
    %122 = vxpose.xlu0.b32.cont [5/16] 0.0, 128
    %123 = vxpose.xlu0.b32.cont [6/16] 0.0, 128
    %124 = vxpose.xlu0.b32.cont [7/16] 0.0, 128
    %125 = vxpose.xlu0.b32.cont [8/16] 0.0, 128
    %126 = vxpose.xlu0.b32.cont [9/16] 0.0, 128
    %127 = vxpose.xlu0.b32.cont [10/16] 0.0, 128
    %128 = vxpose.xlu0.b32.cont [11/16] 0.0, 128
    %129 = vxpose.xlu0.b32.cont [12/16] 0.0, 128
    %130 = vxpose.xlu0.b32.cont [13/16] 0.0, 128
    %131 = vxpose.xlu0.b32.cont [14/16] 0.0, 128
    %132 = vxpose.xlu0.b32.cont [15/16] 0.0, 128
    %133 = vxpose.xlu0.b32.end [16/16] 0.0, 128
    %v134 = vpop.trf.xlu0
    %v135 = vpop.trf.xlu0
    %v136 = vpop.trf.xlu0
    %v137 = vpop.trf.xlu0
    %v138 = vpop.trf.xlu0
    %v139 = vpop.trf.xlu0
    %v140 = vpop.trf.xlu0
    %v141 = vpop.trf.xlu0
    %v142 = vpop.trf.xlu0
    %v143 = vpop.trf.xlu0
    %v144 = vpop.trf.xlu0
    %v145 = vpop.trf.xlu0
    %v146 = vpop.trf.xlu0
    %v147 = vpop.trf.xlu0
    %v148 = vpop.trf.xlu0
    %v149 = vpop.trf.xlu0
    %v150 = vld [vmem:[%s2] sm:$0xf]
    %v151 = vld [vmem:[%s2 + $0x4] sm:$0xf]
    %v152 = vld [vmem:[%s2 + $0x8] sm:$0xf]
    %v153 = vld [vmem:[%s2 + $0xc] sm:$0xf]
    %v154 = vld [vmem:[%s2 + $0x10] sm:$0xf]
    %v155 = vld [vmem:[%s2 + $0x14] sm:$0xf]
    %v156 = vld [vmem:[%s2 + $0x18] sm:$0xf]
    %v157 = vld [vmem:[%s2 + $0x1c] sm:$0xf]
    %v158 = vld [vmem:[%s2 + $0x20] sm:$0xf]
    %v159 = vld [vmem:[%s2 + $0x24] sm:$0xf]
    %v160 = vld [vmem:[%s3] sm:$0x1]
    %vm205 = vcmask 1046528
    %v206 = vrot.slane %v38, 1
    %v207 = vrot.slane %v39, 1
    %v208 = vsel %vm205, %v206, %v207
    %v209 = vrot.slane %v40, 1
    %v210 = vsel %vm205, %v207, %v209
    %v211 = vrot.slane %v41, 1
    %v212 = vsel %vm205, %v209, %v211
    %v213 = vrot.slane %v42, 1
    %v214 = vsel %vm205, %v211, %v213
    %v215 = vrot.slane %v43, 1
    %v216 = vsel %vm205, %v213, %v215
    %v217 = vrot.slane %v44, 1
    %v218 = vsel %vm205, %v215, %v217
    %v219 = vrot.slane %v45, 1
    %v220 = vsel %vm205, %v217, %v219
    %v221 = vrot.slane %v46, 1
    %v222 = vsel %vm205, %v219, %v221
    %v223 = vrot.slane %v47, 1
    %v224 = vsel %vm205, %v221, %v223
    %v225 = vrot.slane %v48, 1
    %v226 = vsel %vm205, %v223, %v225
    %v227 = vrot.slane %v70, 1
    %v228 = vrot.slane %v71, 1
    %v229 = vsel %vm205, %v227, %v228
    %v230 = vrot.slane %v72, 1
    %v231 = vsel %vm205, %v228, %v230
    %v232 = vrot.slane %v73, 1
    %v233 = vsel %vm205, %v230, %v232
    %v234 = vrot.slane %v74, 1
    %v235 = vsel %vm205, %v232, %v234
    %v236 = vrot.slane %v75, 1
    %v237 = vsel %vm205, %v234, %v236
    %v238 = vrot.slane %v76, 1
    %v239 = vsel %vm205, %v236, %v238
    %v240 = vrot.slane %v77, 1
    %v241 = vsel %vm205, %v238, %v240
    %v242 = vrot.slane %v78, 1
    %v243 = vsel %vm205, %v240, %v242
    %v244 = vrot.slane %v79, 1
    %v245 = vsel %vm205, %v242, %v244
    %v246 = vrot.slane %v80, 1
    %v247 = vsel %vm205, %v244, %v246
    %v248 = vrot.slane %v102, 1
    %v249 = vrot.slane %v103, 1
    %v250 = vsel %vm205, %v248, %v249
    %v251 = vrot.slane %v104, 1
    %v252 = vsel %vm205, %v249, %v251
    %v253 = vrot.slane %v105, 1
    %v254 = vsel %vm205, %v251, %v253
    %v255 = vrot.slane %v106, 1
    %v256 = vsel %vm205, %v253, %v255
    %v257 = vrot.slane %v107, 1
    %v258 = vsel %vm205, %v255, %v257
    %v259 = vrot.slane %v108, 1
    %v260 = vsel %vm205, %v257, %v259
    %v261 = vrot.slane %v109, 1
    %v262 = vsel %vm205, %v259, %v261
    %v263 = vrot.slane %v110, 1
    %v264 = vsel %vm205, %v261, %v263
    %v265 = vrot.slane %v111, 1
    %v266 = vsel %vm205, %v263, %v265
    %v267 = vrot.slane %v112, 1
    %v268 = vsel %vm205, %v265, %v267
    %v269 = vrot.slane %v134, 1
    %v270 = vrot.slane %v135, 1
    %v271 = vsel %vm205, %v269, %v270
    %v272 = vrot.slane %v136, 1
    %v273 = vsel %vm205, %v270, %v272
    %v274 = vrot.slane %v137, 1
    %v275 = vsel %vm205, %v272, %v274
    %v276 = vrot.slane %v138, 1
    %v277 = vsel %vm205, %v274, %v276
    %v278 = vrot.slane %v139, 1
    %v279 = vsel %vm205, %v276, %v278
    %v280 = vrot.slane %v140, 1
    %v281 = vsel %vm205, %v278, %v280
    %v282 = vrot.slane %v141, 1
    %v283 = vsel %vm205, %v280, %v282
    %v284 = vrot.slane %v142, 1
    %v285 = vsel %vm205, %v282, %v284
    %v286 = vrot.slane %v143, 1
    %v287 = vsel %vm205, %v284, %v286
    %v288 = vrot.slane %v144, 1
    %v289 = vsel %vm205, %v286, %v288
    %vm290 = vcmask 31744
    %v291 = vsel %vm290, %v208, 0
    %v293 = vsel %vm290, %v210, 0
    %v295 = vsel %vm290, %v212, 0
    %v297 = vsel %vm290, %v214, 0
    %v299 = vsel %vm290, %v216, 0
    %v301 = vsel %vm290, %v218, 0
    %v303 = vsel %vm290, %v220, 0
    %v305 = vsel %vm290, %v222, 0
    %v307 = vsel %vm290, %v224, 0
    %v309 = vsel %vm290, %v226, 0
    %v311 = vsel %vm290, %v229, 0
    %v313 = vsel %vm290, %v231, 0
    %v315 = vsel %vm290, %v233, 0
    %v317 = vsel %vm290, %v235, 0
    %v319 = vsel %vm290, %v237, 0
    %v321 = vsel %vm290, %v239, 0
    %v323 = vsel %vm290, %v241, 0
    %v325 = vsel %vm290, %v243, 0
    %v327 = vsel %vm290, %v245, 0
    %v329 = vsel %vm290, %v247, 0
    %v331 = vsel %vm290, %v250, 0
    %v333 = vsel %vm290, %v252, 0
    %v335 = vsel %vm290, %v254, 0
    %v337 = vsel %vm290, %v256, 0
    %v339 = vsel %vm290, %v258, 0
    %v341 = vsel %vm290, %v260, 0
    %v343 = vsel %vm290, %v262, 0
    %v345 = vsel %vm290, %v264, 0
    %v347 = vsel %vm290, %v266, 0
    %v349 = vsel %vm290, %v268, 0
    %v351 = vsel %vm290, %v271, 0
    %v353 = vsel %vm290, %v273, 0
    %v355 = vsel %vm290, %v275, 0
    %v357 = vsel %vm290, %v277, 0
    %v359 = vsel %vm290, %v279, 0
    %v361 = vsel %vm290, %v281, 0
    %v363 = vsel %vm290, %v283, 0
    %v365 = vsel %vm290, %v285, 0
    %v367 = vsel %vm290, %v287, 0
    %v369 = vsel %vm290, %v289, 0
    %vm371 = vcmask 1043456
    %v373 = vsel %vm371, %v151, 0
    %375 = vmatprep.subr.mxu0 0.0
    %376 = vmatpush1.msra.mxu0 0.0
    %377 = vmatprep.subr.mxu0 0.0
    %378 = vmatpush1.msra.mxu0 0.0
    %379 = vmatprep.subr.mxu0 0.0
    %380 = vmatpush1.msra.mxu0 0.0
    %381 = vmatprep.subr.mxu0 0.0
    %382 = vmatpush1.msra.mxu0 0.0
    %383 = vmatprep.subr.mxu0 0.0
    %384 = vmatpush1.msra.mxu0 0.0
    %385 = vmatprep.subr.mxu0 0.0
    %386 = vmatpush1.msra.mxu0 0.0
    %387 = vmatprep.subr.mxu0 0.0
    %388 = vmatpush1.msra.mxu0 0.0
    %389 = vmatprep.subr.mxu0 0.0
    %390 = vmatpush1.msra.mxu0 0.0
    %391 = vmatprep.subr.mxu0 0.0
    %392 = vmatpush1.msra.mxu0 0.0
    %393 = vmatprep.subr.mxu0 0.0
    %394 = vmatpush1.msra.mxu0 0.0
    %395 = vmatprep.subr.mxu0 0.0
    %396 = vmatpush1.msra.mxu0 0.0
    %397 = vmatprep.subr.mxu0 0.0
    %398 = vmatpush1.msra.mxu0 0.0
    %399 = vmatprep.subr.mxu0 0.0
    %400 = vmatpush1.msra.mxu0 0.0
    %401 = vmatprep.subr.mxu0 0.0
    %402 = vmatpush1.msra.mxu0 0.0
    %403 = vmatprep.subr.mxu0 0.0
    %404 = vmatpush1.msra.mxu0 0.0
    %405 = vmatprep.subr.mxu0 0.0
    %406 = vmatpush1.msra.mxu0 %v373
    %407 = vmatprep.subr.mxu0 0.0
    %408 = vmatpush2.msra.mxu0 0.0
    %409 = vmatprep.subr.mxu0 0.0
    %410 = vmatpush2.msra.mxu0 0.0
    %411 = vmatprep.subr.mxu0 0.0
    %412 = vmatpush2.msra.mxu0 0.0
    %413 = vmatprep.subr.mxu0 0.0
    %414 = vmatpush2.msra.mxu0 0.0
    %415 = vmatprep.subr.mxu0 0.0
    %416 = vmatpush2.msra.mxu0 0.0
    %417 = vmatprep.subr.mxu0 0.0
    %418 = vmatpush2.msra.mxu0 0.0
    %419 = vmatprep.subr.mxu0 0.0
    %420 = vmatpush2.msra.mxu0 0.0
    %421 = vmatprep.subr.mxu0 0.0
    %422 = vmatpush2.msra.mxu0 0.0
    %423 = vmatprep.subr.mxu0 0.0
    %424 = vmatpush2.msra.mxu0 0.0
    %425 = vmatprep.subr.mxu0 0.0
    %426 = vmatpush2.msra.mxu0 0.0
    %427 = vmatprep.subr.mxu0 0.0
    %428 = vmatpush2.msra.mxu0 0.0
    %429 = vmatprep.subr.mxu0 0.0
    %430 = vmatpush2.msra.mxu0 0.0
    %431 = vmatprep.subr.mxu0 0.0
    %432 = vmatpush2.msra.mxu0 0.0
    %433 = vmatprep.subr.mxu0 0.0
    %434 = vmatpush2.msra.mxu0 0.0
    %435 = vmatprep.subr.mxu0 0.0
    %436 = vmatpush2.msra.mxu0 0.0
    %437 = vmatprep.subr.mxu0 0.0
    %438 = vmatpush2.msra.mxu0 0.0
    %439 = vmatprep.mubr.f32.mxu0 0.0
    %440 = vmatmul.mubr.f32.gmra.mxu0 %v291
    %v441 = vpop.f32.mrf.mxu0
    %v442 = vadd.f32 0.0, %v441
    %v443 = vpop.f32.mrf.mxu0
    %444 = vmatprep.mubr.f32.mxu0 0.0
    %445 = vmatmul.mubr.f32.gmra.mxu0 %v293
    %v446 = vpop.f32.mrf.mxu0
    %v447 = vadd.f32 0.0, %v446
    %v448 = vpop.f32.mrf.mxu0
    %449 = vmatprep.mubr.f32.mxu0 0.0
    %450 = vmatmul.mubr.f32.gmra.mxu0 %v295
    %v451 = vpop.f32.mrf.mxu0
    %v452 = vadd.f32 0.0, %v451
    %v453 = vpop.f32.mrf.mxu0
    %454 = vmatprep.mubr.f32.mxu0 0.0
    %455 = vmatmul.mubr.f32.gmra.mxu0 %v297
    %v456 = vpop.f32.mrf.mxu0
    %v457 = vadd.f32 0.0, %v456
    %v458 = vpop.f32.mrf.mxu0
    %459 = vmatprep.mubr.f32.mxu0 0.0
    %460 = vmatmul.mubr.f32.gmra.mxu0 %v299
    %v461 = vpop.f32.mrf.mxu0
    %v462 = vadd.f32 0.0, %v461
    %v463 = vpop.f32.mrf.mxu0
    %464 = vmatprep.mubr.f32.mxu0 0.0
    %465 = vmatmul.mubr.f32.gmra.mxu0 %v301
    %v466 = vpop.f32.mrf.mxu0
    %v467 = vadd.f32 0.0, %v466
    %v468 = vpop.f32.mrf.mxu0
    %469 = vmatprep.mubr.f32.mxu0 0.0
    %470 = vmatmul.mubr.f32.gmra.mxu0 %v303
    %v471 = vpop.f32.mrf.mxu0
    %v472 = vadd.f32 0.0, %v471
    %v473 = vpop.f32.mrf.mxu0
    %474 = vmatprep.mubr.f32.mxu0 0.0
    %475 = vmatmul.mubr.f32.gmra.mxu0 %v305
    %v476 = vpop.f32.mrf.mxu0
    %v477 = vadd.f32 0.0, %v476
    %v478 = vpop.f32.mrf.mxu0
    %479 = vmatprep.mubr.f32.mxu0 0.0
    %480 = vmatmul.mubr.f32.gmra.mxu0 %v307
    %v481 = vpop.f32.mrf.mxu0
    %v482 = vadd.f32 0.0, %v481
    %v483 = vpop.f32.mrf.mxu0
    %484 = vmatprep.mubr.f32.mxu0 0.0
    %485 = vmatmul.mubr.f32.gmra.mxu0 %v309
    %v486 = vpop.f32.mrf.mxu0
    %v487 = vadd.f32 0.0, %v486
    %v488 = vpop.f32.mrf.mxu0
    %489 = vmatprep.mubr.f32.mxu0 0.0
    %490 = vmatmul.mubr.f32.gmra.mxu0 %v311
    %v491 = vpop.f32.mrf.mxu0
    %v492 = vadd.f32 0.0, %v491
    %v493 = vpop.f32.mrf.mxu0
    %494 = vmatprep.mubr.f32.mxu0 0.0
    %495 = vmatmul.mubr.f32.gmra.mxu0 %v313
    %v496 = vpop.f32.mrf.mxu0
    %v497 = vadd.f32 0.0, %v496
    %v498 = vpop.f32.mrf.mxu0
    %499 = vmatprep.mubr.f32.mxu0 0.0
    %500 = vmatmul.mubr.f32.gmra.mxu0 %v315
    %v501 = vpop.f32.mrf.mxu0
    %v502 = vadd.f32 0.0, %v501
    %v503 = vpop.f32.mrf.mxu0
    %504 = vmatprep.mubr.f32.mxu0 0.0
    %505 = vmatmul.mubr.f32.gmra.mxu0 %v317
    %v506 = vpop.f32.mrf.mxu0
    %v507 = vadd.f32 0.0, %v506
    %v508 = vpop.f32.mrf.mxu0
    %509 = vmatprep.mubr.f32.mxu0 0.0
    %510 = vmatmul.mubr.f32.gmra.mxu0 %v319
    %v511 = vpop.f32.mrf.mxu0
    %v512 = vadd.f32 0.0, %v511
    %v513 = vpop.f32.mrf.mxu0
    %514 = vmatprep.mubr.f32.mxu0 0.0
    %515 = vmatmul.mubr.f32.gmra.mxu0 %v321
    %v516 = vpop.f32.mrf.mxu0
    %v517 = vadd.f32 0.0, %v516
    %v518 = vpop.f32.mrf.mxu0
    %519 = vmatprep.mubr.f32.mxu0 0.0
    %520 = vmatmul.mubr.f32.gmra.mxu0 %v323
    %v521 = vpop.f32.mrf.mxu0
    %v522 = vadd.f32 0.0, %v521
    %v523 = vpop.f32.mrf.mxu0
    %524 = vmatprep.mubr.f32.mxu0 0.0
    %525 = vmatmul.mubr.f32.gmra.mxu0 %v325
    %v526 = vpop.f32.mrf.mxu0
    %v527 = vadd.f32 0.0, %v526
    %v528 = vpop.f32.mrf.mxu0
    %529 = vmatprep.mubr.f32.mxu0 0.0
    %530 = vmatmul.mubr.f32.gmra.mxu0 %v327
    %v531 = vpop.f32.mrf.mxu0
    %v532 = vadd.f32 0.0, %v531
    %v533 = vpop.f32.mrf.mxu0
    %534 = vmatprep.mubr.f32.mxu0 0.0
    %535 = vmatmul.mubr.f32.gmra.mxu0 %v329
    %v536 = vpop.f32.mrf.mxu0
    %v537 = vadd.f32 0.0, %v536
    %v538 = vpop.f32.mrf.mxu0
    %539 = vmatprep.mubr.f32.mxu0 0.0
    %540 = vmatmul.mubr.f32.gmra.mxu0 %v331
    %v541 = vpop.f32.mrf.mxu0
    %v542 = vadd.f32 0.0, %v541
    %v543 = vpop.f32.mrf.mxu0
    %544 = vmatprep.mubr.f32.mxu0 0.0
    %545 = vmatmul.mubr.f32.gmra.mxu0 %v333
    %v546 = vpop.f32.mrf.mxu0
    %v547 = vadd.f32 0.0, %v546
    %v548 = vpop.f32.mrf.mxu0
    %549 = vmatprep.mubr.f32.mxu0 0.0
    %550 = vmatmul.mubr.f32.gmra.mxu0 %v335
    %v551 = vpop.f32.mrf.mxu0
    %v552 = vadd.f32 0.0, %v551
    %v553 = vpop.f32.mrf.mxu0
    %554 = vmatprep.mubr.f32.mxu0 0.0
    %555 = vmatmul.mubr.f32.gmra.mxu0 %v337
    %v556 = vpop.f32.mrf.mxu0
    %v557 = vadd.f32 0.0, %v556
    %v558 = vpop.f32.mrf.mxu0
    %559 = vmatprep.mubr.f32.mxu0 0.0
    %560 = vmatmul.mubr.f32.gmra.mxu0 %v339
    %v561 = vpop.f32.mrf.mxu0
    %v562 = vadd.f32 0.0, %v561
    %v563 = vpop.f32.mrf.mxu0
    %564 = vmatprep.mubr.f32.mxu0 0.0
    %565 = vmatmul.mubr.f32.gmra.mxu0 %v341
    %v566 = vpop.f32.mrf.mxu0
    %v567 = vadd.f32 0.0, %v566
    %v568 = vpop.f32.mrf.mxu0
    %569 = vmatprep.mubr.f32.mxu0 0.0
    %570 = vmatmul.mubr.f32.gmra.mxu0 %v343
    %v571 = vpop.f32.mrf.mxu0
    %v572 = vadd.f32 0.0, %v571
    %v573 = vpop.f32.mrf.mxu0
    %574 = vmatprep.mubr.f32.mxu0 0.0
    %575 = vmatmul.mubr.f32.gmra.mxu0 %v345
    %v576 = vpop.f32.mrf.mxu0
    %v577 = vadd.f32 0.0, %v576
    %v578 = vpop.f32.mrf.mxu0
    %579 = vmatprep.mubr.f32.mxu0 0.0
    %580 = vmatmul.mubr.f32.gmra.mxu0 %v347
    %v581 = vpop.f32.mrf.mxu0
    %v582 = vadd.f32 0.0, %v581
    %v583 = vpop.f32.mrf.mxu0
    %584 = vmatprep.mubr.f32.mxu0 0.0
    %585 = vmatmul.mubr.f32.gmra.mxu0 %v349
    %v586 = vpop.f32.mrf.mxu0
    %v587 = vadd.f32 0.0, %v586
    %v588 = vpop.f32.mrf.mxu0
    %589 = vmatprep.mubr.f32.mxu0 0.0
    %590 = vmatmul.mubr.f32.gmra.mxu0 %v351
    %v591 = vpop.f32.mrf.mxu0
    %v592 = vadd.f32 0.0, %v591
    %v593 = vpop.f32.mrf.mxu0
    %594 = vmatprep.mubr.f32.mxu0 0.0
    %595 = vmatmul.mubr.f32.gmra.mxu0 %v353
    %v596 = vpop.f32.mrf.mxu0
    %v597 = vadd.f32 0.0, %v596
    %v598 = vpop.f32.mrf.mxu0
    %599 = vmatprep.mubr.f32.mxu0 0.0
    %600 = vmatmul.mubr.f32.gmra.mxu0 %v355
    %v601 = vpop.f32.mrf.mxu0
    %v602 = vadd.f32 0.0, %v601
    %v603 = vpop.f32.mrf.mxu0
    %604 = vmatprep.mubr.f32.mxu0 0.0
    %605 = vmatmul.mubr.f32.gmra.mxu0 %v357
    %v606 = vpop.f32.mrf.mxu0
    %v607 = vadd.f32 0.0, %v606
    %v608 = vpop.f32.mrf.mxu0
    %609 = vmatprep.mubr.f32.mxu0 0.0
    %610 = vmatmul.mubr.f32.gmra.mxu0 %v359
    %v611 = vpop.f32.mrf.mxu0
    %v612 = vadd.f32 0.0, %v611
    %v613 = vpop.f32.mrf.mxu0
    %614 = vmatprep.mubr.f32.mxu0 0.0
    %615 = vmatmul.mubr.f32.gmra.mxu0 %v361
    %v616 = vpop.f32.mrf.mxu0
    %v617 = vadd.f32 0.0, %v616
    %v618 = vpop.f32.mrf.mxu0
    %619 = vmatprep.mubr.f32.mxu0 0.0
    %620 = vmatmul.mubr.f32.gmra.mxu0 %v363
    %v621 = vpop.f32.mrf.mxu0
    %v622 = vadd.f32 0.0, %v621
    %v623 = vpop.f32.mrf.mxu0
    %624 = vmatprep.mubr.f32.mxu0 0.0
    %625 = vmatmul.mubr.f32.gmra.mxu0 %v365
    %v626 = vpop.f32.mrf.mxu0
    %v627 = vadd.f32 0.0, %v626
    %v628 = vpop.f32.mrf.mxu0
    %629 = vmatprep.mubr.f32.mxu0 0.0
    %630 = vmatmul.mubr.f32.gmra.mxu0 %v367
    %v631 = vpop.f32.mrf.mxu0
    %v632 = vadd.f32 0.0, %v631
    %v633 = vpop.f32.mrf.mxu0
    %634 = vmatprep.mubr.f32.mxu0 0.0
    %635 = vmatmul.mubr.f32.gmra.mxu0 %v369
    %v636 = vpop.f32.mrf.mxu0
    %v637 = vadd.f32 0.0, %v636
    %v638 = vpop.f32.mrf.mxu0
    %639 = vdwg.mxu0
    %v640 = vsel %vm290, %v38, 0
    %v642 = vsel %vm290, %v39, 0
    %v644 = vsel %vm290, %v40, 0
    %v646 = vsel %vm290, %v41, 0
    %v648 = vsel %vm290, %v42, 0
    %v650 = vsel %vm290, %v43, 0
    %v652 = vsel %vm290, %v44, 0
    %v654 = vsel %vm290, %v45, 0
    %v656 = vsel %vm290, %v46, 0
    %v658 = vsel %vm290, %v47, 0
    %v660 = vsel %vm290, %v70, 0
    %v662 = vsel %vm290, %v71, 0
    %v664 = vsel %vm290, %v72, 0
    %v666 = vsel %vm290, %v73, 0
    %v668 = vsel %vm290, %v74, 0
    %v670 = vsel %vm290, %v75, 0
    %v672 = vsel %vm290, %v76, 0
    %v674 = vsel %vm290, %v77, 0
    %v676 = vsel %vm290, %v78, 0
    %v678 = vsel %vm290, %v79, 0
    %v680 = vsel %vm290, %v102, 0
    %v682 = vsel %vm290, %v103, 0
    %v684 = vsel %vm290, %v104, 0
    %v686 = vsel %vm290, %v105, 0
    %v688 = vsel %vm290, %v106, 0
    %v690 = vsel %vm290, %v107, 0
    %v692 = vsel %vm290, %v108, 0
    %v694 = vsel %vm290, %v109, 0
    %v696 = vsel %vm290, %v110, 0
    %v698 = vsel %vm290, %v111, 0
    %v700 = vsel %vm290, %v134, 0
    %v702 = vsel %vm290, %v135, 0
    %v704 = vsel %vm290, %v136, 0
    %v706 = vsel %vm290, %v137, 0
    %v708 = vsel %vm290, %v138, 0
    %v710 = vsel %vm290, %v139, 0
    %v712 = vsel %vm290, %v140, 0
    %v714 = vsel %vm290, %v141, 0
    %v716 = vsel %vm290, %v142, 0
    %v718 = vsel %vm290, %v143, 0
    %v721 = vsel %vm371, %v150, 0
    %723 = vmatprep.subr.mxu0 0.0
    %724 = vmatpush1.msra.mxu0 0.0
    %725 = vmatprep.subr.mxu0 0.0
    %726 = vmatpush1.msra.mxu0 0.0
    %727 = vmatprep.subr.mxu0 0.0
    %728 = vmatpush1.msra.mxu0 0.0
    %729 = vmatprep.subr.mxu0 0.0
    %730 = vmatpush1.msra.mxu0 0.0
    %731 = vmatprep.subr.mxu0 0.0
    %732 = vmatpush1.msra.mxu0 0.0
    %733 = vmatprep.subr.mxu0 0.0
    %734 = vmatpush1.msra.mxu0 0.0
    %735 = vmatprep.subr.mxu0 0.0
    %736 = vmatpush1.msra.mxu0 0.0
    %737 = vmatprep.subr.mxu0 0.0
    %738 = vmatpush1.msra.mxu0 0.0
    %739 = vmatprep.subr.mxu0 0.0
    %740 = vmatpush1.msra.mxu0 0.0
    %741 = vmatprep.subr.mxu0 0.0
    %742 = vmatpush1.msra.mxu0 0.0
    %743 = vmatprep.subr.mxu0 0.0
    %744 = vmatpush1.msra.mxu0 0.0
    %745 = vmatprep.subr.mxu0 0.0
    %746 = vmatpush1.msra.mxu0 0.0
    %747 = vmatprep.subr.mxu0 0.0
    %748 = vmatpush1.msra.mxu0 0.0
    %749 = vmatprep.subr.mxu0 0.0
    %750 = vmatpush1.msra.mxu0 0.0
    %751 = vmatprep.subr.mxu0 0.0
    %752 = vmatpush1.msra.mxu0 0.0
    %753 = vmatprep.subr.mxu0 0.0
    %754 = vmatpush1.msra.mxu0 %v721
    %755 = vmatprep.subr.mxu0 0.0
    %756 = vmatpush2.msra.mxu0 0.0
    %757 = vmatprep.subr.mxu0 0.0
    %758 = vmatpush2.msra.mxu0 0.0
    %759 = vmatprep.subr.mxu0 0.0
    %760 = vmatpush2.msra.mxu0 0.0
    %761 = vmatprep.subr.mxu0 0.0
    %762 = vmatpush2.msra.mxu0 0.0
    %763 = vmatprep.subr.mxu0 0.0
    %764 = vmatpush2.msra.mxu0 0.0
    %765 = vmatprep.subr.mxu0 0.0
    %766 = vmatpush2.msra.mxu0 0.0
    %767 = vmatprep.subr.mxu0 0.0
    %768 = vmatpush2.msra.mxu0 0.0
    %769 = vmatprep.subr.mxu0 0.0
    %770 = vmatpush2.msra.mxu0 0.0
    %771 = vmatprep.subr.mxu0 0.0
    %772 = vmatpush2.msra.mxu0 0.0
    %773 = vmatprep.subr.mxu0 0.0
    %774 = vmatpush2.msra.mxu0 0.0
    %775 = vmatprep.subr.mxu0 0.0
    %776 = vmatpush2.msra.mxu0 0.0
    %777 = vmatprep.subr.mxu0 0.0
    %778 = vmatpush2.msra.mxu0 0.0
    %779 = vmatprep.subr.mxu0 0.0
    %780 = vmatpush2.msra.mxu0 0.0
    %781 = vmatprep.subr.mxu0 0.0
    %782 = vmatpush2.msra.mxu0 0.0
    %783 = vmatprep.subr.mxu0 0.0
    %784 = vmatpush2.msra.mxu0 0.0
    %785 = vmatprep.subr.mxu0 0.0
    %786 = vmatpush2.msra.mxu0 0.0
    %787 = vmatprep.mubr.f32.mxu0 0.0
    %788 = vmatmul.mubr.f32.gmra.mxu0 %v640
    %v789 = vpop.f32.mrf.mxu0
    %v790 = vadd.f32 %v442, %v789
    %v791 = vpop.f32.mrf.mxu0
    %792 = vmatprep.mubr.f32.mxu0 0.0
    %793 = vmatmul.mubr.f32.gmra.mxu0 %v642
    %v794 = vpop.f32.mrf.mxu0
    %v795 = vadd.f32 %v447, %v794
    %v796 = vpop.f32.mrf.mxu0
    %797 = vmatprep.mubr.f32.mxu0 0.0
    %798 = vmatmul.mubr.f32.gmra.mxu0 %v644
    %v799 = vpop.f32.mrf.mxu0
    %v800 = vadd.f32 %v452, %v799
    %v801 = vpop.f32.mrf.mxu0
    %802 = vmatprep.mubr.f32.mxu0 0.0
    %803 = vmatmul.mubr.f32.gmra.mxu0 %v646
    %v804 = vpop.f32.mrf.mxu0
    %v805 = vadd.f32 %v457, %v804
    %v806 = vpop.f32.mrf.mxu0
    %807 = vmatprep.mubr.f32.mxu0 0.0
    %808 = vmatmul.mubr.f32.gmra.mxu0 %v648
    %v809 = vpop.f32.mrf.mxu0
    %v810 = vadd.f32 %v462, %v809
    %v811 = vpop.f32.mrf.mxu0
    %812 = vmatprep.mubr.f32.mxu0 0.0
    %813 = vmatmul.mubr.f32.gmra.mxu0 %v650
    %v814 = vpop.f32.mrf.mxu0
    %v815 = vadd.f32 %v467, %v814
    %v816 = vpop.f32.mrf.mxu0
    %817 = vmatprep.mubr.f32.mxu0 0.0
    %818 = vmatmul.mubr.f32.gmra.mxu0 %v652
    %v819 = vpop.f32.mrf.mxu0
    %v820 = vadd.f32 %v472, %v819
    %v821 = vpop.f32.mrf.mxu0
    %822 = vmatprep.mubr.f32.mxu0 0.0
    %823 = vmatmul.mubr.f32.gmra.mxu0 %v654
    %v824 = vpop.f32.mrf.mxu0
    %v825 = vadd.f32 %v477, %v824
    %v826 = vpop.f32.mrf.mxu0
    %827 = vmatprep.mubr.f32.mxu0 0.0
    %828 = vmatmul.mubr.f32.gmra.mxu0 %v656
    %v829 = vpop.f32.mrf.mxu0
    %v830 = vadd.f32 %v482, %v829
    %v831 = vpop.f32.mrf.mxu0
    %832 = vmatprep.mubr.f32.mxu0 0.0
    %833 = vmatmul.mubr.f32.gmra.mxu0 %v658
    %v834 = vpop.f32.mrf.mxu0
    %v835 = vadd.f32 %v487, %v834
    %v836 = vpop.f32.mrf.mxu0
    %837 = vmatprep.mubr.f32.mxu0 0.0
    %838 = vmatmul.mubr.f32.gmra.mxu0 %v660
    %v839 = vpop.f32.mrf.mxu0
    %v840 = vadd.f32 %v492, %v839
    %v841 = vpop.f32.mrf.mxu0
    %842 = vmatprep.mubr.f32.mxu0 0.0
    %843 = vmatmul.mubr.f32.gmra.mxu0 %v662
    %v844 = vpop.f32.mrf.mxu0
    %v845 = vadd.f32 %v497, %v844
    %v846 = vpop.f32.mrf.mxu0
    %847 = vmatprep.mubr.f32.mxu0 0.0
    %848 = vmatmul.mubr.f32.gmra.mxu0 %v664
    %v849 = vpop.f32.mrf.mxu0
    %v850 = vadd.f32 %v502, %v849
    %v851 = vpop.f32.mrf.mxu0
    %852 = vmatprep.mubr.f32.mxu0 0.0
    %853 = vmatmul.mubr.f32.gmra.mxu0 %v666
    %v854 = vpop.f32.mrf.mxu0
    %v855 = vadd.f32 %v507, %v854
    %v856 = vpop.f32.mrf.mxu0
    %857 = vmatprep.mubr.f32.mxu0 0.0
    %858 = vmatmul.mubr.f32.gmra.mxu0 %v668
    %v859 = vpop.f32.mrf.mxu0
    %v860 = vadd.f32 %v512, %v859
    %v861 = vpop.f32.mrf.mxu0
    %862 = vmatprep.mubr.f32.mxu0 0.0
    %863 = vmatmul.mubr.f32.gmra.mxu0 %v670
    %v864 = vpop.f32.mrf.mxu0
    %v865 = vadd.f32 %v517, %v864
    %v866 = vpop.f32.mrf.mxu0
    %867 = vmatprep.mubr.f32.mxu0 0.0
    %868 = vmatmul.mubr.f32.gmra.mxu0 %v672
    %v869 = vpop.f32.mrf.mxu0
    %v870 = vadd.f32 %v522, %v869
    %v871 = vpop.f32.mrf.mxu0
    %872 = vmatprep.mubr.f32.mxu0 0.0
    %873 = vmatmul.mubr.f32.gmra.mxu0 %v674
    %v874 = vpop.f32.mrf.mxu0
    %v875 = vadd.f32 %v527, %v874
    %v876 = vpop.f32.mrf.mxu0
    %877 = vmatprep.mubr.f32.mxu0 0.0
    %878 = vmatmul.mubr.f32.gmra.mxu0 %v676
    %v879 = vpop.f32.mrf.mxu0
    %v880 = vadd.f32 %v532, %v879
    %v881 = vpop.f32.mrf.mxu0
    %882 = vmatprep.mubr.f32.mxu0 0.0
    %883 = vmatmul.mubr.f32.gmra.mxu0 %v678
    %v884 = vpop.f32.mrf.mxu0
    %v885 = vadd.f32 %v537, %v884
    %v886 = vpop.f32.mrf.mxu0
    %887 = vmatprep.mubr.f32.mxu0 0.0
    %888 = vmatmul.mubr.f32.gmra.mxu0 %v680
    %v889 = vpop.f32.mrf.mxu0
    %v890 = vadd.f32 %v542, %v889
    %v891 = vpop.f32.mrf.mxu0
    %892 = vmatprep.mubr.f32.mxu0 0.0
    %893 = vmatmul.mubr.f32.gmra.mxu0 %v682
    %v894 = vpop.f32.mrf.mxu0
    %v895 = vadd.f32 %v547, %v894
    %v896 = vpop.f32.mrf.mxu0
    %897 = vmatprep.mubr.f32.mxu0 0.0
    %898 = vmatmul.mubr.f32.gmra.mxu0 %v684
    %v899 = vpop.f32.mrf.mxu0
    %v900 = vadd.f32 %v552, %v899
    %v901 = vpop.f32.mrf.mxu0
    %902 = vmatprep.mubr.f32.mxu0 0.0
    %903 = vmatmul.mubr.f32.gmra.mxu0 %v686
    %v904 = vpop.f32.mrf.mxu0
    %v905 = vadd.f32 %v557, %v904
    %v906 = vpop.f32.mrf.mxu0
    %907 = vmatprep.mubr.f32.mxu0 0.0
    %908 = vmatmul.mubr.f32.gmra.mxu0 %v688
    %v909 = vpop.f32.mrf.mxu0
    %v910 = vadd.f32 %v562, %v909
    %v911 = vpop.f32.mrf.mxu0
    %912 = vmatprep.mubr.f32.mxu0 0.0
    %913 = vmatmul.mubr.f32.gmra.mxu0 %v690
    %v914 = vpop.f32.mrf.mxu0
    %v915 = vadd.f32 %v567, %v914
    %v916 = vpop.f32.mrf.mxu0
    %917 = vmatprep.mubr.f32.mxu0 0.0
    %918 = vmatmul.mubr.f32.gmra.mxu0 %v692
    %v919 = vpop.f32.mrf.mxu0
    %v920 = vadd.f32 %v572, %v919
    %v921 = vpop.f32.mrf.mxu0
    %922 = vmatprep.mubr.f32.mxu0 0.0
    %923 = vmatmul.mubr.f32.gmra.mxu0 %v694
    %v924 = vpop.f32.mrf.mxu0
    %v925 = vadd.f32 %v577, %v924
    %v926 = vpop.f32.mrf.mxu0
    %927 = vmatprep.mubr.f32.mxu0 0.0
    %928 = vmatmul.mubr.f32.gmra.mxu0 %v696
    %v929 = vpop.f32.mrf.mxu0
    %v930 = vadd.f32 %v582, %v929
    %v931 = vpop.f32.mrf.mxu0
    %932 = vmatprep.mubr.f32.mxu0 0.0
    %933 = vmatmul.mubr.f32.gmra.mxu0 %v698
    %v934 = vpop.f32.mrf.mxu0
    %v935 = vadd.f32 %v587, %v934
    %v936 = vpop.f32.mrf.mxu0
    %937 = vmatprep.mubr.f32.mxu0 0.0
    %938 = vmatmul.mubr.f32.gmra.mxu0 %v700
    %v939 = vpop.f32.mrf.mxu0
    %v940 = vadd.f32 %v592, %v939
    %v941 = vpop.f32.mrf.mxu0
    %942 = vmatprep.mubr.f32.mxu0 0.0
    %943 = vmatmul.mubr.f32.gmra.mxu0 %v702
    %v944 = vpop.f32.mrf.mxu0
    %v945 = vadd.f32 %v597, %v944
    %v946 = vpop.f32.mrf.mxu0
    %947 = vmatprep.mubr.f32.mxu0 0.0
    %948 = vmatmul.mubr.f32.gmra.mxu0 %v704
    %v949 = vpop.f32.mrf.mxu0
    %v950 = vadd.f32 %v602, %v949
    %v951 = vpop.f32.mrf.mxu0
    %952 = vmatprep.mubr.f32.mxu0 0.0
    %953 = vmatmul.mubr.f32.gmra.mxu0 %v706
    %v954 = vpop.f32.mrf.mxu0
    %v955 = vadd.f32 %v607, %v954
    %v956 = vpop.f32.mrf.mxu0
    %957 = vmatprep.mubr.f32.mxu0 0.0
    %958 = vmatmul.mubr.f32.gmra.mxu0 %v708
    %v959 = vpop.f32.mrf.mxu0
    %v960 = vadd.f32 %v612, %v959
    %v961 = vpop.f32.mrf.mxu0
    %962 = vmatprep.mubr.f32.mxu0 0.0
    %963 = vmatmul.mubr.f32.gmra.mxu0 %v710
    %v964 = vpop.f32.mrf.mxu0
    %v965 = vadd.f32 %v617, %v964
    %v966 = vpop.f32.mrf.mxu0
    %967 = vmatprep.mubr.f32.mxu0 0.0
    %968 = vmatmul.mubr.f32.gmra.mxu0 %v712
    %v969 = vpop.f32.mrf.mxu0
    %v970 = vadd.f32 %v622, %v969
    %v971 = vpop.f32.mrf.mxu0
    %972 = vmatprep.mubr.f32.mxu0 0.0
    %973 = vmatmul.mubr.f32.gmra.mxu0 %v714
    %v974 = vpop.f32.mrf.mxu0
    %v975 = vadd.f32 %v627, %v974
    %v976 = vpop.f32.mrf.mxu0
    %977 = vmatprep.mubr.f32.mxu0 0.0
    %978 = vmatmul.mubr.f32.gmra.mxu0 %v716
    %v979 = vpop.f32.mrf.mxu0
    %v980 = vadd.f32 %v632, %v979
    %v981 = vpop.f32.mrf.mxu0
    %982 = vmatprep.mubr.f32.mxu0 0.0
    %983 = vmatmul.mubr.f32.gmra.mxu0 %v718
    %v984 = vpop.f32.mrf.mxu0
    %v985 = vadd.f32 %v637, %v984
    %v986 = vpop.f32.mrf.mxu0
    %987 = vdwg.mxu0
    %vm988 = vcmask 1045504
    %v989 = vrot.slane %v38, 2
    %v990 = vrot.slane %v39, 2
    %v991 = vsel %vm988, %v989, %v990
    %v992 = vrot.slane %v40, 2
    %v993 = vsel %vm988, %v990, %v992
    %v994 = vrot.slane %v41, 2
    %v995 = vsel %vm988, %v992, %v994
    %v996 = vrot.slane %v42, 2
    %v997 = vsel %vm988, %v994, %v996
    %v998 = vrot.slane %v43, 2
    %v999 = vsel %vm988, %v996, %v998
    %v1000 = vrot.slane %v44, 2
    %v1001 = vsel %vm988, %v998, %v1000
    %v1002 = vrot.slane %v45, 2
    %v1003 = vsel %vm988, %v1000, %v1002
    %v1004 = vrot.slane %v46, 2
    %v1005 = vsel %vm988, %v1002, %v1004
    %v1006 = vrot.slane %v47, 2
    %v1007 = vsel %vm988, %v1004, %v1006
    %v1008 = vrot.slane %v48, 2
    %v1009 = vsel %vm988, %v1006, %v1008
    %v1010 = vrot.slane %v70, 2
    %v1011 = vrot.slane %v71, 2
    %v1012 = vsel %vm988, %v1010, %v1011
    %v1013 = vrot.slane %v72, 2
    %v1014 = vsel %vm988, %v1011, %v1013
    %v1015 = vrot.slane %v73, 2
    %v1016 = vsel %vm988, %v1013, %v1015
    %v1017 = vrot.slane %v74, 2
    %v1018 = vsel %vm988, %v1015, %v1017
    %v1019 = vrot.slane %v75, 2
    %v1020 = vsel %vm988, %v1017, %v1019
    %v1021 = vrot.slane %v76, 2
    %v1022 = vsel %vm988, %v1019, %v1021
    %v1023 = vrot.slane %v77, 2
    %v1024 = vsel %vm988, %v1021, %v1023
    %v1025 = vrot.slane %v78, 2
    %v1026 = vsel %vm988, %v1023, %v1025
    %v1027 = vrot.slane %v79, 2
    %v1028 = vsel %vm988, %v1025, %v1027
    %v1029 = vrot.slane %v80, 2
    %v1030 = vsel %vm988, %v1027, %v1029
    %v1031 = vrot.slane %v102, 2
    %v1032 = vrot.slane %v103, 2
    %v1033 = vsel %vm988, %v1031, %v1032
    %v1034 = vrot.slane %v104, 2
    %v1035 = vsel %vm988, %v1032, %v1034
    %v1036 = vrot.slane %v105, 2
    %v1037 = vsel %vm988, %v1034, %v1036
    %v1038 = vrot.slane %v106, 2
    %v1039 = vsel %vm988, %v1036, %v1038
    %v1040 = vrot.slane %v107, 2
    %v1041 = vsel %vm988, %v1038, %v1040
    %v1042 = vrot.slane %v108, 2
    %v1043 = vsel %vm988, %v1040, %v1042
    %v1044 = vrot.slane %v109, 2
    %v1045 = vsel %vm988, %v1042, %v1044
    %v1046 = vrot.slane %v110, 2
    %v1047 = vsel %vm988, %v1044, %v1046
    %v1048 = vrot.slane %v111, 2
    %v1049 = vsel %vm988, %v1046, %v1048
    %v1050 = vrot.slane %v112, 2
    %v1051 = vsel %vm988, %v1048, %v1050
    %v1052 = vrot.slane %v134, 2
    %v1053 = vrot.slane %v135, 2
    %v1054 = vsel %vm988, %v1052, %v1053
    %v1055 = vrot.slane %v136, 2
    %v1056 = vsel %vm988, %v1053, %v1055
    %v1057 = vrot.slane %v137, 2
    %v1058 = vsel %vm988, %v1055, %v1057
    %v1059 = vrot.slane %v138, 2
    %v1060 = vsel %vm988, %v1057, %v1059
    %v1061 = vrot.slane %v139, 2
    %v1062 = vsel %vm988, %v1059, %v1061
    %v1063 = vrot.slane %v140, 2
    %v1064 = vsel %vm988, %v1061, %v1063
    %v1065 = vrot.slane %v141, 2
    %v1066 = vsel %vm988, %v1063, %v1065
    %v1067 = vrot.slane %v142, 2
    %v1068 = vsel %vm988, %v1065, %v1067
    %v1069 = vrot.slane %v143, 2
    %v1070 = vsel %vm988, %v1067, %v1069
    %v1071 = vrot.slane %v144, 2
    %v1072 = vsel %vm988, %v1069, %v1071
    %v1073 = vsel %vm290, %v991, 0
    %v1075 = vsel %vm290, %v993, 0
    %v1077 = vsel %vm290, %v995, 0
    %v1079 = vsel %vm290, %v997, 0
    %v1081 = vsel %vm290, %v999, 0
    %v1083 = vsel %vm290, %v1001, 0
    %v1085 = vsel %vm290, %v1003, 0
    %v1087 = vsel %vm290, %v1005, 0
    %v1089 = vsel %vm290, %v1007, 0
    %v1091 = vsel %vm290, %v1009, 0
    %v1093 = vsel %vm290, %v1012, 0
    %v1095 = vsel %vm290, %v1014, 0
    %v1097 = vsel %vm290, %v1016, 0
    %v1099 = vsel %vm290, %v1018, 0
    %v1101 = vsel %vm290, %v1020, 0
    %v1103 = vsel %vm290, %v1022, 0
    %v1105 = vsel %vm290, %v1024, 0
    %v1107 = vsel %vm290, %v1026, 0
    %v1109 = vsel %vm290, %v1028, 0
    %v1111 = vsel %vm290, %v1030, 0
    %v1113 = vsel %vm290, %v1033, 0
    %v1115 = vsel %vm290, %v1035, 0
    %v1117 = vsel %vm290, %v1037, 0
    %v1119 = vsel %vm290, %v1039, 0
    %v1121 = vsel %vm290, %v1041, 0
    %v1123 = vsel %vm290, %v1043, 0
    %v1125 = vsel %vm290, %v1045, 0
    %v1127 = vsel %vm290, %v1047, 0
    %v1129 = vsel %vm290, %v1049, 0
    %v1131 = vsel %vm290, %v1051, 0
    %v1133 = vsel %vm290, %v1054, 0
    %v1135 = vsel %vm290, %v1056, 0
    %v1137 = vsel %vm290, %v1058, 0
    %v1139 = vsel %vm290, %v1060, 0
    %v1141 = vsel %vm290, %v1062, 0
    %v1143 = vsel %vm290, %v1064, 0
    %v1145 = vsel %vm290, %v1066, 0
    %v1147 = vsel %vm290, %v1068, 0
    %v1149 = vsel %vm290, %v1070, 0
    %v1151 = vsel %vm290, %v1072, 0
    %v1154 = vsel %vm371, %v152, 0
    %1156 = vmatprep.subr.mxu0 0.0
    %1157 = vmatpush1.msra.mxu0 0.0
    %1158 = vmatprep.subr.mxu0 0.0
    %1159 = vmatpush1.msra.mxu0 0.0
    %1160 = vmatprep.subr.mxu0 0.0
    %1161 = vmatpush1.msra.mxu0 0.0
    %1162 = vmatprep.subr.mxu0 0.0
    %1163 = vmatpush1.msra.mxu0 0.0
    %1164 = vmatprep.subr.mxu0 0.0
    %1165 = vmatpush1.msra.mxu0 0.0
    %1166 = vmatprep.subr.mxu0 0.0
    %1167 = vmatpush1.msra.mxu0 0.0
    %1168 = vmatprep.subr.mxu0 0.0
    %1169 = vmatpush1.msra.mxu0 0.0
    %1170 = vmatprep.subr.mxu0 0.0
    %1171 = vmatpush1.msra.mxu0 0.0
    %1172 = vmatprep.subr.mxu0 0.0
    %1173 = vmatpush1.msra.mxu0 0.0
    %1174 = vmatprep.subr.mxu0 0.0
    %1175 = vmatpush1.msra.mxu0 0.0
    %1176 = vmatprep.subr.mxu0 0.0
    %1177 = vmatpush1.msra.mxu0 0.0
    %1178 = vmatprep.subr.mxu0 0.0
    %1179 = vmatpush1.msra.mxu0 0.0
    %1180 = vmatprep.subr.mxu0 0.0
    %1181 = vmatpush1.msra.mxu0 0.0
    %1182 = vmatprep.subr.mxu0 0.0
    %1183 = vmatpush1.msra.mxu0 0.0
    %1184 = vmatprep.subr.mxu0 0.0
    %1185 = vmatpush1.msra.mxu0 0.0
    %1186 = vmatprep.subr.mxu0 0.0
    %1187 = vmatpush1.msra.mxu0 %v1154
    %1188 = vmatprep.subr.mxu0 0.0
    %1189 = vmatpush2.msra.mxu0 0.0
    %1190 = vmatprep.subr.mxu0 0.0
    %1191 = vmatpush2.msra.mxu0 0.0
    %1192 = vmatprep.subr.mxu0 0.0
    %1193 = vmatpush2.msra.mxu0 0.0
    %1194 = vmatprep.subr.mxu0 0.0
    %1195 = vmatpush2.msra.mxu0 0.0
    %1196 = vmatprep.subr.mxu0 0.0
    %1197 = vmatpush2.msra.mxu0 0.0
    %1198 = vmatprep.subr.mxu0 0.0
    %1199 = vmatpush2.msra.mxu0 0.0
    %1200 = vmatprep.subr.mxu0 0.0
    %1201 = vmatpush2.msra.mxu0 0.0
    %1202 = vmatprep.subr.mxu0 0.0
    %1203 = vmatpush2.msra.mxu0 0.0
    %1204 = vmatprep.subr.mxu0 0.0
    %1205 = vmatpush2.msra.mxu0 0.0
    %1206 = vmatprep.subr.mxu0 0.0
    %1207 = vmatpush2.msra.mxu0 0.0
    %1208 = vmatprep.subr.mxu0 0.0
    %1209 = vmatpush2.msra.mxu0 0.0
    %1210 = vmatprep.subr.mxu0 0.0
    %1211 = vmatpush2.msra.mxu0 0.0
    %1212 = vmatprep.subr.mxu0 0.0
    %1213 = vmatpush2.msra.mxu0 0.0
    %1214 = vmatprep.subr.mxu0 0.0
    %1215 = vmatpush2.msra.mxu0 0.0
    %1216 = vmatprep.subr.mxu0 0.0
    %1217 = vmatpush2.msra.mxu0 0.0
    %1218 = vmatprep.subr.mxu0 0.0
    %1219 = vmatpush2.msra.mxu0 0.0
    %1220 = vmatprep.mubr.f32.mxu0 0.0
    %1221 = vmatmul.mubr.f32.gmra.mxu0 %v1073
    %v1222 = vpop.f32.mrf.mxu0
    %v1223 = vadd.f32 0.0, %v1222
    %v1224 = vpop.f32.mrf.mxu0
    %1225 = vmatprep.mubr.f32.mxu0 0.0
    %1226 = vmatmul.mubr.f32.gmra.mxu0 %v1075
    %v1227 = vpop.f32.mrf.mxu0
    %v1228 = vadd.f32 0.0, %v1227
    %v1229 = vpop.f32.mrf.mxu0
    %1230 = vmatprep.mubr.f32.mxu0 0.0
    %1231 = vmatmul.mubr.f32.gmra.mxu0 %v1077
    %v1232 = vpop.f32.mrf.mxu0
    %v1233 = vadd.f32 0.0, %v1232
    %v1234 = vpop.f32.mrf.mxu0
    %1235 = vmatprep.mubr.f32.mxu0 0.0
    %1236 = vmatmul.mubr.f32.gmra.mxu0 %v1079
    %v1237 = vpop.f32.mrf.mxu0
    %v1238 = vadd.f32 0.0, %v1237
    %v1239 = vpop.f32.mrf.mxu0
    %1240 = vmatprep.mubr.f32.mxu0 0.0
    %1241 = vmatmul.mubr.f32.gmra.mxu0 %v1081
    %v1242 = vpop.f32.mrf.mxu0
    %v1243 = vadd.f32 0.0, %v1242
    %v1244 = vpop.f32.mrf.mxu0
    %1245 = vmatprep.mubr.f32.mxu0 0.0
    %1246 = vmatmul.mubr.f32.gmra.mxu0 %v1083
    %v1247 = vpop.f32.mrf.mxu0
    %v1248 = vadd.f32 0.0, %v1247
    %v1249 = vpop.f32.mrf.mxu0
    %1250 = vmatprep.mubr.f32.mxu0 0.0
    %1251 = vmatmul.mubr.f32.gmra.mxu0 %v1085
    %v1252 = vpop.f32.mrf.mxu0
    %v1253 = vadd.f32 0.0, %v1252
    %v1254 = vpop.f32.mrf.mxu0
    %1255 = vmatprep.mubr.f32.mxu0 0.0
    %1256 = vmatmul.mubr.f32.gmra.mxu0 %v1087
    %v1257 = vpop.f32.mrf.mxu0
    %v1258 = vadd.f32 0.0, %v1257
    %v1259 = vpop.f32.mrf.mxu0
    %1260 = vmatprep.mubr.f32.mxu0 0.0
    %1261 = vmatmul.mubr.f32.gmra.mxu0 %v1089
    %v1262 = vpop.f32.mrf.mxu0
    %v1263 = vadd.f32 0.0, %v1262
    %v1264 = vpop.f32.mrf.mxu0
    %1265 = vmatprep.mubr.f32.mxu0 0.0
    %1266 = vmatmul.mubr.f32.gmra.mxu0 %v1091
    %v1267 = vpop.f32.mrf.mxu0
    %v1268 = vadd.f32 0.0, %v1267
    %v1269 = vpop.f32.mrf.mxu0
    %1270 = vmatprep.mubr.f32.mxu0 0.0
    %1271 = vmatmul.mubr.f32.gmra.mxu0 %v1093
    %v1272 = vpop.f32.mrf.mxu0
    %v1273 = vadd.f32 0.0, %v1272
    %v1274 = vpop.f32.mrf.mxu0
    %1275 = vmatprep.mubr.f32.mxu0 0.0
    %1276 = vmatmul.mubr.f32.gmra.mxu0 %v1095
    %v1277 = vpop.f32.mrf.mxu0
    %v1278 = vadd.f32 0.0, %v1277
    %v1279 = vpop.f32.mrf.mxu0
    %1280 = vmatprep.mubr.f32.mxu0 0.0
    %1281 = vmatmul.mubr.f32.gmra.mxu0 %v1097
    %v1282 = vpop.f32.mrf.mxu0
    %v1283 = vadd.f32 0.0, %v1282
    %v1284 = vpop.f32.mrf.mxu0
    %1285 = vmatprep.mubr.f32.mxu0 0.0
    %1286 = vmatmul.mubr.f32.gmra.mxu0 %v1099
    %v1287 = vpop.f32.mrf.mxu0
    %v1288 = vadd.f32 0.0, %v1287
    %v1289 = vpop.f32.mrf.mxu0
    %1290 = vmatprep.mubr.f32.mxu0 0.0
    %1291 = vmatmul.mubr.f32.gmra.mxu0 %v1101
    %v1292 = vpop.f32.mrf.mxu0
    %v1293 = vadd.f32 0.0, %v1292
    %v1294 = vpop.f32.mrf.mxu0
    %1295 = vmatprep.mubr.f32.mxu0 0.0
    %1296 = vmatmul.mubr.f32.gmra.mxu0 %v1103
    %v1297 = vpop.f32.mrf.mxu0
    %v1298 = vadd.f32 0.0, %v1297
    %v1299 = vpop.f32.mrf.mxu0
    %1300 = vmatprep.mubr.f32.mxu0 0.0
    %1301 = vmatmul.mubr.f32.gmra.mxu0 %v1105
    %v1302 = vpop.f32.mrf.mxu0
    %v1303 = vadd.f32 0.0, %v1302
    %v1304 = vpop.f32.mrf.mxu0
    %1305 = vmatprep.mubr.f32.mxu0 0.0
    %1306 = vmatmul.mubr.f32.gmra.mxu0 %v1107
    %v1307 = vpop.f32.mrf.mxu0
    %v1308 = vadd.f32 0.0, %v1307
    %v1309 = vpop.f32.mrf.mxu0
    %1310 = vmatprep.mubr.f32.mxu0 0.0
    %1311 = vmatmul.mubr.f32.gmra.mxu0 %v1109
    %v1312 = vpop.f32.mrf.mxu0
    %v1313 = vadd.f32 0.0, %v1312
    %v1314 = vpop.f32.mrf.mxu0
    %1315 = vmatprep.mubr.f32.mxu0 0.0
    %1316 = vmatmul.mubr.f32.gmra.mxu0 %v1111
    %v1317 = vpop.f32.mrf.mxu0
    %v1318 = vadd.f32 0.0, %v1317
    %v1319 = vpop.f32.mrf.mxu0
    %1320 = vmatprep.mubr.f32.mxu0 0.0
    %1321 = vmatmul.mubr.f32.gmra.mxu0 %v1113
    %v1322 = vpop.f32.mrf.mxu0
    %v1323 = vadd.f32 0.0, %v1322
    %v1324 = vpop.f32.mrf.mxu0
    %1325 = vmatprep.mubr.f32.mxu0 0.0
    %1326 = vmatmul.mubr.f32.gmra.mxu0 %v1115
    %v1327 = vpop.f32.mrf.mxu0
    %v1328 = vadd.f32 0.0, %v1327
    %v1329 = vpop.f32.mrf.mxu0
    %1330 = vmatprep.mubr.f32.mxu0 0.0
    %1331 = vmatmul.mubr.f32.gmra.mxu0 %v1117
    %v1332 = vpop.f32.mrf.mxu0
    %v1333 = vadd.f32 0.0, %v1332
    %v1334 = vpop.f32.mrf.mxu0
    %1335 = vmatprep.mubr.f32.mxu0 0.0
    %1336 = vmatmul.mubr.f32.gmra.mxu0 %v1119
    %v1337 = vpop.f32.mrf.mxu0
    %v1338 = vadd.f32 0.0, %v1337
    %v1339 = vpop.f32.mrf.mxu0
    %1340 = vmatprep.mubr.f32.mxu0 0.0
    %1341 = vmatmul.mubr.f32.gmra.mxu0 %v1121
    %v1342 = vpop.f32.mrf.mxu0
    %v1343 = vadd.f32 0.0, %v1342
    %v1344 = vpop.f32.mrf.mxu0
    %1345 = vmatprep.mubr.f32.mxu0 0.0
    %1346 = vmatmul.mubr.f32.gmra.mxu0 %v1123
    %v1347 = vpop.f32.mrf.mxu0
    %v1348 = vadd.f32 0.0, %v1347
    %v1349 = vpop.f32.mrf.mxu0
    %1350 = vmatprep.mubr.f32.mxu0 0.0
    %1351 = vmatmul.mubr.f32.gmra.mxu0 %v1125
    %v1352 = vpop.f32.mrf.mxu0
    %v1353 = vadd.f32 0.0, %v1352
    %v1354 = vpop.f32.mrf.mxu0
    %1355 = vmatprep.mubr.f32.mxu0 0.0
    %1356 = vmatmul.mubr.f32.gmra.mxu0 %v1127
    %v1357 = vpop.f32.mrf.mxu0
    %v1358 = vadd.f32 0.0, %v1357
    %v1359 = vpop.f32.mrf.mxu0
    %1360 = vmatprep.mubr.f32.mxu0 0.0
    %1361 = vmatmul.mubr.f32.gmra.mxu0 %v1129
    %v1362 = vpop.f32.mrf.mxu0
    %v1363 = vadd.f32 0.0, %v1362
    %v1364 = vpop.f32.mrf.mxu0
    %1365 = vmatprep.mubr.f32.mxu0 0.0
    %1366 = vmatmul.mubr.f32.gmra.mxu0 %v1131
    %v1367 = vpop.f32.mrf.mxu0
    %v1368 = vadd.f32 0.0, %v1367
    %v1369 = vpop.f32.mrf.mxu0
    %1370 = vmatprep.mubr.f32.mxu0 0.0
    %1371 = vmatmul.mubr.f32.gmra.mxu0 %v1133
    %v1372 = vpop.f32.mrf.mxu0
    %v1373 = vadd.f32 0.0, %v1372
    %v1374 = vpop.f32.mrf.mxu0
    %1375 = vmatprep.mubr.f32.mxu0 0.0
    %1376 = vmatmul.mubr.f32.gmra.mxu0 %v1135
    %v1377 = vpop.f32.mrf.mxu0
    %v1378 = vadd.f32 0.0, %v1377
    %v1379 = vpop.f32.mrf.mxu0
    %1380 = vmatprep.mubr.f32.mxu0 0.0
    %1381 = vmatmul.mubr.f32.gmra.mxu0 %v1137
    %v1382 = vpop.f32.mrf.mxu0
    %v1383 = vadd.f32 0.0, %v1382
    %v1384 = vpop.f32.mrf.mxu0
    %1385 = vmatprep.mubr.f32.mxu0 0.0
    %1386 = vmatmul.mubr.f32.gmra.mxu0 %v1139
    %v1387 = vpop.f32.mrf.mxu0
    %v1388 = vadd.f32 0.0, %v1387
    %v1389 = vpop.f32.mrf.mxu0
    %1390 = vmatprep.mubr.f32.mxu0 0.0
    %1391 = vmatmul.mubr.f32.gmra.mxu0 %v1141
    %v1392 = vpop.f32.mrf.mxu0
    %v1393 = vadd.f32 0.0, %v1392
    %v1394 = vpop.f32.mrf.mxu0
    %1395 = vmatprep.mubr.f32.mxu0 0.0
    %1396 = vmatmul.mubr.f32.gmra.mxu0 %v1143
    %v1397 = vpop.f32.mrf.mxu0
    %v1398 = vadd.f32 0.0, %v1397
    %v1399 = vpop.f32.mrf.mxu0
    %1400 = vmatprep.mubr.f32.mxu0 0.0
    %1401 = vmatmul.mubr.f32.gmra.mxu0 %v1145
    %v1402 = vpop.f32.mrf.mxu0
    %v1403 = vadd.f32 0.0, %v1402
    %v1404 = vpop.f32.mrf.mxu0
    %1405 = vmatprep.mubr.f32.mxu0 0.0
    %1406 = vmatmul.mubr.f32.gmra.mxu0 %v1147
    %v1407 = vpop.f32.mrf.mxu0
    %v1408 = vadd.f32 0.0, %v1407
    %v1409 = vpop.f32.mrf.mxu0
    %1410 = vmatprep.mubr.f32.mxu0 0.0
    %1411 = vmatmul.mubr.f32.gmra.mxu0 %v1149
    %v1412 = vpop.f32.mrf.mxu0
    %v1413 = vadd.f32 0.0, %v1412
    %v1414 = vpop.f32.mrf.mxu0
    %1415 = vmatprep.mubr.f32.mxu0 0.0
    %1416 = vmatmul.mubr.f32.gmra.mxu0 %v1151
    %v1417 = vpop.f32.mrf.mxu0
    %v1418 = vadd.f32 0.0, %v1417
    %v1419 = vpop.f32.mrf.mxu0
    %1420 = vdwg.mxu0
    %v1421 = vadd.f32 %v790, %v1223
    %v1422 = vadd.f32 %v795, %v1228
    %v1423 = vadd.f32 %v800, %v1233
    %v1424 = vadd.f32 %v805, %v1238
    %v1425 = vadd.f32 %v810, %v1243
    %v1426 = vadd.f32 %v815, %v1248
    %v1427 = vadd.f32 %v820, %v1253
    %v1428 = vadd.f32 %v825, %v1258
    %v1429 = vadd.f32 %v830, %v1263
    %v1430 = vadd.f32 %v835, %v1268
    %v1431 = vadd.f32 %v840, %v1273
    %v1432 = vadd.f32 %v845, %v1278
    %v1433 = vadd.f32 %v850, %v1283
    %v1434 = vadd.f32 %v855, %v1288
    %v1435 = vadd.f32 %v860, %v1293
    %v1436 = vadd.f32 %v865, %v1298
    %v1437 = vadd.f32 %v870, %v1303
    %v1438 = vadd.f32 %v875, %v1308
    %v1439 = vadd.f32 %v880, %v1313
    %v1440 = vadd.f32 %v885, %v1318
    %v1441 = vadd.f32 %v890, %v1323
    %v1442 = vadd.f32 %v895, %v1328
    %v1443 = vadd.f32 %v900, %v1333
    %v1444 = vadd.f32 %v905, %v1338
    %v1445 = vadd.f32 %v910, %v1343
    %v1446 = vadd.f32 %v915, %v1348
    %v1447 = vadd.f32 %v920, %v1353
    %v1448 = vadd.f32 %v925, %v1358
    %v1449 = vadd.f32 %v930, %v1363
    %v1450 = vadd.f32 %v935, %v1368
    %v1451 = vadd.f32 %v940, %v1373
    %v1452 = vadd.f32 %v945, %v1378
    %v1453 = vadd.f32 %v950, %v1383
    %v1454 = vadd.f32 %v955, %v1388
    %v1455 = vadd.f32 %v960, %v1393
    %v1456 = vadd.f32 %v965, %v1398
    %v1457 = vadd.f32 %v970, %v1403
    %v1458 = vadd.f32 %v975, %v1408
    %v1459 = vadd.f32 %v980, %v1413
    %v1460 = vadd.f32 %v985, %v1418
    %vm1461 = vcmask 1044480
    %v1462 = vrot.slane %v38, 3
    %v1463 = vrot.slane %v39, 3
    %v1464 = vsel %vm1461, %v1462, %v1463
    %v1465 = vrot.slane %v40, 3
    %v1466 = vsel %vm1461, %v1463, %v1465
    %v1467 = vrot.slane %v41, 3
    %v1468 = vsel %vm1461, %v1465, %v1467
    %v1469 = vrot.slane %v42, 3
    %v1470 = vsel %vm1461, %v1467, %v1469
    %v1471 = vrot.slane %v43, 3
    %v1472 = vsel %vm1461, %v1469, %v1471
    %v1473 = vrot.slane %v44, 3
    %v1474 = vsel %vm1461, %v1471, %v1473
    %v1475 = vrot.slane %v45, 3
    %v1476 = vsel %vm1461, %v1473, %v1475
    %v1477 = vrot.slane %v46, 3
    %v1478 = vsel %vm1461, %v1475, %v1477
    %v1479 = vrot.slane %v47, 3
    %v1480 = vsel %vm1461, %v1477, %v1479
    %v1481 = vrot.slane %v48, 3
    %v1482 = vsel %vm1461, %v1479, %v1481
    %v1483 = vrot.slane %v70, 3
    %v1484 = vrot.slane %v71, 3
    %v1485 = vsel %vm1461, %v1483, %v1484
    %v1486 = vrot.slane %v72, 3
    %v1487 = vsel %vm1461, %v1484, %v1486
    %v1488 = vrot.slane %v73, 3
    %v1489 = vsel %vm1461, %v1486, %v1488
    %v1490 = vrot.slane %v74, 3
    %v1491 = vsel %vm1461, %v1488, %v1490
    %v1492 = vrot.slane %v75, 3
    %v1493 = vsel %vm1461, %v1490, %v1492
    %v1494 = vrot.slane %v76, 3
    %v1495 = vsel %vm1461, %v1492, %v1494
    %v1496 = vrot.slane %v77, 3
    %v1497 = vsel %vm1461, %v1494, %v1496
    %v1498 = vrot.slane %v78, 3
    %v1499 = vsel %vm1461, %v1496, %v1498
    %v1500 = vrot.slane %v79, 3
    %v1501 = vsel %vm1461, %v1498, %v1500
    %v1502 = vrot.slane %v80, 3
    %v1503 = vsel %vm1461, %v1500, %v1502
    %v1504 = vrot.slane %v102, 3
    %v1505 = vrot.slane %v103, 3
    %v1506 = vsel %vm1461, %v1504, %v1505
    %v1507 = vrot.slane %v104, 3
    %v1508 = vsel %vm1461, %v1505, %v1507
    %v1509 = vrot.slane %v105, 3
    %v1510 = vsel %vm1461, %v1507, %v1509
    %v1511 = vrot.slane %v106, 3
    %v1512 = vsel %vm1461, %v1509, %v1511
    %v1513 = vrot.slane %v107, 3
    %v1514 = vsel %vm1461, %v1511, %v1513
    %v1515 = vrot.slane %v108, 3
    %v1516 = vsel %vm1461, %v1513, %v1515
    %v1517 = vrot.slane %v109, 3
    %v1518 = vsel %vm1461, %v1515, %v1517
    %v1519 = vrot.slane %v110, 3
    %v1520 = vsel %vm1461, %v1517, %v1519
    %v1521 = vrot.slane %v111, 3
    %v1522 = vsel %vm1461, %v1519, %v1521
    %v1523 = vrot.slane %v112, 3
    %v1524 = vsel %vm1461, %v1521, %v1523
    %v1525 = vrot.slane %v134, 3
    %v1526 = vrot.slane %v135, 3
    %v1527 = vsel %vm1461, %v1525, %v1526
    %v1528 = vrot.slane %v136, 3
    %v1529 = vsel %vm1461, %v1526, %v1528
    %v1530 = vrot.slane %v137, 3
    %v1531 = vsel %vm1461, %v1528, %v1530
    %v1532 = vrot.slane %v138, 3
    %v1533 = vsel %vm1461, %v1530, %v1532
    %v1534 = vrot.slane %v139, 3
    %v1535 = vsel %vm1461, %v1532, %v1534
    %v1536 = vrot.slane %v140, 3
    %v1537 = vsel %vm1461, %v1534, %v1536
    %v1538 = vrot.slane %v141, 3
    %v1539 = vsel %vm1461, %v1536, %v1538
    %v1540 = vrot.slane %v142, 3
    %v1541 = vsel %vm1461, %v1538, %v1540
    %v1542 = vrot.slane %v143, 3
    %v1543 = vsel %vm1461, %v1540, %v1542
    %v1544 = vrot.slane %v144, 3
    %v1545 = vsel %vm1461, %v1542, %v1544
    %v1546 = vsel %vm290, %v1464, 0
    %v1548 = vsel %vm290, %v1466, 0
    %v1550 = vsel %vm290, %v1468, 0
    %v1552 = vsel %vm290, %v1470, 0
    %v1554 = vsel %vm290, %v1472, 0
    %v1556 = vsel %vm290, %v1474, 0
    %v1558 = vsel %vm290, %v1476, 0
    %v1560 = vsel %vm290, %v1478, 0
    %v1562 = vsel %vm290, %v1480, 0
    %v1564 = vsel %vm290, %v1482, 0
    %v1566 = vsel %vm290, %v1485, 0
    %v1568 = vsel %vm290, %v1487, 0
    %v1570 = vsel %vm290, %v1489, 0
    %v1572 = vsel %vm290, %v1491, 0
    %v1574 = vsel %vm290, %v1493, 0
    %v1576 = vsel %vm290, %v1495, 0
    %v1578 = vsel %vm290, %v1497, 0
    %v1580 = vsel %vm290, %v1499, 0
    %v1582 = vsel %vm290, %v1501, 0
    %v1584 = vsel %vm290, %v1503, 0
    %v1586 = vsel %vm290, %v1506, 0
    %v1588 = vsel %vm290, %v1508, 0
    %v1590 = vsel %vm290, %v1510, 0
    %v1592 = vsel %vm290, %v1512, 0
    %v1594 = vsel %vm290, %v1514, 0
    %v1596 = vsel %vm290, %v1516, 0
    %v1598 = vsel %vm290, %v1518, 0
    %v1600 = vsel %vm290, %v1520, 0
    %v1602 = vsel %vm290, %v1522, 0
    %v1604 = vsel %vm290, %v1524, 0
    %v1606 = vsel %vm290, %v1527, 0
    %v1608 = vsel %vm290, %v1529, 0
    %v1610 = vsel %vm290, %v1531, 0
    %v1612 = vsel %vm290, %v1533, 0
    %v1614 = vsel %vm290, %v1535, 0
    %v1616 = vsel %vm290, %v1537, 0
    %v1618 = vsel %vm290, %v1539, 0
    %v1620 = vsel %vm290, %v1541, 0
    %v1622 = vsel %vm290, %v1543, 0
    %v1624 = vsel %vm290, %v1545, 0
    %v1627 = vsel %vm371, %v153, 0
    %1629 = vmatprep.subr.mxu0 0.0
    %1630 = vmatpush1.msra.mxu0 0.0
    %1631 = vmatprep.subr.mxu0 0.0
    %1632 = vmatpush1.msra.mxu0 0.0
    %1633 = vmatprep.subr.mxu0 0.0
    %1634 = vmatpush1.msra.mxu0 0.0
    %1635 = vmatprep.subr.mxu0 0.0
    %1636 = vmatpush1.msra.mxu0 0.0
    %1637 = vmatprep.subr.mxu0 0.0
    %1638 = vmatpush1.msra.mxu0 0.0
    %1639 = vmatprep.subr.mxu0 0.0
    %1640 = vmatpush1.msra.mxu0 0.0
    %1641 = vmatprep.subr.mxu0 0.0
    %1642 = vmatpush1.msra.mxu0 0.0
    %1643 = vmatprep.subr.mxu0 0.0
    %1644 = vmatpush1.msra.mxu0 0.0
    %1645 = vmatprep.subr.mxu0 0.0
    %1646 = vmatpush1.msra.mxu0 0.0
    %1647 = vmatprep.subr.mxu0 0.0
    %1648 = vmatpush1.msra.mxu0 0.0
    %1649 = vmatprep.subr.mxu0 0.0
    %1650 = vmatpush1.msra.mxu0 0.0
    %1651 = vmatprep.subr.mxu0 0.0
    %1652 = vmatpush1.msra.mxu0 0.0
    %1653 = vmatprep.subr.mxu0 0.0
    %1654 = vmatpush1.msra.mxu0 0.0
    %1655 = vmatprep.subr.mxu0 0.0
    %1656 = vmatpush1.msra.mxu0 0.0
    %1657 = vmatprep.subr.mxu0 0.0
    %1658 = vmatpush1.msra.mxu0 0.0
    %1659 = vmatprep.subr.mxu0 0.0
    %1660 = vmatpush1.msra.mxu0 %v1627
    %1661 = vmatprep.subr.mxu0 0.0
    %1662 = vmatpush2.msra.mxu0 0.0
    %1663 = vmatprep.subr.mxu0 0.0
    %1664 = vmatpush2.msra.mxu0 0.0
    %1665 = vmatprep.subr.mxu0 0.0
    %1666 = vmatpush2.msra.mxu0 0.0
    %1667 = vmatprep.subr.mxu0 0.0
    %1668 = vmatpush2.msra.mxu0 0.0
    %1669 = vmatprep.subr.mxu0 0.0
    %1670 = vmatpush2.msra.mxu0 0.0
    %1671 = vmatprep.subr.mxu0 0.0
    %1672 = vmatpush2.msra.mxu0 0.0
    %1673 = vmatprep.subr.mxu0 0.0
    %1674 = vmatpush2.msra.mxu0 0.0
    %1675 = vmatprep.subr.mxu0 0.0
    %1676 = vmatpush2.msra.mxu0 0.0
    %1677 = vmatprep.subr.mxu0 0.0
    %1678 = vmatpush2.msra.mxu0 0.0
    %1679 = vmatprep.subr.mxu0 0.0
    %1680 = vmatpush2.msra.mxu0 0.0
    %1681 = vmatprep.subr.mxu0 0.0
    %1682 = vmatpush2.msra.mxu0 0.0
    %1683 = vmatprep.subr.mxu0 0.0
    %1684 = vmatpush2.msra.mxu0 0.0
    %1685 = vmatprep.subr.mxu0 0.0
    %1686 = vmatpush2.msra.mxu0 0.0
    %1687 = vmatprep.subr.mxu0 0.0
    %1688 = vmatpush2.msra.mxu0 0.0
    %1689 = vmatprep.subr.mxu0 0.0
    %1690 = vmatpush2.msra.mxu0 0.0
    %1691 = vmatprep.subr.mxu0 0.0
    %1692 = vmatpush2.msra.mxu0 0.0
    %1693 = vmatprep.mubr.f32.mxu0 0.0
    %1694 = vmatmul.mubr.f32.gmra.mxu0 %v1546
    %v1695 = vpop.f32.mrf.mxu0
    %v1696 = vadd.f32 0.0, %v1695
    %v1697 = vpop.f32.mrf.mxu0
    %1698 = vmatprep.mubr.f32.mxu0 0.0
    %1699 = vmatmul.mubr.f32.gmra.mxu0 %v1548
    %v1700 = vpop.f32.mrf.mxu0
    %v1701 = vadd.f32 0.0, %v1700
    %v1702 = vpop.f32.mrf.mxu0
    %1703 = vmatprep.mubr.f32.mxu0 0.0
    %1704 = vmatmul.mubr.f32.gmra.mxu0 %v1550
    %v1705 = vpop.f32.mrf.mxu0
    %v1706 = vadd.f32 0.0, %v1705
    %v1707 = vpop.f32.mrf.mxu0
    %1708 = vmatprep.mubr.f32.mxu0 0.0
    %1709 = vmatmul.mubr.f32.gmra.mxu0 %v1552
    %v1710 = vpop.f32.mrf.mxu0
    %v1711 = vadd.f32 0.0, %v1710
    %v1712 = vpop.f32.mrf.mxu0
    %1713 = vmatprep.mubr.f32.mxu0 0.0
    %1714 = vmatmul.mubr.f32.gmra.mxu0 %v1554
    %v1715 = vpop.f32.mrf.mxu0
    %v1716 = vadd.f32 0.0, %v1715
    %v1717 = vpop.f32.mrf.mxu0
    %1718 = vmatprep.mubr.f32.mxu0 0.0
    %1719 = vmatmul.mubr.f32.gmra.mxu0 %v1556
    %v1720 = vpop.f32.mrf.mxu0
    %v1721 = vadd.f32 0.0, %v1720
    %v1722 = vpop.f32.mrf.mxu0
    %1723 = vmatprep.mubr.f32.mxu0 0.0
    %1724 = vmatmul.mubr.f32.gmra.mxu0 %v1558
    %v1725 = vpop.f32.mrf.mxu0
    %v1726 = vadd.f32 0.0, %v1725
    %v1727 = vpop.f32.mrf.mxu0
    %1728 = vmatprep.mubr.f32.mxu0 0.0
    %1729 = vmatmul.mubr.f32.gmra.mxu0 %v1560
    %v1730 = vpop.f32.mrf.mxu0
    %v1731 = vadd.f32 0.0, %v1730
    %v1732 = vpop.f32.mrf.mxu0
    %1733 = vmatprep.mubr.f32.mxu0 0.0
    %1734 = vmatmul.mubr.f32.gmra.mxu0 %v1562
    %v1735 = vpop.f32.mrf.mxu0
    %v1736 = vadd.f32 0.0, %v1735
    %v1737 = vpop.f32.mrf.mxu0
    %1738 = vmatprep.mubr.f32.mxu0 0.0
    %1739 = vmatmul.mubr.f32.gmra.mxu0 %v1564
    %v1740 = vpop.f32.mrf.mxu0
    %v1741 = vadd.f32 0.0, %v1740
    %v1742 = vpop.f32.mrf.mxu0
    %1743 = vmatprep.mubr.f32.mxu0 0.0
    %1744 = vmatmul.mubr.f32.gmra.mxu0 %v1566
    %v1745 = vpop.f32.mrf.mxu0
    %v1746 = vadd.f32 0.0, %v1745
    %v1747 = vpop.f32.mrf.mxu0
    %1748 = vmatprep.mubr.f32.mxu0 0.0
    %1749 = vmatmul.mubr.f32.gmra.mxu0 %v1568
    %v1750 = vpop.f32.mrf.mxu0
    %v1751 = vadd.f32 0.0, %v1750
    %v1752 = vpop.f32.mrf.mxu0
    %1753 = vmatprep.mubr.f32.mxu0 0.0
    %1754 = vmatmul.mubr.f32.gmra.mxu0 %v1570
    %v1755 = vpop.f32.mrf.mxu0
    %v1756 = vadd.f32 0.0, %v1755
    %v1757 = vpop.f32.mrf.mxu0
    %1758 = vmatprep.mubr.f32.mxu0 0.0
    %1759 = vmatmul.mubr.f32.gmra.mxu0 %v1572
    %v1760 = vpop.f32.mrf.mxu0
    %v1761 = vadd.f32 0.0, %v1760
    %v1762 = vpop.f32.mrf.mxu0
    %1763 = vmatprep.mubr.f32.mxu0 0.0
    %1764 = vmatmul.mubr.f32.gmra.mxu0 %v1574
    %v1765 = vpop.f32.mrf.mxu0
    %v1766 = vadd.f32 0.0, %v1765
    %v1767 = vpop.f32.mrf.mxu0
    %1768 = vmatprep.mubr.f32.mxu0 0.0
    %1769 = vmatmul.mubr.f32.gmra.mxu0 %v1576
    %v1770 = vpop.f32.mrf.mxu0
    %v1771 = vadd.f32 0.0, %v1770
    %v1772 = vpop.f32.mrf.mxu0
    %1773 = vmatprep.mubr.f32.mxu0 0.0
    %1774 = vmatmul.mubr.f32.gmra.mxu0 %v1578
    %v1775 = vpop.f32.mrf.mxu0
    %v1776 = vadd.f32 0.0, %v1775
    %v1777 = vpop.f32.mrf.mxu0
    %1778 = vmatprep.mubr.f32.mxu0 0.0
    %1779 = vmatmul.mubr.f32.gmra.mxu0 %v1580
    %v1780 = vpop.f32.mrf.mxu0
    %v1781 = vadd.f32 0.0, %v1780
    %v1782 = vpop.f32.mrf.mxu0
    %1783 = vmatprep.mubr.f32.mxu0 0.0
    %1784 = vmatmul.mubr.f32.gmra.mxu0 %v1582
    %v1785 = vpop.f32.mrf.mxu0
    %v1786 = vadd.f32 0.0, %v1785
    %v1787 = vpop.f32.mrf.mxu0
    %1788 = vmatprep.mubr.f32.mxu0 0.0
    %1789 = vmatmul.mubr.f32.gmra.mxu0 %v1584
    %v1790 = vpop.f32.mrf.mxu0
    %v1791 = vadd.f32 0.0, %v1790
    %v1792 = vpop.f32.mrf.mxu0
    %1793 = vmatprep.mubr.f32.mxu0 0.0
    %1794 = vmatmul.mubr.f32.gmra.mxu0 %v1586
    %v1795 = vpop.f32.mrf.mxu0
    %v1796 = vadd.f32 0.0, %v1795
    %v1797 = vpop.f32.mrf.mxu0
    %1798 = vmatprep.mubr.f32.mxu0 0.0
    %1799 = vmatmul.mubr.f32.gmra.mxu0 %v1588
    %v1800 = vpop.f32.mrf.mxu0
    %v1801 = vadd.f32 0.0, %v1800
    %v1802 = vpop.f32.mrf.mxu0
    %1803 = vmatprep.mubr.f32.mxu0 0.0
    %1804 = vmatmul.mubr.f32.gmra.mxu0 %v1590
    %v1805 = vpop.f32.mrf.mxu0
    %v1806 = vadd.f32 0.0, %v1805
    %v1807 = vpop.f32.mrf.mxu0
    %1808 = vmatprep.mubr.f32.mxu0 0.0
    %1809 = vmatmul.mubr.f32.gmra.mxu0 %v1592
    %v1810 = vpop.f32.mrf.mxu0
    %v1811 = vadd.f32 0.0, %v1810
    %v1812 = vpop.f32.mrf.mxu0
    %1813 = vmatprep.mubr.f32.mxu0 0.0
    %1814 = vmatmul.mubr.f32.gmra.mxu0 %v1594
    %v1815 = vpop.f32.mrf.mxu0
    %v1816 = vadd.f32 0.0, %v1815
    %v1817 = vpop.f32.mrf.mxu0
    %1818 = vmatprep.mubr.f32.mxu0 0.0
    %1819 = vmatmul.mubr.f32.gmra.mxu0 %v1596
    %v1820 = vpop.f32.mrf.mxu0
    %v1821 = vadd.f32 0.0, %v1820
    %v1822 = vpop.f32.mrf.mxu0
    %1823 = vmatprep.mubr.f32.mxu0 0.0
    %1824 = vmatmul.mubr.f32.gmra.mxu0 %v1598
    %v1825 = vpop.f32.mrf.mxu0
    %v1826 = vadd.f32 0.0, %v1825
    %v1827 = vpop.f32.mrf.mxu0
    %1828 = vmatprep.mubr.f32.mxu0 0.0
    %1829 = vmatmul.mubr.f32.gmra.mxu0 %v1600
    %v1830 = vpop.f32.mrf.mxu0
    %v1831 = vadd.f32 0.0, %v1830
    %v1832 = vpop.f32.mrf.mxu0
    %1833 = vmatprep.mubr.f32.mxu0 0.0
    %1834 = vmatmul.mubr.f32.gmra.mxu0 %v1602
    %v1835 = vpop.f32.mrf.mxu0
    %v1836 = vadd.f32 0.0, %v1835
    %v1837 = vpop.f32.mrf.mxu0
    %1838 = vmatprep.mubr.f32.mxu0 0.0
    %1839 = vmatmul.mubr.f32.gmra.mxu0 %v1604
    %v1840 = vpop.f32.mrf.mxu0
    %v1841 = vadd.f32 0.0, %v1840
    %v1842 = vpop.f32.mrf.mxu0
    %1843 = vmatprep.mubr.f32.mxu0 0.0
    %1844 = vmatmul.mubr.f32.gmra.mxu0 %v1606
    %v1845 = vpop.f32.mrf.mxu0
    %v1846 = vadd.f32 0.0, %v1845
    %v1847 = vpop.f32.mrf.mxu0
    %1848 = vmatprep.mubr.f32.mxu0 0.0
    %1849 = vmatmul.mubr.f32.gmra.mxu0 %v1608
    %v1850 = vpop.f32.mrf.mxu0
    %v1851 = vadd.f32 0.0, %v1850
    %v1852 = vpop.f32.mrf.mxu0
    %1853 = vmatprep.mubr.f32.mxu0 0.0
    %1854 = vmatmul.mubr.f32.gmra.mxu0 %v1610
    %v1855 = vpop.f32.mrf.mxu0
    %v1856 = vadd.f32 0.0, %v1855
    %v1857 = vpop.f32.mrf.mxu0
    %1858 = vmatprep.mubr.f32.mxu0 0.0
    %1859 = vmatmul.mubr.f32.gmra.mxu0 %v1612
    %v1860 = vpop.f32.mrf.mxu0
    %v1861 = vadd.f32 0.0, %v1860
    %v1862 = vpop.f32.mrf.mxu0
    %1863 = vmatprep.mubr.f32.mxu0 0.0
    %1864 = vmatmul.mubr.f32.gmra.mxu0 %v1614
    %v1865 = vpop.f32.mrf.mxu0
    %v1866 = vadd.f32 0.0, %v1865
    %v1867 = vpop.f32.mrf.mxu0
    %1868 = vmatprep.mubr.f32.mxu0 0.0
    %1869 = vmatmul.mubr.f32.gmra.mxu0 %v1616
    %v1870 = vpop.f32.mrf.mxu0
    %v1871 = vadd.f32 0.0, %v1870
    %v1872 = vpop.f32.mrf.mxu0
    %1873 = vmatprep.mubr.f32.mxu0 0.0
    %1874 = vmatmul.mubr.f32.gmra.mxu0 %v1618
    %v1875 = vpop.f32.mrf.mxu0
    %v1876 = vadd.f32 0.0, %v1875
    %v1877 = vpop.f32.mrf.mxu0
    %1878 = vmatprep.mubr.f32.mxu0 0.0
    %1879 = vmatmul.mubr.f32.gmra.mxu0 %v1620
    %v1880 = vpop.f32.mrf.mxu0
    %v1881 = vadd.f32 0.0, %v1880
    %v1882 = vpop.f32.mrf.mxu0
    %1883 = vmatprep.mubr.f32.mxu0 0.0
    %1884 = vmatmul.mubr.f32.gmra.mxu0 %v1622
    %v1885 = vpop.f32.mrf.mxu0
    %v1886 = vadd.f32 0.0, %v1885
    %v1887 = vpop.f32.mrf.mxu0
    %1888 = vmatprep.mubr.f32.mxu0 0.0
    %1889 = vmatmul.mubr.f32.gmra.mxu0 %v1624
    %v1890 = vpop.f32.mrf.mxu0
    %v1891 = vadd.f32 0.0, %v1890
    %v1892 = vpop.f32.mrf.mxu0
    %1893 = vdwg.mxu0
    %v1894 = vadd.f32 %v1421, %v1696
    %v1895 = vadd.f32 %v1422, %v1701
    %v1896 = vadd.f32 %v1423, %v1706
    %v1897 = vadd.f32 %v1424, %v1711
    %v1898 = vadd.f32 %v1425, %v1716
    %v1899 = vadd.f32 %v1426, %v1721
    %v1900 = vadd.f32 %v1427, %v1726
    %v1901 = vadd.f32 %v1428, %v1731
    %v1902 = vadd.f32 %v1429, %v1736
    %v1903 = vadd.f32 %v1430, %v1741
    %v1904 = vadd.f32 %v1431, %v1746
    %v1905 = vadd.f32 %v1432, %v1751
    %v1906 = vadd.f32 %v1433, %v1756
    %v1907 = vadd.f32 %v1434, %v1761
    %v1908 = vadd.f32 %v1435, %v1766
    %v1909 = vadd.f32 %v1436, %v1771
    %v1910 = vadd.f32 %v1437, %v1776
    %v1911 = vadd.f32 %v1438, %v1781
    %v1912 = vadd.f32 %v1439, %v1786
    %v1913 = vadd.f32 %v1440, %v1791
    %v1914 = vadd.f32 %v1441, %v1796
    %v1915 = vadd.f32 %v1442, %v1801
    %v1916 = vadd.f32 %v1443, %v1806
    %v1917 = vadd.f32 %v1444, %v1811
    %v1918 = vadd.f32 %v1445, %v1816
    %v1919 = vadd.f32 %v1446, %v1821
    %v1920 = vadd.f32 %v1447, %v1826
    %v1921 = vadd.f32 %v1448, %v1831
    %v1922 = vadd.f32 %v1449, %v1836
    %v1923 = vadd.f32 %v1450, %v1841
    %v1924 = vadd.f32 %v1451, %v1846
    %v1925 = vadd.f32 %v1452, %v1851
    %v1926 = vadd.f32 %v1453, %v1856
    %v1927 = vadd.f32 %v1454, %v1861
    %v1928 = vadd.f32 %v1455, %v1866
    %v1929 = vadd.f32 %v1456, %v1871
    %v1930 = vadd.f32 %v1457, %v1876
    %v1931 = vadd.f32 %v1458, %v1881
    %v1932 = vadd.f32 %v1459, %v1886
    %v1933 = vadd.f32 %v1460, %v1891
    %v1934 = vrot.slane %v38, 4
    %v1935 = vrot.slane %v39, 4
    %v1936 = vsel %vm371, %v1934, %v1935
    %v1937 = vrot.slane %v40, 4
    %v1938 = vsel %vm371, %v1935, %v1937
    %v1939 = vrot.slane %v41, 4
    %v1940 = vsel %vm371, %v1937, %v1939
    %v1941 = vrot.slane %v42, 4
    %v1942 = vsel %vm371, %v1939, %v1941
    %v1943 = vrot.slane %v43, 4
    %v1944 = vsel %vm371, %v1941, %v1943
    %v1945 = vrot.slane %v44, 4
    %v1946 = vsel %vm371, %v1943, %v1945
    %v1947 = vrot.slane %v45, 4
    %v1948 = vsel %vm371, %v1945, %v1947
    %v1949 = vrot.slane %v46, 4
    %v1950 = vsel %vm371, %v1947, %v1949
    %v1951 = vrot.slane %v47, 4
    %v1952 = vsel %vm371, %v1949, %v1951
    %v1953 = vrot.slane %v48, 4
    %v1954 = vsel %vm371, %v1951, %v1953
    %v1955 = vrot.slane %v70, 4
    %v1956 = vrot.slane %v71, 4
    %v1957 = vsel %vm371, %v1955, %v1956
    %v1958 = vrot.slane %v72, 4
    %v1959 = vsel %vm371, %v1956, %v1958
    %v1960 = vrot.slane %v73, 4
    %v1961 = vsel %vm371, %v1958, %v1960
    %v1962 = vrot.slane %v74, 4
    %v1963 = vsel %vm371, %v1960, %v1962
    %v1964 = vrot.slane %v75, 4
    %v1965 = vsel %vm371, %v1962, %v1964
    %v1966 = vrot.slane %v76, 4
    %v1967 = vsel %vm371, %v1964, %v1966
    %v1968 = vrot.slane %v77, 4
    %v1969 = vsel %vm371, %v1966, %v1968
    %v1970 = vrot.slane %v78, 4
    %v1971 = vsel %vm371, %v1968, %v1970
    %v1972 = vrot.slane %v79, 4
    %v1973 = vsel %vm371, %v1970, %v1972
    %v1974 = vrot.slane %v80, 4
    %v1975 = vsel %vm371, %v1972, %v1974
    %v1976 = vrot.slane %v102, 4
    %v1977 = vrot.slane %v103, 4
    %v1978 = vsel %vm371, %v1976, %v1977
    %v1979 = vrot.slane %v104, 4
    %v1980 = vsel %vm371, %v1977, %v1979
    %v1981 = vrot.slane %v105, 4
    %v1982 = vsel %vm371, %v1979, %v1981
    %v1983 = vrot.slane %v106, 4
    %v1984 = vsel %vm371, %v1981, %v1983
    %v1985 = vrot.slane %v107, 4
    %v1986 = vsel %vm371, %v1983, %v1985
    %v1987 = vrot.slane %v108, 4
    %v1988 = vsel %vm371, %v1985, %v1987
    %v1989 = vrot.slane %v109, 4
    %v1990 = vsel %vm371, %v1987, %v1989
    %v1991 = vrot.slane %v110, 4
    %v1992 = vsel %vm371, %v1989, %v1991
    %v1993 = vrot.slane %v111, 4
    %v1994 = vsel %vm371, %v1991, %v1993
    %v1995 = vrot.slane %v112, 4
    %v1996 = vsel %vm371, %v1993, %v1995
    %v1997 = vrot.slane %v134, 4
    %v1998 = vrot.slane %v135, 4
    %v1999 = vsel %vm371, %v1997, %v1998
    %v2000 = vrot.slane %v136, 4
    %v2001 = vsel %vm371, %v1998, %v2000
    %v2002 = vrot.slane %v137, 4
    %v2003 = vsel %vm371, %v2000, %v2002
    %v2004 = vrot.slane %v138, 4
    %v2005 = vsel %vm371, %v2002, %v2004
    %v2006 = vrot.slane %v139, 4
    %v2007 = vsel %vm371, %v2004, %v2006
    %v2008 = vrot.slane %v140, 4
    %v2009 = vsel %vm371, %v2006, %v2008
    %v2010 = vrot.slane %v141, 4
    %v2011 = vsel %vm371, %v2008, %v2010
    %v2012 = vrot.slane %v142, 4
    %v2013 = vsel %vm371, %v2010, %v2012
    %v2014 = vrot.slane %v143, 4
    %v2015 = vsel %vm371, %v2012, %v2014
    %v2016 = vrot.slane %v144, 4
    %v2017 = vsel %vm371, %v2014, %v2016
    %v2018 = vsel %vm290, %v1936, 0
    %v2020 = vsel %vm290, %v1938, 0
    %v2022 = vsel %vm290, %v1940, 0
    %v2024 = vsel %vm290, %v1942, 0
    %v2026 = vsel %vm290, %v1944, 0
    %v2028 = vsel %vm290, %v1946, 0
    %v2030 = vsel %vm290, %v1948, 0
    %v2032 = vsel %vm290, %v1950, 0
    %v2034 = vsel %vm290, %v1952, 0
    %v2036 = vsel %vm290, %v1954, 0
    %v2038 = vsel %vm290, %v1957, 0
    %v2040 = vsel %vm290, %v1959, 0
    %v2042 = vsel %vm290, %v1961, 0
    %v2044 = vsel %vm290, %v1963, 0
    %v2046 = vsel %vm290, %v1965, 0
    %v2048 = vsel %vm290, %v1967, 0
    %v2050 = vsel %vm290, %v1969, 0
    %v2052 = vsel %vm290, %v1971, 0
    %v2054 = vsel %vm290, %v1973, 0
    %v2056 = vsel %vm290, %v1975, 0
    %v2058 = vsel %vm290, %v1978, 0
    %v2060 = vsel %vm290, %v1980, 0
    %v2062 = vsel %vm290, %v1982, 0
    %v2064 = vsel %vm290, %v1984, 0
    %v2066 = vsel %vm290, %v1986, 0
    %v2068 = vsel %vm290, %v1988, 0
    %v2070 = vsel %vm290, %v1990, 0
    %v2072 = vsel %vm290, %v1992, 0
    %v2074 = vsel %vm290, %v1994, 0
    %v2076 = vsel %vm290, %v1996, 0
    %v2078 = vsel %vm290, %v1999, 0
    %v2080 = vsel %vm290, %v2001, 0
    %v2082 = vsel %vm290, %v2003, 0
    %v2084 = vsel %vm290, %v2005, 0
    %v2086 = vsel %vm290, %v2007, 0
    %v2088 = vsel %vm290, %v2009, 0
    %v2090 = vsel %vm290, %v2011, 0
    %v2092 = vsel %vm290, %v2013, 0
    %v2094 = vsel %vm290, %v2015, 0
    %v2096 = vsel %vm290, %v2017, 0
    %v2099 = vsel %vm371, %v154, 0
    %2101 = vmatprep.subr.mxu0 0.0
    %2102 = vmatpush1.msra.mxu0 0.0
    %2103 = vmatprep.subr.mxu0 0.0
    %2104 = vmatpush1.msra.mxu0 0.0
    %2105 = vmatprep.subr.mxu0 0.0
    %2106 = vmatpush1.msra.mxu0 0.0
    %2107 = vmatprep.subr.mxu0 0.0
    %2108 = vmatpush1.msra.mxu0 0.0
    %2109 = vmatprep.subr.mxu0 0.0
    %2110 = vmatpush1.msra.mxu0 0.0
    %2111 = vmatprep.subr.mxu0 0.0
    %2112 = vmatpush1.msra.mxu0 0.0
    %2113 = vmatprep.subr.mxu0 0.0
    %2114 = vmatpush1.msra.mxu0 0.0
    %2115 = vmatprep.subr.mxu0 0.0
    %2116 = vmatpush1.msra.mxu0 0.0
    %2117 = vmatprep.subr.mxu0 0.0
    %2118 = vmatpush1.msra.mxu0 0.0
    %2119 = vmatprep.subr.mxu0 0.0
    %2120 = vmatpush1.msra.mxu0 0.0
    %2121 = vmatprep.subr.mxu0 0.0
    %2122 = vmatpush1.msra.mxu0 0.0
    %2123 = vmatprep.subr.mxu0 0.0
    %2124 = vmatpush1.msra.mxu0 0.0
    %2125 = vmatprep.subr.mxu0 0.0
    %2126 = vmatpush1.msra.mxu0 0.0
    %2127 = vmatprep.subr.mxu0 0.0
    %2128 = vmatpush1.msra.mxu0 0.0
    %2129 = vmatprep.subr.mxu0 0.0
    %2130 = vmatpush1.msra.mxu0 0.0
    %2131 = vmatprep.subr.mxu0 0.0
    %2132 = vmatpush1.msra.mxu0 %v2099
    %2133 = vmatprep.subr.mxu0 0.0
    %2134 = vmatpush2.msra.mxu0 0.0
    %2135 = vmatprep.subr.mxu0 0.0
    %2136 = vmatpush2.msra.mxu0 0.0
    %2137 = vmatprep.subr.mxu0 0.0
    %2138 = vmatpush2.msra.mxu0 0.0
    %2139 = vmatprep.subr.mxu0 0.0
    %2140 = vmatpush2.msra.mxu0 0.0
    %2141 = vmatprep.subr.mxu0 0.0
    %2142 = vmatpush2.msra.mxu0 0.0
    %2143 = vmatprep.subr.mxu0 0.0
    %2144 = vmatpush2.msra.mxu0 0.0
    %2145 = vmatprep.subr.mxu0 0.0
    %2146 = vmatpush2.msra.mxu0 0.0
    %2147 = vmatprep.subr.mxu0 0.0
    %2148 = vmatpush2.msra.mxu0 0.0
    %2149 = vmatprep.subr.mxu0 0.0
    %2150 = vmatpush2.msra.mxu0 0.0
    %2151 = vmatprep.subr.mxu0 0.0
    %2152 = vmatpush2.msra.mxu0 0.0
    %2153 = vmatprep.subr.mxu0 0.0
    %2154 = vmatpush2.msra.mxu0 0.0
    %2155 = vmatprep.subr.mxu0 0.0
    %2156 = vmatpush2.msra.mxu0 0.0
    %2157 = vmatprep.subr.mxu0 0.0
    %2158 = vmatpush2.msra.mxu0 0.0
    %2159 = vmatprep.subr.mxu0 0.0
    %2160 = vmatpush2.msra.mxu0 0.0
    %2161 = vmatprep.subr.mxu0 0.0
    %2162 = vmatpush2.msra.mxu0 0.0
    %2163 = vmatprep.subr.mxu0 0.0
    %2164 = vmatpush2.msra.mxu0 0.0
    %2165 = vmatprep.mubr.f32.mxu0 0.0
    %2166 = vmatmul.mubr.f32.gmra.mxu0 %v2018
    %v2167 = vpop.f32.mrf.mxu0
    %v2168 = vadd.f32 0.0, %v2167
    %v2169 = vpop.f32.mrf.mxu0
    %2170 = vmatprep.mubr.f32.mxu0 0.0
    %2171 = vmatmul.mubr.f32.gmra.mxu0 %v2020
    %v2172 = vpop.f32.mrf.mxu0
    %v2173 = vadd.f32 0.0, %v2172
    %v2174 = vpop.f32.mrf.mxu0
    %2175 = vmatprep.mubr.f32.mxu0 0.0
    %2176 = vmatmul.mubr.f32.gmra.mxu0 %v2022
    %v2177 = vpop.f32.mrf.mxu0
    %v2178 = vadd.f32 0.0, %v2177
    %v2179 = vpop.f32.mrf.mxu0
    %2180 = vmatprep.mubr.f32.mxu0 0.0
    %2181 = vmatmul.mubr.f32.gmra.mxu0 %v2024
    %v2182 = vpop.f32.mrf.mxu0
    %v2183 = vadd.f32 0.0, %v2182
    %v2184 = vpop.f32.mrf.mxu0
    %2185 = vmatprep.mubr.f32.mxu0 0.0
    %2186 = vmatmul.mubr.f32.gmra.mxu0 %v2026
    %v2187 = vpop.f32.mrf.mxu0
    %v2188 = vadd.f32 0.0, %v2187
    %v2189 = vpop.f32.mrf.mxu0
    %2190 = vmatprep.mubr.f32.mxu0 0.0
    %2191 = vmatmul.mubr.f32.gmra.mxu0 %v2028
    %v2192 = vpop.f32.mrf.mxu0
    %v2193 = vadd.f32 0.0, %v2192
    %v2194 = vpop.f32.mrf.mxu0
    %2195 = vmatprep.mubr.f32.mxu0 0.0
    %2196 = vmatmul.mubr.f32.gmra.mxu0 %v2030
    %v2197 = vpop.f32.mrf.mxu0
    %v2198 = vadd.f32 0.0, %v2197
    %v2199 = vpop.f32.mrf.mxu0
    %2200 = vmatprep.mubr.f32.mxu0 0.0
    %2201 = vmatmul.mubr.f32.gmra.mxu0 %v2032
    %v2202 = vpop.f32.mrf.mxu0
    %v2203 = vadd.f32 0.0, %v2202
    %v2204 = vpop.f32.mrf.mxu0
    %2205 = vmatprep.mubr.f32.mxu0 0.0
    %2206 = vmatmul.mubr.f32.gmra.mxu0 %v2034
    %v2207 = vpop.f32.mrf.mxu0
    %v2208 = vadd.f32 0.0, %v2207
    %v2209 = vpop.f32.mrf.mxu0
    %2210 = vmatprep.mubr.f32.mxu0 0.0
    %2211 = vmatmul.mubr.f32.gmra.mxu0 %v2036
    %v2212 = vpop.f32.mrf.mxu0
    %v2213 = vadd.f32 0.0, %v2212
    %v2214 = vpop.f32.mrf.mxu0
    %2215 = vmatprep.mubr.f32.mxu0 0.0
    %2216 = vmatmul.mubr.f32.gmra.mxu0 %v2038
    %v2217 = vpop.f32.mrf.mxu0
    %v2218 = vadd.f32 0.0, %v2217
    %v2219 = vpop.f32.mrf.mxu0
    %2220 = vmatprep.mubr.f32.mxu0 0.0
    %2221 = vmatmul.mubr.f32.gmra.mxu0 %v2040
    %v2222 = vpop.f32.mrf.mxu0
    %v2223 = vadd.f32 0.0, %v2222
    %v2224 = vpop.f32.mrf.mxu0
    %2225 = vmatprep.mubr.f32.mxu0 0.0
    %2226 = vmatmul.mubr.f32.gmra.mxu0 %v2042
    %v2227 = vpop.f32.mrf.mxu0
    %v2228 = vadd.f32 0.0, %v2227
    %v2229 = vpop.f32.mrf.mxu0
    %2230 = vmatprep.mubr.f32.mxu0 0.0
    %2231 = vmatmul.mubr.f32.gmra.mxu0 %v2044
    %v2232 = vpop.f32.mrf.mxu0
    %v2233 = vadd.f32 0.0, %v2232
    %v2234 = vpop.f32.mrf.mxu0
    %2235 = vmatprep.mubr.f32.mxu0 0.0
    %2236 = vmatmul.mubr.f32.gmra.mxu0 %v2046
    %v2237 = vpop.f32.mrf.mxu0
    %v2238 = vadd.f32 0.0, %v2237
    %v2239 = vpop.f32.mrf.mxu0
    %2240 = vmatprep.mubr.f32.mxu0 0.0
    %2241 = vmatmul.mubr.f32.gmra.mxu0 %v2048
    %v2242 = vpop.f32.mrf.mxu0
    %v2243 = vadd.f32 0.0, %v2242
    %v2244 = vpop.f32.mrf.mxu0
    %2245 = vmatprep.mubr.f32.mxu0 0.0
    %2246 = vmatmul.mubr.f32.gmra.mxu0 %v2050
    %v2247 = vpop.f32.mrf.mxu0
    %v2248 = vadd.f32 0.0, %v2247
    %v2249 = vpop.f32.mrf.mxu0
    %2250 = vmatprep.mubr.f32.mxu0 0.0
    %2251 = vmatmul.mubr.f32.gmra.mxu0 %v2052
    %v2252 = vpop.f32.mrf.mxu0
    %v2253 = vadd.f32 0.0, %v2252
    %v2254 = vpop.f32.mrf.mxu0
    %2255 = vmatprep.mubr.f32.mxu0 0.0
    %2256 = vmatmul.mubr.f32.gmra.mxu0 %v2054
    %v2257 = vpop.f32.mrf.mxu0
    %v2258 = vadd.f32 0.0, %v2257
    %v2259 = vpop.f32.mrf.mxu0
    %2260 = vmatprep.mubr.f32.mxu0 0.0
    %2261 = vmatmul.mubr.f32.gmra.mxu0 %v2056
    %v2262 = vpop.f32.mrf.mxu0
    %v2263 = vadd.f32 0.0, %v2262
    %v2264 = vpop.f32.mrf.mxu0
    %2265 = vmatprep.mubr.f32.mxu0 0.0
    %2266 = vmatmul.mubr.f32.gmra.mxu0 %v2058
    %v2267 = vpop.f32.mrf.mxu0
    %v2268 = vadd.f32 0.0, %v2267
    %v2269 = vpop.f32.mrf.mxu0
    %2270 = vmatprep.mubr.f32.mxu0 0.0
    %2271 = vmatmul.mubr.f32.gmra.mxu0 %v2060
    %v2272 = vpop.f32.mrf.mxu0
    %v2273 = vadd.f32 0.0, %v2272
    %v2274 = vpop.f32.mrf.mxu0
    %2275 = vmatprep.mubr.f32.mxu0 0.0
    %2276 = vmatmul.mubr.f32.gmra.mxu0 %v2062
    %v2277 = vpop.f32.mrf.mxu0
    %v2278 = vadd.f32 0.0, %v2277
    %v2279 = vpop.f32.mrf.mxu0
    %2280 = vmatprep.mubr.f32.mxu0 0.0
    %2281 = vmatmul.mubr.f32.gmra.mxu0 %v2064
    %v2282 = vpop.f32.mrf.mxu0
    %v2283 = vadd.f32 0.0, %v2282
    %v2284 = vpop.f32.mrf.mxu0
    %2285 = vmatprep.mubr.f32.mxu0 0.0
    %2286 = vmatmul.mubr.f32.gmra.mxu0 %v2066
    %v2287 = vpop.f32.mrf.mxu0
    %v2288 = vadd.f32 0.0, %v2287
    %v2289 = vpop.f32.mrf.mxu0
    %2290 = vmatprep.mubr.f32.mxu0 0.0
    %2291 = vmatmul.mubr.f32.gmra.mxu0 %v2068
    %v2292 = vpop.f32.mrf.mxu0
    %v2293 = vadd.f32 0.0, %v2292
    %v2294 = vpop.f32.mrf.mxu0
    %2295 = vmatprep.mubr.f32.mxu0 0.0
    %2296 = vmatmul.mubr.f32.gmra.mxu0 %v2070
    %v2297 = vpop.f32.mrf.mxu0
    %v2298 = vadd.f32 0.0, %v2297
    %v2299 = vpop.f32.mrf.mxu0
    %2300 = vmatprep.mubr.f32.mxu0 0.0
    %2301 = vmatmul.mubr.f32.gmra.mxu0 %v2072
    %v2302 = vpop.f32.mrf.mxu0
    %v2303 = vadd.f32 0.0, %v2302
    %v2304 = vpop.f32.mrf.mxu0
    %2305 = vmatprep.mubr.f32.mxu0 0.0
    %2306 = vmatmul.mubr.f32.gmra.mxu0 %v2074
    %v2307 = vpop.f32.mrf.mxu0
    %v2308 = vadd.f32 0.0, %v2307
    %v2309 = vpop.f32.mrf.mxu0
    %2310 = vmatprep.mubr.f32.mxu0 0.0
    %2311 = vmatmul.mubr.f32.gmra.mxu0 %v2076
    %v2312 = vpop.f32.mrf.mxu0
    %v2313 = vadd.f32 0.0, %v2312
    %v2314 = vpop.f32.mrf.mxu0
    %2315 = vmatprep.mubr.f32.mxu0 0.0
    %2316 = vmatmul.mubr.f32.gmra.mxu0 %v2078
    %v2317 = vpop.f32.mrf.mxu0
    %v2318 = vadd.f32 0.0, %v2317
    %v2319 = vpop.f32.mrf.mxu0
    %2320 = vmatprep.mubr.f32.mxu0 0.0
    %2321 = vmatmul.mubr.f32.gmra.mxu0 %v2080
    %v2322 = vpop.f32.mrf.mxu0
    %v2323 = vadd.f32 0.0, %v2322
    %v2324 = vpop.f32.mrf.mxu0
    %2325 = vmatprep.mubr.f32.mxu0 0.0
    %2326 = vmatmul.mubr.f32.gmra.mxu0 %v2082
    %v2327 = vpop.f32.mrf.mxu0
    %v2328 = vadd.f32 0.0, %v2327
    %v2329 = vpop.f32.mrf.mxu0
    %2330 = vmatprep.mubr.f32.mxu0 0.0
    %2331 = vmatmul.mubr.f32.gmra.mxu0 %v2084
    %v2332 = vpop.f32.mrf.mxu0
    %v2333 = vadd.f32 0.0, %v2332
    %v2334 = vpop.f32.mrf.mxu0
    %2335 = vmatprep.mubr.f32.mxu0 0.0
    %2336 = vmatmul.mubr.f32.gmra.mxu0 %v2086
    %v2337 = vpop.f32.mrf.mxu0
    %v2338 = vadd.f32 0.0, %v2337
    %v2339 = vpop.f32.mrf.mxu0
    %2340 = vmatprep.mubr.f32.mxu0 0.0
    %2341 = vmatmul.mubr.f32.gmra.mxu0 %v2088
    %v2342 = vpop.f32.mrf.mxu0
    %v2343 = vadd.f32 0.0, %v2342
    %v2344 = vpop.f32.mrf.mxu0
    %2345 = vmatprep.mubr.f32.mxu0 0.0
    %2346 = vmatmul.mubr.f32.gmra.mxu0 %v2090
    %v2347 = vpop.f32.mrf.mxu0
    %v2348 = vadd.f32 0.0, %v2347
    %v2349 = vpop.f32.mrf.mxu0
    %2350 = vmatprep.mubr.f32.mxu0 0.0
    %2351 = vmatmul.mubr.f32.gmra.mxu0 %v2092
    %v2352 = vpop.f32.mrf.mxu0
    %v2353 = vadd.f32 0.0, %v2352
    %v2354 = vpop.f32.mrf.mxu0
    %2355 = vmatprep.mubr.f32.mxu0 0.0
    %2356 = vmatmul.mubr.f32.gmra.mxu0 %v2094
    %v2357 = vpop.f32.mrf.mxu0
    %v2358 = vadd.f32 0.0, %v2357
    %v2359 = vpop.f32.mrf.mxu0
    %2360 = vmatprep.mubr.f32.mxu0 0.0
    %2361 = vmatmul.mubr.f32.gmra.mxu0 %v2096
    %v2362 = vpop.f32.mrf.mxu0
    %v2363 = vadd.f32 0.0, %v2362
    %v2364 = vpop.f32.mrf.mxu0
    %2365 = vdwg.mxu0
    %v2366 = vadd.f32 %v1894, %v2168
    %v2367 = vadd.f32 %v1895, %v2173
    %v2368 = vadd.f32 %v1896, %v2178
    %v2369 = vadd.f32 %v1897, %v2183
    %v2370 = vadd.f32 %v1898, %v2188
    %v2371 = vadd.f32 %v1899, %v2193
    %v2372 = vadd.f32 %v1900, %v2198
    %v2373 = vadd.f32 %v1901, %v2203
    %v2374 = vadd.f32 %v1902, %v2208
    %v2375 = vadd.f32 %v1903, %v2213
    %v2376 = vadd.f32 %v1904, %v2218
    %v2377 = vadd.f32 %v1905, %v2223
    %v2378 = vadd.f32 %v1906, %v2228
    %v2379 = vadd.f32 %v1907, %v2233
    %v2380 = vadd.f32 %v1908, %v2238
    %v2381 = vadd.f32 %v1909, %v2243
    %v2382 = vadd.f32 %v1910, %v2248
    %v2383 = vadd.f32 %v1911, %v2253
    %v2384 = vadd.f32 %v1912, %v2258
    %v2385 = vadd.f32 %v1913, %v2263
    %v2386 = vadd.f32 %v1914, %v2268
    %v2387 = vadd.f32 %v1915, %v2273
    %v2388 = vadd.f32 %v1916, %v2278
    %v2389 = vadd.f32 %v1917, %v2283
    %v2390 = vadd.f32 %v1918, %v2288
    %v2391 = vadd.f32 %v1919, %v2293
    %v2392 = vadd.f32 %v1920, %v2298
    %v2393 = vadd.f32 %v1921, %v2303
    %v2394 = vadd.f32 %v1922, %v2308
    %v2395 = vadd.f32 %v1923, %v2313
    %v2396 = vadd.f32 %v1924, %v2318
    %v2397 = vadd.f32 %v1925, %v2323
    %v2398 = vadd.f32 %v1926, %v2328
    %v2399 = vadd.f32 %v1927, %v2333
    %v2400 = vadd.f32 %v1928, %v2338
    %v2401 = vadd.f32 %v1929, %v2343
    %v2402 = vadd.f32 %v1930, %v2348
    %v2403 = vadd.f32 %v1931, %v2353
    %v2404 = vadd.f32 %v1932, %v2358
    %v2405 = vadd.f32 %v1933, %v2363
    %vm2406 = vcmask 1042432
    %v2407 = vrot.slane %v38, 5
    %v2408 = vrot.slane %v39, 5
    %v2409 = vsel %vm2406, %v2407, %v2408
    %v2410 = vrot.slane %v40, 5
    %v2411 = vsel %vm2406, %v2408, %v2410
    %v2412 = vrot.slane %v41, 5
    %v2413 = vsel %vm2406, %v2410, %v2412
    %v2414 = vrot.slane %v42, 5
    %v2415 = vsel %vm2406, %v2412, %v2414
    %v2416 = vrot.slane %v43, 5
    %v2417 = vsel %vm2406, %v2414, %v2416
    %v2418 = vrot.slane %v44, 5
    %v2419 = vsel %vm2406, %v2416, %v2418
    %v2420 = vrot.slane %v45, 5
    %v2421 = vsel %vm2406, %v2418, %v2420
    %v2422 = vrot.slane %v46, 5
    %v2423 = vsel %vm2406, %v2420, %v2422
    %v2424 = vrot.slane %v47, 5
    %v2425 = vsel %vm2406, %v2422, %v2424
    %v2426 = vrot.slane %v48, 5
    %v2427 = vsel %vm2406, %v2424, %v2426
    %v2428 = vrot.slane %v70, 5
    %v2429 = vrot.slane %v71, 5
    %v2430 = vsel %vm2406, %v2428, %v2429
    %v2431 = vrot.slane %v72, 5
    %v2432 = vsel %vm2406, %v2429, %v2431
    %v2433 = vrot.slane %v73, 5
    %v2434 = vsel %vm2406, %v2431, %v2433
    %v2435 = vrot.slane %v74, 5
    %v2436 = vsel %vm2406, %v2433, %v2435
    %v2437 = vrot.slane %v75, 5
    %v2438 = vsel %vm2406, %v2435, %v2437
    %v2439 = vrot.slane %v76, 5
    %v2440 = vsel %vm2406, %v2437, %v2439
    %v2441 = vrot.slane %v77, 5
    %v2442 = vsel %vm2406, %v2439, %v2441
    %v2443 = vrot.slane %v78, 5
    %v2444 = vsel %vm2406, %v2441, %v2443
    %v2445 = vrot.slane %v79, 5
    %v2446 = vsel %vm2406, %v2443, %v2445
    %v2447 = vrot.slane %v80, 5
    %v2448 = vsel %vm2406, %v2445, %v2447
    %v2449 = vrot.slane %v102, 5
    %v2450 = vrot.slane %v103, 5
    %v2451 = vsel %vm2406, %v2449, %v2450
    %v2452 = vrot.slane %v104, 5
    %v2453 = vsel %vm2406, %v2450, %v2452
    %v2454 = vrot.slane %v105, 5
    %v2455 = vsel %vm2406, %v2452, %v2454
    %v2456 = vrot.slane %v106, 5
    %v2457 = vsel %vm2406, %v2454, %v2456
    %v2458 = vrot.slane %v107, 5
    %v2459 = vsel %vm2406, %v2456, %v2458
    %v2460 = vrot.slane %v108, 5
    %v2461 = vsel %vm2406, %v2458, %v2460
    %v2462 = vrot.slane %v109, 5
    %v2463 = vsel %vm2406, %v2460, %v2462
    %v2464 = vrot.slane %v110, 5
    %v2465 = vsel %vm2406, %v2462, %v2464
    %v2466 = vrot.slane %v111, 5
    %v2467 = vsel %vm2406, %v2464, %v2466
    %v2468 = vrot.slane %v112, 5
    %v2469 = vsel %vm2406, %v2466, %v2468
    %v2470 = vrot.slane %v134, 5
    %v2471 = vrot.slane %v135, 5
    %v2472 = vsel %vm2406, %v2470, %v2471
    %v2473 = vrot.slane %v136, 5
    %v2474 = vsel %vm2406, %v2471, %v2473
    %v2475 = vrot.slane %v137, 5
    %v2476 = vsel %vm2406, %v2473, %v2475
    %v2477 = vrot.slane %v138, 5
    %v2478 = vsel %vm2406, %v2475, %v2477
    %v2479 = vrot.slane %v139, 5
    %v2480 = vsel %vm2406, %v2477, %v2479
    %v2481 = vrot.slane %v140, 5
    %v2482 = vsel %vm2406, %v2479, %v2481
    %v2483 = vrot.slane %v141, 5
    %v2484 = vsel %vm2406, %v2481, %v2483
    %v2485 = vrot.slane %v142, 5
    %v2486 = vsel %vm2406, %v2483, %v2485
    %v2487 = vrot.slane %v143, 5
    %v2488 = vsel %vm2406, %v2485, %v2487
    %v2489 = vrot.slane %v144, 5
    %v2490 = vsel %vm2406, %v2487, %v2489
    %v2491 = vsel %vm290, %v2409, 0
    %v2493 = vsel %vm290, %v2411, 0
    %v2495 = vsel %vm290, %v2413, 0
    %v2497 = vsel %vm290, %v2415, 0
    %v2499 = vsel %vm290, %v2417, 0
    %v2501 = vsel %vm290, %v2419, 0
    %v2503 = vsel %vm290, %v2421, 0
    %v2505 = vsel %vm290, %v2423, 0
    %v2507 = vsel %vm290, %v2425, 0
    %v2509 = vsel %vm290, %v2427, 0
    %v2511 = vsel %vm290, %v2430, 0
    %v2513 = vsel %vm290, %v2432, 0
    %v2515 = vsel %vm290, %v2434, 0
    %v2517 = vsel %vm290, %v2436, 0
    %v2519 = vsel %vm290, %v2438, 0
    %v2521 = vsel %vm290, %v2440, 0
    %v2523 = vsel %vm290, %v2442, 0
    %v2525 = vsel %vm290, %v2444, 0
    %v2527 = vsel %vm290, %v2446, 0
    %v2529 = vsel %vm290, %v2448, 0
    %v2531 = vsel %vm290, %v2451, 0
    %v2533 = vsel %vm290, %v2453, 0
    %v2535 = vsel %vm290, %v2455, 0
    %v2537 = vsel %vm290, %v2457, 0
    %v2539 = vsel %vm290, %v2459, 0
    %v2541 = vsel %vm290, %v2461, 0
    %v2543 = vsel %vm290, %v2463, 0
    %v2545 = vsel %vm290, %v2465, 0
    %v2547 = vsel %vm290, %v2467, 0
    %v2549 = vsel %vm290, %v2469, 0
    %v2551 = vsel %vm290, %v2472, 0
    %v2553 = vsel %vm290, %v2474, 0
    %v2555 = vsel %vm290, %v2476, 0
    %v2557 = vsel %vm290, %v2478, 0
    %v2559 = vsel %vm290, %v2480, 0
    %v2561 = vsel %vm290, %v2482, 0
    %v2563 = vsel %vm290, %v2484, 0
    %v2565 = vsel %vm290, %v2486, 0
    %v2567 = vsel %vm290, %v2488, 0
    %v2569 = vsel %vm290, %v2490, 0
    %v2572 = vsel %vm371, %v155, 0
    %2574 = vmatprep.subr.mxu0 0.0
    %2575 = vmatpush1.msra.mxu0 0.0
    %2576 = vmatprep.subr.mxu0 0.0
    %2577 = vmatpush1.msra.mxu0 0.0
    %2578 = vmatprep.subr.mxu0 0.0
    %2579 = vmatpush1.msra.mxu0 0.0
    %2580 = vmatprep.subr.mxu0 0.0
    %2581 = vmatpush1.msra.mxu0 0.0
    %2582 = vmatprep.subr.mxu0 0.0
    %2583 = vmatpush1.msra.mxu0 0.0
    %2584 = vmatprep.subr.mxu0 0.0
    %2585 = vmatpush1.msra.mxu0 0.0
    %2586 = vmatprep.subr.mxu0 0.0
    %2587 = vmatpush1.msra.mxu0 0.0
    %2588 = vmatprep.subr.mxu0 0.0
    %2589 = vmatpush1.msra.mxu0 0.0
    %2590 = vmatprep.subr.mxu0 0.0
    %2591 = vmatpush1.msra.mxu0 0.0
    %2592 = vmatprep.subr.mxu0 0.0
    %2593 = vmatpush1.msra.mxu0 0.0
    %2594 = vmatprep.subr.mxu0 0.0
    %2595 = vmatpush1.msra.mxu0 0.0
    %2596 = vmatprep.subr.mxu0 0.0
    %2597 = vmatpush1.msra.mxu0 0.0
    %2598 = vmatprep.subr.mxu0 0.0
    %2599 = vmatpush1.msra.mxu0 0.0
    %2600 = vmatprep.subr.mxu0 0.0
    %2601 = vmatpush1.msra.mxu0 0.0
    %2602 = vmatprep.subr.mxu0 0.0
    %2603 = vmatpush1.msra.mxu0 0.0
    %2604 = vmatprep.subr.mxu0 0.0
    %2605 = vmatpush1.msra.mxu0 %v2572
    %2606 = vmatprep.subr.mxu0 0.0
    %2607 = vmatpush2.msra.mxu0 0.0
    %2608 = vmatprep.subr.mxu0 0.0
    %2609 = vmatpush2.msra.mxu0 0.0
    %2610 = vmatprep.subr.mxu0 0.0
    %2611 = vmatpush2.msra.mxu0 0.0
    %2612 = vmatprep.subr.mxu0 0.0
    %2613 = vmatpush2.msra.mxu0 0.0
    %2614 = vmatprep.subr.mxu0 0.0
    %2615 = vmatpush2.msra.mxu0 0.0
    %2616 = vmatprep.subr.mxu0 0.0
    %2617 = vmatpush2.msra.mxu0 0.0
    %2618 = vmatprep.subr.mxu0 0.0
    %2619 = vmatpush2.msra.mxu0 0.0
    %2620 = vmatprep.subr.mxu0 0.0
    %2621 = vmatpush2.msra.mxu0 0.0
    %2622 = vmatprep.subr.mxu0 0.0
    %2623 = vmatpush2.msra.mxu0 0.0
    %2624 = vmatprep.subr.mxu0 0.0
    %2625 = vmatpush2.msra.mxu0 0.0
    %2626 = vmatprep.subr.mxu0 0.0
    %2627 = vmatpush2.msra.mxu0 0.0
    %2628 = vmatprep.subr.mxu0 0.0
    %2629 = vmatpush2.msra.mxu0 0.0
    %2630 = vmatprep.subr.mxu0 0.0
    %2631 = vmatpush2.msra.mxu0 0.0
    %2632 = vmatprep.subr.mxu0 0.0
    %2633 = vmatpush2.msra.mxu0 0.0
    %2634 = vmatprep.subr.mxu0 0.0
    %2635 = vmatpush2.msra.mxu0 0.0
    %2636 = vmatprep.subr.mxu0 0.0
    %2637 = vmatpush2.msra.mxu0 0.0
    %2638 = vmatprep.mubr.f32.mxu0 0.0
    %2639 = vmatmul.mubr.f32.gmra.mxu0 %v2491
    %v2640 = vpop.f32.mrf.mxu0
    %v2641 = vadd.f32 0.0, %v2640
    %v2642 = vpop.f32.mrf.mxu0
    %2643 = vmatprep.mubr.f32.mxu0 0.0
    %2644 = vmatmul.mubr.f32.gmra.mxu0 %v2493
    %v2645 = vpop.f32.mrf.mxu0
    %v2646 = vadd.f32 0.0, %v2645
    %v2647 = vpop.f32.mrf.mxu0
    %2648 = vmatprep.mubr.f32.mxu0 0.0
    %2649 = vmatmul.mubr.f32.gmra.mxu0 %v2495
    %v2650 = vpop.f32.mrf.mxu0
    %v2651 = vadd.f32 0.0, %v2650
    %v2652 = vpop.f32.mrf.mxu0
    %2653 = vmatprep.mubr.f32.mxu0 0.0
    %2654 = vmatmul.mubr.f32.gmra.mxu0 %v2497
    %v2655 = vpop.f32.mrf.mxu0
    %v2656 = vadd.f32 0.0, %v2655
    %v2657 = vpop.f32.mrf.mxu0
    %2658 = vmatprep.mubr.f32.mxu0 0.0
    %2659 = vmatmul.mubr.f32.gmra.mxu0 %v2499
    %v2660 = vpop.f32.mrf.mxu0
    %v2661 = vadd.f32 0.0, %v2660
    %v2662 = vpop.f32.mrf.mxu0
    %2663 = vmatprep.mubr.f32.mxu0 0.0
    %2664 = vmatmul.mubr.f32.gmra.mxu0 %v2501
    %v2665 = vpop.f32.mrf.mxu0
    %v2666 = vadd.f32 0.0, %v2665
    %v2667 = vpop.f32.mrf.mxu0
    %2668 = vmatprep.mubr.f32.mxu0 0.0
    %2669 = vmatmul.mubr.f32.gmra.mxu0 %v2503
    %v2670 = vpop.f32.mrf.mxu0
    %v2671 = vadd.f32 0.0, %v2670
    %v2672 = vpop.f32.mrf.mxu0
    %2673 = vmatprep.mubr.f32.mxu0 0.0
    %2674 = vmatmul.mubr.f32.gmra.mxu0 %v2505
    %v2675 = vpop.f32.mrf.mxu0
    %v2676 = vadd.f32 0.0, %v2675
    %v2677 = vpop.f32.mrf.mxu0
    %2678 = vmatprep.mubr.f32.mxu0 0.0
    %2679 = vmatmul.mubr.f32.gmra.mxu0 %v2507
    %v2680 = vpop.f32.mrf.mxu0
    %v2681 = vadd.f32 0.0, %v2680
    %v2682 = vpop.f32.mrf.mxu0
    %2683 = vmatprep.mubr.f32.mxu0 0.0
    %2684 = vmatmul.mubr.f32.gmra.mxu0 %v2509
    %v2685 = vpop.f32.mrf.mxu0
    %v2686 = vadd.f32 0.0, %v2685
    %v2687 = vpop.f32.mrf.mxu0
    %2688 = vmatprep.mubr.f32.mxu0 0.0
    %2689 = vmatmul.mubr.f32.gmra.mxu0 %v2511
    %v2690 = vpop.f32.mrf.mxu0
    %v2691 = vadd.f32 0.0, %v2690
    %v2692 = vpop.f32.mrf.mxu0
    %2693 = vmatprep.mubr.f32.mxu0 0.0
    %2694 = vmatmul.mubr.f32.gmra.mxu0 %v2513
    %v2695 = vpop.f32.mrf.mxu0
    %v2696 = vadd.f32 0.0, %v2695
    %v2697 = vpop.f32.mrf.mxu0
    %2698 = vmatprep.mubr.f32.mxu0 0.0
    %2699 = vmatmul.mubr.f32.gmra.mxu0 %v2515
    %v2700 = vpop.f32.mrf.mxu0
    %v2701 = vadd.f32 0.0, %v2700
    %v2702 = vpop.f32.mrf.mxu0
    %2703 = vmatprep.mubr.f32.mxu0 0.0
    %2704 = vmatmul.mubr.f32.gmra.mxu0 %v2517
    %v2705 = vpop.f32.mrf.mxu0
    %v2706 = vadd.f32 0.0, %v2705
    %v2707 = vpop.f32.mrf.mxu0
    %2708 = vmatprep.mubr.f32.mxu0 0.0
    %2709 = vmatmul.mubr.f32.gmra.mxu0 %v2519
    %v2710 = vpop.f32.mrf.mxu0
    %v2711 = vadd.f32 0.0, %v2710
    %v2712 = vpop.f32.mrf.mxu0
    %2713 = vmatprep.mubr.f32.mxu0 0.0
    %2714 = vmatmul.mubr.f32.gmra.mxu0 %v2521
    %v2715 = vpop.f32.mrf.mxu0
    %v2716 = vadd.f32 0.0, %v2715
    %v2717 = vpop.f32.mrf.mxu0
    %2718 = vmatprep.mubr.f32.mxu0 0.0
    %2719 = vmatmul.mubr.f32.gmra.mxu0 %v2523
    %v2720 = vpop.f32.mrf.mxu0
    %v2721 = vadd.f32 0.0, %v2720
    %v2722 = vpop.f32.mrf.mxu0
    %2723 = vmatprep.mubr.f32.mxu0 0.0
    %2724 = vmatmul.mubr.f32.gmra.mxu0 %v2525
    %v2725 = vpop.f32.mrf.mxu0
    %v2726 = vadd.f32 0.0, %v2725
    %v2727 = vpop.f32.mrf.mxu0
    %2728 = vmatprep.mubr.f32.mxu0 0.0
    %2729 = vmatmul.mubr.f32.gmra.mxu0 %v2527
    %v2730 = vpop.f32.mrf.mxu0
    %v2731 = vadd.f32 0.0, %v2730
    %v2732 = vpop.f32.mrf.mxu0
    %2733 = vmatprep.mubr.f32.mxu0 0.0
    %2734 = vmatmul.mubr.f32.gmra.mxu0 %v2529
    %v2735 = vpop.f32.mrf.mxu0
    %v2736 = vadd.f32 0.0, %v2735
    %v2737 = vpop.f32.mrf.mxu0
    %2738 = vmatprep.mubr.f32.mxu0 0.0
    %2739 = vmatmul.mubr.f32.gmra.mxu0 %v2531
    %v2740 = vpop.f32.mrf.mxu0
    %v2741 = vadd.f32 0.0, %v2740
    %v2742 = vpop.f32.mrf.mxu0
    %2743 = vmatprep.mubr.f32.mxu0 0.0
    %2744 = vmatmul.mubr.f32.gmra.mxu0 %v2533
    %v2745 = vpop.f32.mrf.mxu0
    %v2746 = vadd.f32 0.0, %v2745
    %v2747 = vpop.f32.mrf.mxu0
    %2748 = vmatprep.mubr.f32.mxu0 0.0
    %2749 = vmatmul.mubr.f32.gmra.mxu0 %v2535
    %v2750 = vpop.f32.mrf.mxu0
    %v2751 = vadd.f32 0.0, %v2750
    %v2752 = vpop.f32.mrf.mxu0
    %2753 = vmatprep.mubr.f32.mxu0 0.0
    %2754 = vmatmul.mubr.f32.gmra.mxu0 %v2537
    %v2755 = vpop.f32.mrf.mxu0
    %v2756 = vadd.f32 0.0, %v2755
    %v2757 = vpop.f32.mrf.mxu0
    %2758 = vmatprep.mubr.f32.mxu0 0.0
    %2759 = vmatmul.mubr.f32.gmra.mxu0 %v2539
    %v2760 = vpop.f32.mrf.mxu0
    %v2761 = vadd.f32 0.0, %v2760
    %v2762 = vpop.f32.mrf.mxu0
    %2763 = vmatprep.mubr.f32.mxu0 0.0
    %2764 = vmatmul.mubr.f32.gmra.mxu0 %v2541
    %v2765 = vpop.f32.mrf.mxu0
    %v2766 = vadd.f32 0.0, %v2765
    %v2767 = vpop.f32.mrf.mxu0
    %2768 = vmatprep.mubr.f32.mxu0 0.0
    %2769 = vmatmul.mubr.f32.gmra.mxu0 %v2543
    %v2770 = vpop.f32.mrf.mxu0
    %v2771 = vadd.f32 0.0, %v2770
    %v2772 = vpop.f32.mrf.mxu0
    %2773 = vmatprep.mubr.f32.mxu0 0.0
    %2774 = vmatmul.mubr.f32.gmra.mxu0 %v2545
    %v2775 = vpop.f32.mrf.mxu0
    %v2776 = vadd.f32 0.0, %v2775
    %v2777 = vpop.f32.mrf.mxu0
    %2778 = vmatprep.mubr.f32.mxu0 0.0
    %2779 = vmatmul.mubr.f32.gmra.mxu0 %v2547
    %v2780 = vpop.f32.mrf.mxu0
    %v2781 = vadd.f32 0.0, %v2780
    %v2782 = vpop.f32.mrf.mxu0
    %2783 = vmatprep.mubr.f32.mxu0 0.0
    %2784 = vmatmul.mubr.f32.gmra.mxu0 %v2549
    %v2785 = vpop.f32.mrf.mxu0
    %v2786 = vadd.f32 0.0, %v2785
    %v2787 = vpop.f32.mrf.mxu0
    %2788 = vmatprep.mubr.f32.mxu0 0.0
    %2789 = vmatmul.mubr.f32.gmra.mxu0 %v2551
    %v2790 = vpop.f32.mrf.mxu0
    %v2791 = vadd.f32 0.0, %v2790
    %v2792 = vpop.f32.mrf.mxu0
    %2793 = vmatprep.mubr.f32.mxu0 0.0
    %2794 = vmatmul.mubr.f32.gmra.mxu0 %v2553
    %v2795 = vpop.f32.mrf.mxu0
    %v2796 = vadd.f32 0.0, %v2795
    %v2797 = vpop.f32.mrf.mxu0
    %2798 = vmatprep.mubr.f32.mxu0 0.0
    %2799 = vmatmul.mubr.f32.gmra.mxu0 %v2555
    %v2800 = vpop.f32.mrf.mxu0
    %v2801 = vadd.f32 0.0, %v2800
    %v2802 = vpop.f32.mrf.mxu0
    %2803 = vmatprep.mubr.f32.mxu0 0.0
    %2804 = vmatmul.mubr.f32.gmra.mxu0 %v2557
    %v2805 = vpop.f32.mrf.mxu0
    %v2806 = vadd.f32 0.0, %v2805
    %v2807 = vpop.f32.mrf.mxu0
    %2808 = vmatprep.mubr.f32.mxu0 0.0
    %2809 = vmatmul.mubr.f32.gmra.mxu0 %v2559
    %v2810 = vpop.f32.mrf.mxu0
    %v2811 = vadd.f32 0.0, %v2810
    %v2812 = vpop.f32.mrf.mxu0
    %2813 = vmatprep.mubr.f32.mxu0 0.0
    %2814 = vmatmul.mubr.f32.gmra.mxu0 %v2561
    %v2815 = vpop.f32.mrf.mxu0
    %v2816 = vadd.f32 0.0, %v2815
    %v2817 = vpop.f32.mrf.mxu0
    %2818 = vmatprep.mubr.f32.mxu0 0.0
    %2819 = vmatmul.mubr.f32.gmra.mxu0 %v2563
    %v2820 = vpop.f32.mrf.mxu0
    %v2821 = vadd.f32 0.0, %v2820
    %v2822 = vpop.f32.mrf.mxu0
    %2823 = vmatprep.mubr.f32.mxu0 0.0
    %2824 = vmatmul.mubr.f32.gmra.mxu0 %v2565
    %v2825 = vpop.f32.mrf.mxu0
    %v2826 = vadd.f32 0.0, %v2825
    %v2827 = vpop.f32.mrf.mxu0
    %2828 = vmatprep.mubr.f32.mxu0 0.0
    %2829 = vmatmul.mubr.f32.gmra.mxu0 %v2567
    %v2830 = vpop.f32.mrf.mxu0
    %v2831 = vadd.f32 0.0, %v2830
    %v2832 = vpop.f32.mrf.mxu0
    %2833 = vmatprep.mubr.f32.mxu0 0.0
    %2834 = vmatmul.mubr.f32.gmra.mxu0 %v2569
    %v2835 = vpop.f32.mrf.mxu0
    %v2836 = vadd.f32 0.0, %v2835
    %v2837 = vpop.f32.mrf.mxu0
    %2838 = vdwg.mxu0
    %v2839 = vadd.f32 %v2366, %v2641
    %v2840 = vadd.f32 %v2367, %v2646
    %v2841 = vadd.f32 %v2368, %v2651
    %v2842 = vadd.f32 %v2369, %v2656
    %v2843 = vadd.f32 %v2370, %v2661
    %v2844 = vadd.f32 %v2371, %v2666
    %v2845 = vadd.f32 %v2372, %v2671
    %v2846 = vadd.f32 %v2373, %v2676
    %v2847 = vadd.f32 %v2374, %v2681
    %v2848 = vadd.f32 %v2375, %v2686
    %v2849 = vadd.f32 %v2376, %v2691
    %v2850 = vadd.f32 %v2377, %v2696
    %v2851 = vadd.f32 %v2378, %v2701
    %v2852 = vadd.f32 %v2379, %v2706
    %v2853 = vadd.f32 %v2380, %v2711
    %v2854 = vadd.f32 %v2381, %v2716
    %v2855 = vadd.f32 %v2382, %v2721
    %v2856 = vadd.f32 %v2383, %v2726
    %v2857 = vadd.f32 %v2384, %v2731
    %v2858 = vadd.f32 %v2385, %v2736
    %v2859 = vadd.f32 %v2386, %v2741
    %v2860 = vadd.f32 %v2387, %v2746
    %v2861 = vadd.f32 %v2388, %v2751
    %v2862 = vadd.f32 %v2389, %v2756
    %v2863 = vadd.f32 %v2390, %v2761
    %v2864 = vadd.f32 %v2391, %v2766
    %v2865 = vadd.f32 %v2392, %v2771
    %v2866 = vadd.f32 %v2393, %v2776
    %v2867 = vadd.f32 %v2394, %v2781
    %v2868 = vadd.f32 %v2395, %v2786
    %v2869 = vadd.f32 %v2396, %v2791
    %v2870 = vadd.f32 %v2397, %v2796
    %v2871 = vadd.f32 %v2398, %v2801
    %v2872 = vadd.f32 %v2399, %v2806
    %v2873 = vadd.f32 %v2400, %v2811
    %v2874 = vadd.f32 %v2401, %v2816
    %v2875 = vadd.f32 %v2402, %v2821
    %v2876 = vadd.f32 %v2403, %v2826
    %v2877 = vadd.f32 %v2404, %v2831
    %v2878 = vadd.f32 %v2405, %v2836
    %vm2879 = vcmask 1041408
    %v2880 = vrot.slane %v38, 6
    %v2881 = vrot.slane %v39, 6
    %v2882 = vsel %vm2879, %v2880, %v2881
    %v2883 = vrot.slane %v40, 6
    %v2884 = vsel %vm2879, %v2881, %v2883
    %v2885 = vrot.slane %v41, 6
    %v2886 = vsel %vm2879, %v2883, %v2885
    %v2887 = vrot.slane %v42, 6
    %v2888 = vsel %vm2879, %v2885, %v2887
    %v2889 = vrot.slane %v43, 6
    %v2890 = vsel %vm2879, %v2887, %v2889
    %v2891 = vrot.slane %v44, 6
    %v2892 = vsel %vm2879, %v2889, %v2891
    %v2893 = vrot.slane %v45, 6
    %v2894 = vsel %vm2879, %v2891, %v2893
    %v2895 = vrot.slane %v46, 6
    %v2896 = vsel %vm2879, %v2893, %v2895
    %v2897 = vrot.slane %v47, 6
    %v2898 = vsel %vm2879, %v2895, %v2897
    %v2899 = vrot.slane %v48, 6
    %v2900 = vsel %vm2879, %v2897, %v2899
    %v2901 = vrot.slane %v70, 6
    %v2902 = vrot.slane %v71, 6
    %v2903 = vsel %vm2879, %v2901, %v2902
    %v2904 = vrot.slane %v72, 6
    %v2905 = vsel %vm2879, %v2902, %v2904
    %v2906 = vrot.slane %v73, 6
    %v2907 = vsel %vm2879, %v2904, %v2906
    %v2908 = vrot.slane %v74, 6
    %v2909 = vsel %vm2879, %v2906, %v2908
    %v2910 = vrot.slane %v75, 6
    %v2911 = vsel %vm2879, %v2908, %v2910
    %v2912 = vrot.slane %v76, 6
    %v2913 = vsel %vm2879, %v2910, %v2912
    %v2914 = vrot.slane %v77, 6
    %v2915 = vsel %vm2879, %v2912, %v2914
    %v2916 = vrot.slane %v78, 6
    %v2917 = vsel %vm2879, %v2914, %v2916
    %v2918 = vrot.slane %v79, 6
    %v2919 = vsel %vm2879, %v2916, %v2918
    %v2920 = vrot.slane %v80, 6
    %v2921 = vsel %vm2879, %v2918, %v2920
    %v2922 = vrot.slane %v102, 6
    %v2923 = vrot.slane %v103, 6
    %v2924 = vsel %vm2879, %v2922, %v2923
    %v2925 = vrot.slane %v104, 6
    %v2926 = vsel %vm2879, %v2923, %v2925
    %v2927 = vrot.slane %v105, 6
    %v2928 = vsel %vm2879, %v2925, %v2927
    %v2929 = vrot.slane %v106, 6
    %v2930 = vsel %vm2879, %v2927, %v2929
    %v2931 = vrot.slane %v107, 6
    %v2932 = vsel %vm2879, %v2929, %v2931
    %v2933 = vrot.slane %v108, 6
    %v2934 = vsel %vm2879, %v2931, %v2933
    %v2935 = vrot.slane %v109, 6
    %v2936 = vsel %vm2879, %v2933, %v2935
    %v2937 = vrot.slane %v110, 6
    %v2938 = vsel %vm2879, %v2935, %v2937
    %v2939 = vrot.slane %v111, 6
    %v2940 = vsel %vm2879, %v2937, %v2939
    %v2941 = vrot.slane %v112, 6
    %v2942 = vsel %vm2879, %v2939, %v2941
    %v2943 = vrot.slane %v134, 6
    %v2944 = vrot.slane %v135, 6
    %v2945 = vsel %vm2879, %v2943, %v2944
    %v2946 = vrot.slane %v136, 6
    %v2947 = vsel %vm2879, %v2944, %v2946
    %v2948 = vrot.slane %v137, 6
    %v2949 = vsel %vm2879, %v2946, %v2948
    %v2950 = vrot.slane %v138, 6
    %v2951 = vsel %vm2879, %v2948, %v2950
    %v2952 = vrot.slane %v139, 6
    %v2953 = vsel %vm2879, %v2950, %v2952
    %v2954 = vrot.slane %v140, 6
    %v2955 = vsel %vm2879, %v2952, %v2954
    %v2956 = vrot.slane %v141, 6
    %v2957 = vsel %vm2879, %v2954, %v2956
    %v2958 = vrot.slane %v142, 6
    %v2959 = vsel %vm2879, %v2956, %v2958
    %v2960 = vrot.slane %v143, 6
    %v2961 = vsel %vm2879, %v2958, %v2960
    %v2962 = vrot.slane %v144, 6
    %v2963 = vsel %vm2879, %v2960, %v2962
    %v2964 = vsel %vm290, %v2882, 0
    %v2966 = vsel %vm290, %v2884, 0
    %v2968 = vsel %vm290, %v2886, 0
    %v2970 = vsel %vm290, %v2888, 0
    %v2972 = vsel %vm290, %v2890, 0
    %v2974 = vsel %vm290, %v2892, 0
    %v2976 = vsel %vm290, %v2894, 0
    %v2978 = vsel %vm290, %v2896, 0
    %v2980 = vsel %vm290, %v2898, 0
    %v2982 = vsel %vm290, %v2900, 0
    %v2984 = vsel %vm290, %v2903, 0
    %v2986 = vsel %vm290, %v2905, 0
    %v2988 = vsel %vm290, %v2907, 0
    %v2990 = vsel %vm290, %v2909, 0
    %v2992 = vsel %vm290, %v2911, 0
    %v2994 = vsel %vm290, %v2913, 0
    %v2996 = vsel %vm290, %v2915, 0
    %v2998 = vsel %vm290, %v2917, 0
    %v3000 = vsel %vm290, %v2919, 0
    %v3002 = vsel %vm290, %v2921, 0
    %v3004 = vsel %vm290, %v2924, 0
    %v3006 = vsel %vm290, %v2926, 0
    %v3008 = vsel %vm290, %v2928, 0
    %v3010 = vsel %vm290, %v2930, 0
    %v3012 = vsel %vm290, %v2932, 0
    %v3014 = vsel %vm290, %v2934, 0
    %v3016 = vsel %vm290, %v2936, 0
    %v3018 = vsel %vm290, %v2938, 0
    %v3020 = vsel %vm290, %v2940, 0
    %v3022 = vsel %vm290, %v2942, 0
    %v3024 = vsel %vm290, %v2945, 0
    %v3026 = vsel %vm290, %v2947, 0
    %v3028 = vsel %vm290, %v2949, 0
    %v3030 = vsel %vm290, %v2951, 0
    %v3032 = vsel %vm290, %v2953, 0
    %v3034 = vsel %vm290, %v2955, 0
    %v3036 = vsel %vm290, %v2957, 0
    %v3038 = vsel %vm290, %v2959, 0
    %v3040 = vsel %vm290, %v2961, 0
    %v3042 = vsel %vm290, %v2963, 0
    %v3045 = vsel %vm371, %v156, 0
    %3047 = vmatprep.subr.mxu0 0.0
    %3048 = vmatpush1.msra.mxu0 0.0
    %3049 = vmatprep.subr.mxu0 0.0
    %3050 = vmatpush1.msra.mxu0 0.0
    %3051 = vmatprep.subr.mxu0 0.0
    %3052 = vmatpush1.msra.mxu0 0.0
    %3053 = vmatprep.subr.mxu0 0.0
    %3054 = vmatpush1.msra.mxu0 0.0
    %3055 = vmatprep.subr.mxu0 0.0
    %3056 = vmatpush1.msra.mxu0 0.0
    %3057 = vmatprep.subr.mxu0 0.0
    %3058 = vmatpush1.msra.mxu0 0.0
    %3059 = vmatprep.subr.mxu0 0.0
    %3060 = vmatpush1.msra.mxu0 0.0
    %3061 = vmatprep.subr.mxu0 0.0
    %3062 = vmatpush1.msra.mxu0 0.0
    %3063 = vmatprep.subr.mxu0 0.0
    %3064 = vmatpush1.msra.mxu0 0.0
    %3065 = vmatprep.subr.mxu0 0.0
    %3066 = vmatpush1.msra.mxu0 0.0
    %3067 = vmatprep.subr.mxu0 0.0
    %3068 = vmatpush1.msra.mxu0 0.0
    %3069 = vmatprep.subr.mxu0 0.0
    %3070 = vmatpush1.msra.mxu0 0.0
    %3071 = vmatprep.subr.mxu0 0.0
    %3072 = vmatpush1.msra.mxu0 0.0
    %3073 = vmatprep.subr.mxu0 0.0
    %3074 = vmatpush1.msra.mxu0 0.0
    %3075 = vmatprep.subr.mxu0 0.0
    %3076 = vmatpush1.msra.mxu0 0.0
    %3077 = vmatprep.subr.mxu0 0.0
    %3078 = vmatpush1.msra.mxu0 %v3045
    %3079 = vmatprep.subr.mxu0 0.0
    %3080 = vmatpush2.msra.mxu0 0.0
    %3081 = vmatprep.subr.mxu0 0.0
    %3082 = vmatpush2.msra.mxu0 0.0
    %3083 = vmatprep.subr.mxu0 0.0
    %3084 = vmatpush2.msra.mxu0 0.0
    %3085 = vmatprep.subr.mxu0 0.0
    %3086 = vmatpush2.msra.mxu0 0.0
    %3087 = vmatprep.subr.mxu0 0.0
    %3088 = vmatpush2.msra.mxu0 0.0
    %3089 = vmatprep.subr.mxu0 0.0
    %3090 = vmatpush2.msra.mxu0 0.0
    %3091 = vmatprep.subr.mxu0 0.0
    %3092 = vmatpush2.msra.mxu0 0.0
    %3093 = vmatprep.subr.mxu0 0.0
    %3094 = vmatpush2.msra.mxu0 0.0
    %3095 = vmatprep.subr.mxu0 0.0
    %3096 = vmatpush2.msra.mxu0 0.0
    %3097 = vmatprep.subr.mxu0 0.0
    %3098 = vmatpush2.msra.mxu0 0.0
    %3099 = vmatprep.subr.mxu0 0.0
    %3100 = vmatpush2.msra.mxu0 0.0
    %3101 = vmatprep.subr.mxu0 0.0
    %3102 = vmatpush2.msra.mxu0 0.0
    %3103 = vmatprep.subr.mxu0 0.0
    %3104 = vmatpush2.msra.mxu0 0.0
    %3105 = vmatprep.subr.mxu0 0.0
    %3106 = vmatpush2.msra.mxu0 0.0
    %3107 = vmatprep.subr.mxu0 0.0
    %3108 = vmatpush2.msra.mxu0 0.0
    %3109 = vmatprep.subr.mxu0 0.0
    %3110 = vmatpush2.msra.mxu0 0.0
    %3111 = vmatprep.mubr.f32.mxu0 0.0
    %3112 = vmatmul.mubr.f32.gmra.mxu0 %v2964
    %v3113 = vpop.f32.mrf.mxu0
    %v3114 = vadd.f32 0.0, %v3113
    %v3115 = vpop.f32.mrf.mxu0
    %3116 = vmatprep.mubr.f32.mxu0 0.0
    %3117 = vmatmul.mubr.f32.gmra.mxu0 %v2966
    %v3118 = vpop.f32.mrf.mxu0
    %v3119 = vadd.f32 0.0, %v3118
    %v3120 = vpop.f32.mrf.mxu0
    %3121 = vmatprep.mubr.f32.mxu0 0.0
    %3122 = vmatmul.mubr.f32.gmra.mxu0 %v2968
    %v3123 = vpop.f32.mrf.mxu0
    %v3124 = vadd.f32 0.0, %v3123
    %v3125 = vpop.f32.mrf.mxu0
    %3126 = vmatprep.mubr.f32.mxu0 0.0
    %3127 = vmatmul.mubr.f32.gmra.mxu0 %v2970
    %v3128 = vpop.f32.mrf.mxu0
    %v3129 = vadd.f32 0.0, %v3128
    %v3130 = vpop.f32.mrf.mxu0
    %3131 = vmatprep.mubr.f32.mxu0 0.0
    %3132 = vmatmul.mubr.f32.gmra.mxu0 %v2972
    %v3133 = vpop.f32.mrf.mxu0
    %v3134 = vadd.f32 0.0, %v3133
    %v3135 = vpop.f32.mrf.mxu0
    %3136 = vmatprep.mubr.f32.mxu0 0.0
    %3137 = vmatmul.mubr.f32.gmra.mxu0 %v2974
    %v3138 = vpop.f32.mrf.mxu0
    %v3139 = vadd.f32 0.0, %v3138
    %v3140 = vpop.f32.mrf.mxu0
    %3141 = vmatprep.mubr.f32.mxu0 0.0
    %3142 = vmatmul.mubr.f32.gmra.mxu0 %v2976
    %v3143 = vpop.f32.mrf.mxu0
    %v3144 = vadd.f32 0.0, %v3143
    %v3145 = vpop.f32.mrf.mxu0
    %3146 = vmatprep.mubr.f32.mxu0 0.0
    %3147 = vmatmul.mubr.f32.gmra.mxu0 %v2978
    %v3148 = vpop.f32.mrf.mxu0
    %v3149 = vadd.f32 0.0, %v3148
    %v3150 = vpop.f32.mrf.mxu0
    %3151 = vmatprep.mubr.f32.mxu0 0.0
    %3152 = vmatmul.mubr.f32.gmra.mxu0 %v2980
    %v3153 = vpop.f32.mrf.mxu0
    %v3154 = vadd.f32 0.0, %v3153
    %v3155 = vpop.f32.mrf.mxu0
    %3156 = vmatprep.mubr.f32.mxu0 0.0
    %3157 = vmatmul.mubr.f32.gmra.mxu0 %v2982
    %v3158 = vpop.f32.mrf.mxu0
    %v3159 = vadd.f32 0.0, %v3158
    %v3160 = vpop.f32.mrf.mxu0
    %3161 = vmatprep.mubr.f32.mxu0 0.0
    %3162 = vmatmul.mubr.f32.gmra.mxu0 %v2984
    %v3163 = vpop.f32.mrf.mxu0
    %v3164 = vadd.f32 0.0, %v3163
    %v3165 = vpop.f32.mrf.mxu0
    %3166 = vmatprep.mubr.f32.mxu0 0.0
    %3167 = vmatmul.mubr.f32.gmra.mxu0 %v2986
    %v3168 = vpop.f32.mrf.mxu0
    %v3169 = vadd.f32 0.0, %v3168
    %v3170 = vpop.f32.mrf.mxu0
    %3171 = vmatprep.mubr.f32.mxu0 0.0
    %3172 = vmatmul.mubr.f32.gmra.mxu0 %v2988
    %v3173 = vpop.f32.mrf.mxu0
    %v3174 = vadd.f32 0.0, %v3173
    %v3175 = vpop.f32.mrf.mxu0
    %3176 = vmatprep.mubr.f32.mxu0 0.0
    %3177 = vmatmul.mubr.f32.gmra.mxu0 %v2990
    %v3178 = vpop.f32.mrf.mxu0
    %v3179 = vadd.f32 0.0, %v3178
    %v3180 = vpop.f32.mrf.mxu0
    %3181 = vmatprep.mubr.f32.mxu0 0.0
    %3182 = vmatmul.mubr.f32.gmra.mxu0 %v2992
    %v3183 = vpop.f32.mrf.mxu0
    %v3184 = vadd.f32 0.0, %v3183
    %v3185 = vpop.f32.mrf.mxu0
    %3186 = vmatprep.mubr.f32.mxu0 0.0
    %3187 = vmatmul.mubr.f32.gmra.mxu0 %v2994
    %v3188 = vpop.f32.mrf.mxu0
    %v3189 = vadd.f32 0.0, %v3188
    %v3190 = vpop.f32.mrf.mxu0
    %3191 = vmatprep.mubr.f32.mxu0 0.0
    %3192 = vmatmul.mubr.f32.gmra.mxu0 %v2996
    %v3193 = vpop.f32.mrf.mxu0
    %v3194 = vadd.f32 0.0, %v3193
    %v3195 = vpop.f32.mrf.mxu0
    %3196 = vmatprep.mubr.f32.mxu0 0.0
    %3197 = vmatmul.mubr.f32.gmra.mxu0 %v2998
    %v3198 = vpop.f32.mrf.mxu0
    %v3199 = vadd.f32 0.0, %v3198
    %v3200 = vpop.f32.mrf.mxu0
    %3201 = vmatprep.mubr.f32.mxu0 0.0
    %3202 = vmatmul.mubr.f32.gmra.mxu0 %v3000
    %v3203 = vpop.f32.mrf.mxu0
    %v3204 = vadd.f32 0.0, %v3203
    %v3205 = vpop.f32.mrf.mxu0
    %3206 = vmatprep.mubr.f32.mxu0 0.0
    %3207 = vmatmul.mubr.f32.gmra.mxu0 %v3002
    %v3208 = vpop.f32.mrf.mxu0
    %v3209 = vadd.f32 0.0, %v3208
    %v3210 = vpop.f32.mrf.mxu0
    %3211 = vmatprep.mubr.f32.mxu0 0.0
    %3212 = vmatmul.mubr.f32.gmra.mxu0 %v3004
    %v3213 = vpop.f32.mrf.mxu0
    %v3214 = vadd.f32 0.0, %v3213
    %v3215 = vpop.f32.mrf.mxu0
    %3216 = vmatprep.mubr.f32.mxu0 0.0
    %3217 = vmatmul.mubr.f32.gmra.mxu0 %v3006
    %v3218 = vpop.f32.mrf.mxu0
    %v3219 = vadd.f32 0.0, %v3218
    %v3220 = vpop.f32.mrf.mxu0
    %3221 = vmatprep.mubr.f32.mxu0 0.0
    %3222 = vmatmul.mubr.f32.gmra.mxu0 %v3008
    %v3223 = vpop.f32.mrf.mxu0
    %v3224 = vadd.f32 0.0, %v3223
    %v3225 = vpop.f32.mrf.mxu0
    %3226 = vmatprep.mubr.f32.mxu0 0.0
    %3227 = vmatmul.mubr.f32.gmra.mxu0 %v3010
    %v3228 = vpop.f32.mrf.mxu0
    %v3229 = vadd.f32 0.0, %v3228
    %v3230 = vpop.f32.mrf.mxu0
    %3231 = vmatprep.mubr.f32.mxu0 0.0
    %3232 = vmatmul.mubr.f32.gmra.mxu0 %v3012
    %v3233 = vpop.f32.mrf.mxu0
    %v3234 = vadd.f32 0.0, %v3233
    %v3235 = vpop.f32.mrf.mxu0
    %3236 = vmatprep.mubr.f32.mxu0 0.0
    %3237 = vmatmul.mubr.f32.gmra.mxu0 %v3014
    %v3238 = vpop.f32.mrf.mxu0
    %v3239 = vadd.f32 0.0, %v3238
    %v3240 = vpop.f32.mrf.mxu0
    %3241 = vmatprep.mubr.f32.mxu0 0.0
    %3242 = vmatmul.mubr.f32.gmra.mxu0 %v3016
    %v3243 = vpop.f32.mrf.mxu0
    %v3244 = vadd.f32 0.0, %v3243
    %v3245 = vpop.f32.mrf.mxu0
    %3246 = vmatprep.mubr.f32.mxu0 0.0
    %3247 = vmatmul.mubr.f32.gmra.mxu0 %v3018
    %v3248 = vpop.f32.mrf.mxu0
    %v3249 = vadd.f32 0.0, %v3248
    %v3250 = vpop.f32.mrf.mxu0
    %3251 = vmatprep.mubr.f32.mxu0 0.0
    %3252 = vmatmul.mubr.f32.gmra.mxu0 %v3020
    %v3253 = vpop.f32.mrf.mxu0
    %v3254 = vadd.f32 0.0, %v3253
    %v3255 = vpop.f32.mrf.mxu0
    %3256 = vmatprep.mubr.f32.mxu0 0.0
    %3257 = vmatmul.mubr.f32.gmra.mxu0 %v3022
    %v3258 = vpop.f32.mrf.mxu0
    %v3259 = vadd.f32 0.0, %v3258
    %v3260 = vpop.f32.mrf.mxu0
    %3261 = vmatprep.mubr.f32.mxu0 0.0
    %3262 = vmatmul.mubr.f32.gmra.mxu0 %v3024
    %v3263 = vpop.f32.mrf.mxu0
    %v3264 = vadd.f32 0.0, %v3263
    %v3265 = vpop.f32.mrf.mxu0
    %3266 = vmatprep.mubr.f32.mxu0 0.0
    %3267 = vmatmul.mubr.f32.gmra.mxu0 %v3026
    %v3268 = vpop.f32.mrf.mxu0
    %v3269 = vadd.f32 0.0, %v3268
    %v3270 = vpop.f32.mrf.mxu0
    %3271 = vmatprep.mubr.f32.mxu0 0.0
    %3272 = vmatmul.mubr.f32.gmra.mxu0 %v3028
    %v3273 = vpop.f32.mrf.mxu0
    %v3274 = vadd.f32 0.0, %v3273
    %v3275 = vpop.f32.mrf.mxu0
    %3276 = vmatprep.mubr.f32.mxu0 0.0
    %3277 = vmatmul.mubr.f32.gmra.mxu0 %v3030
    %v3278 = vpop.f32.mrf.mxu0
    %v3279 = vadd.f32 0.0, %v3278
    %v3280 = vpop.f32.mrf.mxu0
    %3281 = vmatprep.mubr.f32.mxu0 0.0
    %3282 = vmatmul.mubr.f32.gmra.mxu0 %v3032
    %v3283 = vpop.f32.mrf.mxu0
    %v3284 = vadd.f32 0.0, %v3283
    %v3285 = vpop.f32.mrf.mxu0
    %3286 = vmatprep.mubr.f32.mxu0 0.0
    %3287 = vmatmul.mubr.f32.gmra.mxu0 %v3034
    %v3288 = vpop.f32.mrf.mxu0
    %v3289 = vadd.f32 0.0, %v3288
    %v3290 = vpop.f32.mrf.mxu0
    %3291 = vmatprep.mubr.f32.mxu0 0.0
    %3292 = vmatmul.mubr.f32.gmra.mxu0 %v3036
    %v3293 = vpop.f32.mrf.mxu0
    %v3294 = vadd.f32 0.0, %v3293
    %v3295 = vpop.f32.mrf.mxu0
    %3296 = vmatprep.mubr.f32.mxu0 0.0
    %3297 = vmatmul.mubr.f32.gmra.mxu0 %v3038
    %v3298 = vpop.f32.mrf.mxu0
    %v3299 = vadd.f32 0.0, %v3298
    %v3300 = vpop.f32.mrf.mxu0
    %3301 = vmatprep.mubr.f32.mxu0 0.0
    %3302 = vmatmul.mubr.f32.gmra.mxu0 %v3040
    %v3303 = vpop.f32.mrf.mxu0
    %v3304 = vadd.f32 0.0, %v3303
    %v3305 = vpop.f32.mrf.mxu0
    %3306 = vmatprep.mubr.f32.mxu0 0.0
    %3307 = vmatmul.mubr.f32.gmra.mxu0 %v3042
    %v3308 = vpop.f32.mrf.mxu0
    %v3309 = vadd.f32 0.0, %v3308
    %v3310 = vpop.f32.mrf.mxu0
    %3311 = vdwg.mxu0
    %v3312 = vadd.f32 %v2839, %v3114
    %v3313 = vadd.f32 %v2840, %v3119
    %v3314 = vadd.f32 %v2841, %v3124
    %v3315 = vadd.f32 %v2842, %v3129
    %v3316 = vadd.f32 %v2843, %v3134
    %v3317 = vadd.f32 %v2844, %v3139
    %v3318 = vadd.f32 %v2845, %v3144
    %v3319 = vadd.f32 %v2846, %v3149
    %v3320 = vadd.f32 %v2847, %v3154
    %v3321 = vadd.f32 %v2848, %v3159
    %v3322 = vadd.f32 %v2849, %v3164
    %v3323 = vadd.f32 %v2850, %v3169
    %v3324 = vadd.f32 %v2851, %v3174
    %v3325 = vadd.f32 %v2852, %v3179
    %v3326 = vadd.f32 %v2853, %v3184
    %v3327 = vadd.f32 %v2854, %v3189
    %v3328 = vadd.f32 %v2855, %v3194
    %v3329 = vadd.f32 %v2856, %v3199
    %v3330 = vadd.f32 %v2857, %v3204
    %v3331 = vadd.f32 %v2858, %v3209
    %v3332 = vadd.f32 %v2859, %v3214
    %v3333 = vadd.f32 %v2860, %v3219
    %v3334 = vadd.f32 %v2861, %v3224
    %v3335 = vadd.f32 %v2862, %v3229
    %v3336 = vadd.f32 %v2863, %v3234
    %v3337 = vadd.f32 %v2864, %v3239
    %v3338 = vadd.f32 %v2865, %v3244
    %v3339 = vadd.f32 %v2866, %v3249
    %v3340 = vadd.f32 %v2867, %v3254
    %v3341 = vadd.f32 %v2868, %v3259
    %v3342 = vadd.f32 %v2869, %v3264
    %v3343 = vadd.f32 %v2870, %v3269
    %v3344 = vadd.f32 %v2871, %v3274
    %v3345 = vadd.f32 %v2872, %v3279
    %v3346 = vadd.f32 %v2873, %v3284
    %v3347 = vadd.f32 %v2874, %v3289
    %v3348 = vadd.f32 %v2875, %v3294
    %v3349 = vadd.f32 %v2876, %v3299
    %v3350 = vadd.f32 %v2877, %v3304
    %v3351 = vadd.f32 %v2878, %v3309
    %vm3352 = vcmask 1040384
    %v3353 = vrot.slane %v38, 7
    %v3354 = vrot.slane %v39, 7
    %v3355 = vsel %vm3352, %v3353, %v3354
    %v3356 = vrot.slane %v40, 7
    %v3357 = vsel %vm3352, %v3354, %v3356
    %v3358 = vrot.slane %v41, 7
    %v3359 = vsel %vm3352, %v3356, %v3358
    %v3360 = vrot.slane %v42, 7
    %v3361 = vsel %vm3352, %v3358, %v3360
    %v3362 = vrot.slane %v43, 7
    %v3363 = vsel %vm3352, %v3360, %v3362
    %v3364 = vrot.slane %v44, 7
    %v3365 = vsel %vm3352, %v3362, %v3364
    %v3366 = vrot.slane %v45, 7
    %v3367 = vsel %vm3352, %v3364, %v3366
    %v3368 = vrot.slane %v46, 7
    %v3369 = vsel %vm3352, %v3366, %v3368
    %v3370 = vrot.slane %v47, 7
    %v3371 = vsel %vm3352, %v3368, %v3370
    %v3372 = vrot.slane %v48, 7
    %v3373 = vsel %vm3352, %v3370, %v3372
    %v3374 = vrot.slane %v70, 7
    %v3375 = vrot.slane %v71, 7
    %v3376 = vsel %vm3352, %v3374, %v3375
    %v3377 = vrot.slane %v72, 7
    %v3378 = vsel %vm3352, %v3375, %v3377
    %v3379 = vrot.slane %v73, 7
    %v3380 = vsel %vm3352, %v3377, %v3379
    %v3381 = vrot.slane %v74, 7
    %v3382 = vsel %vm3352, %v3379, %v3381
    %v3383 = vrot.slane %v75, 7
    %v3384 = vsel %vm3352, %v3381, %v3383
    %v3385 = vrot.slane %v76, 7
    %v3386 = vsel %vm3352, %v3383, %v3385
    %v3387 = vrot.slane %v77, 7
    %v3388 = vsel %vm3352, %v3385, %v3387
    %v3389 = vrot.slane %v78, 7
    %v3390 = vsel %vm3352, %v3387, %v3389
    %v3391 = vrot.slane %v79, 7
    %v3392 = vsel %vm3352, %v3389, %v3391
    %v3393 = vrot.slane %v80, 7
    %v3394 = vsel %vm3352, %v3391, %v3393
    %v3395 = vrot.slane %v102, 7
    %v3396 = vrot.slane %v103, 7
    %v3397 = vsel %vm3352, %v3395, %v3396
    %v3398 = vrot.slane %v104, 7
    %v3399 = vsel %vm3352, %v3396, %v3398
    %v3400 = vrot.slane %v105, 7
    %v3401 = vsel %vm3352, %v3398, %v3400
    %v3402 = vrot.slane %v106, 7
    %v3403 = vsel %vm3352, %v3400, %v3402
    %v3404 = vrot.slane %v107, 7
    %v3405 = vsel %vm3352, %v3402, %v3404
    %v3406 = vrot.slane %v108, 7
    %v3407 = vsel %vm3352, %v3404, %v3406
    %v3408 = vrot.slane %v109, 7
    %v3409 = vsel %vm3352, %v3406, %v3408
    %v3410 = vrot.slane %v110, 7
    %v3411 = vsel %vm3352, %v3408, %v3410
    %v3412 = vrot.slane %v111, 7
    %v3413 = vsel %vm3352, %v3410, %v3412
    %v3414 = vrot.slane %v112, 7
    %v3415 = vsel %vm3352, %v3412, %v3414
    %v3416 = vrot.slane %v134, 7
    %v3417 = vrot.slane %v135, 7
    %v3418 = vsel %vm3352, %v3416, %v3417
    %v3419 = vrot.slane %v136, 7
    %v3420 = vsel %vm3352, %v3417, %v3419
    %v3421 = vrot.slane %v137, 7
    %v3422 = vsel %vm3352, %v3419, %v3421
    %v3423 = vrot.slane %v138, 7
    %v3424 = vsel %vm3352, %v3421, %v3423
    %v3425 = vrot.slane %v139, 7
    %v3426 = vsel %vm3352, %v3423, %v3425
    %v3427 = vrot.slane %v140, 7
    %v3428 = vsel %vm3352, %v3425, %v3427
    %v3429 = vrot.slane %v141, 7
    %v3430 = vsel %vm3352, %v3427, %v3429
    %v3431 = vrot.slane %v142, 7
    %v3432 = vsel %vm3352, %v3429, %v3431
    %v3433 = vrot.slane %v143, 7
    %v3434 = vsel %vm3352, %v3431, %v3433
    %v3435 = vrot.slane %v144, 7
    %v3436 = vsel %vm3352, %v3433, %v3435
    %v3437 = vsel %vm290, %v3355, 0
    %v3439 = vsel %vm290, %v3357, 0
    %v3441 = vsel %vm290, %v3359, 0
    %v3443 = vsel %vm290, %v3361, 0
    %v3445 = vsel %vm290, %v3363, 0
    %v3447 = vsel %vm290, %v3365, 0
    %v3449 = vsel %vm290, %v3367, 0
    %v3451 = vsel %vm290, %v3369, 0
    %v3453 = vsel %vm290, %v3371, 0
    %v3455 = vsel %vm290, %v3373, 0
    %v3457 = vsel %vm290, %v3376, 0
    %v3459 = vsel %vm290, %v3378, 0
    %v3461 = vsel %vm290, %v3380, 0
    %v3463 = vsel %vm290, %v3382, 0
    %v3465 = vsel %vm290, %v3384, 0
    %v3467 = vsel %vm290, %v3386, 0
    %v3469 = vsel %vm290, %v3388, 0
    %v3471 = vsel %vm290, %v3390, 0
    %v3473 = vsel %vm290, %v3392, 0
    %v3475 = vsel %vm290, %v3394, 0
    %v3477 = vsel %vm290, %v3397, 0
    %v3479 = vsel %vm290, %v3399, 0
    %v3481 = vsel %vm290, %v3401, 0
    %v3483 = vsel %vm290, %v3403, 0
    %v3485 = vsel %vm290, %v3405, 0
    %v3487 = vsel %vm290, %v3407, 0
    %v3489 = vsel %vm290, %v3409, 0
    %v3491 = vsel %vm290, %v3411, 0
    %v3493 = vsel %vm290, %v3413, 0
    %v3495 = vsel %vm290, %v3415, 0
    %v3497 = vsel %vm290, %v3418, 0
    %v3499 = vsel %vm290, %v3420, 0
    %v3501 = vsel %vm290, %v3422, 0
    %v3503 = vsel %vm290, %v3424, 0
    %v3505 = vsel %vm290, %v3426, 0
    %v3507 = vsel %vm290, %v3428, 0
    %v3509 = vsel %vm290, %v3430, 0
    %v3511 = vsel %vm290, %v3432, 0
    %v3513 = vsel %vm290, %v3434, 0
    %v3515 = vsel %vm290, %v3436, 0
    %v3518 = vsel %vm371, %v157, 0
    %3520 = vmatprep.subr.mxu0 0.0
    %3521 = vmatpush1.msra.mxu0 0.0
    %3522 = vmatprep.subr.mxu0 0.0
    %3523 = vmatpush1.msra.mxu0 0.0
    %3524 = vmatprep.subr.mxu0 0.0
    %3525 = vmatpush1.msra.mxu0 0.0
    %3526 = vmatprep.subr.mxu0 0.0
    %3527 = vmatpush1.msra.mxu0 0.0
    %3528 = vmatprep.subr.mxu0 0.0
    %3529 = vmatpush1.msra.mxu0 0.0
    %3530 = vmatprep.subr.mxu0 0.0
    %3531 = vmatpush1.msra.mxu0 0.0
    %3532 = vmatprep.subr.mxu0 0.0
    %3533 = vmatpush1.msra.mxu0 0.0
    %3534 = vmatprep.subr.mxu0 0.0
    %3535 = vmatpush1.msra.mxu0 0.0
    %3536 = vmatprep.subr.mxu0 0.0
    %3537 = vmatpush1.msra.mxu0 0.0
    %3538 = vmatprep.subr.mxu0 0.0
    %3539 = vmatpush1.msra.mxu0 0.0
    %3540 = vmatprep.subr.mxu0 0.0
    %3541 = vmatpush1.msra.mxu0 0.0
    %3542 = vmatprep.subr.mxu0 0.0
    %3543 = vmatpush1.msra.mxu0 0.0
    %3544 = vmatprep.subr.mxu0 0.0
    %3545 = vmatpush1.msra.mxu0 0.0
    %3546 = vmatprep.subr.mxu0 0.0
    %3547 = vmatpush1.msra.mxu0 0.0
    %3548 = vmatprep.subr.mxu0 0.0
    %3549 = vmatpush1.msra.mxu0 0.0
    %3550 = vmatprep.subr.mxu0 0.0
    %3551 = vmatpush1.msra.mxu0 %v3518
    %3552 = vmatprep.subr.mxu0 0.0
    %3553 = vmatpush2.msra.mxu0 0.0
    %3554 = vmatprep.subr.mxu0 0.0
    %3555 = vmatpush2.msra.mxu0 0.0
    %3556 = vmatprep.subr.mxu0 0.0
    %3557 = vmatpush2.msra.mxu0 0.0
    %3558 = vmatprep.subr.mxu0 0.0
    %3559 = vmatpush2.msra.mxu0 0.0
    %3560 = vmatprep.subr.mxu0 0.0
    %3561 = vmatpush2.msra.mxu0 0.0
    %3562 = vmatprep.subr.mxu0 0.0
    %3563 = vmatpush2.msra.mxu0 0.0
    %3564 = vmatprep.subr.mxu0 0.0
    %3565 = vmatpush2.msra.mxu0 0.0
    %3566 = vmatprep.subr.mxu0 0.0
    %3567 = vmatpush2.msra.mxu0 0.0
    %3568 = vmatprep.subr.mxu0 0.0
    %3569 = vmatpush2.msra.mxu0 0.0
    %3570 = vmatprep.subr.mxu0 0.0
    %3571 = vmatpush2.msra.mxu0 0.0
    %3572 = vmatprep.subr.mxu0 0.0
    %3573 = vmatpush2.msra.mxu0 0.0
    %3574 = vmatprep.subr.mxu0 0.0
    %3575 = vmatpush2.msra.mxu0 0.0
    %3576 = vmatprep.subr.mxu0 0.0
    %3577 = vmatpush2.msra.mxu0 0.0
    %3578 = vmatprep.subr.mxu0 0.0
    %3579 = vmatpush2.msra.mxu0 0.0
    %3580 = vmatprep.subr.mxu0 0.0
    %3581 = vmatpush2.msra.mxu0 0.0
    %3582 = vmatprep.subr.mxu0 0.0
    %3583 = vmatpush2.msra.mxu0 0.0
    %3584 = vmatprep.mubr.f32.mxu0 0.0
    %3585 = vmatmul.mubr.f32.gmra.mxu0 %v3437
    %v3586 = vpop.f32.mrf.mxu0
    %v3587 = vadd.f32 0.0, %v3586
    %v3588 = vpop.f32.mrf.mxu0
    %3589 = vmatprep.mubr.f32.mxu0 0.0
    %3590 = vmatmul.mubr.f32.gmra.mxu0 %v3439
    %v3591 = vpop.f32.mrf.mxu0
    %v3592 = vadd.f32 0.0, %v3591
    %v3593 = vpop.f32.mrf.mxu0
    %3594 = vmatprep.mubr.f32.mxu0 0.0
    %3595 = vmatmul.mubr.f32.gmra.mxu0 %v3441
    %v3596 = vpop.f32.mrf.mxu0
    %v3597 = vadd.f32 0.0, %v3596
    %v3598 = vpop.f32.mrf.mxu0
    %3599 = vmatprep.mubr.f32.mxu0 0.0
    %3600 = vmatmul.mubr.f32.gmra.mxu0 %v3443
    %v3601 = vpop.f32.mrf.mxu0
    %v3602 = vadd.f32 0.0, %v3601
    %v3603 = vpop.f32.mrf.mxu0
    %3604 = vmatprep.mubr.f32.mxu0 0.0
    %3605 = vmatmul.mubr.f32.gmra.mxu0 %v3445
    %v3606 = vpop.f32.mrf.mxu0
    %v3607 = vadd.f32 0.0, %v3606
    %v3608 = vpop.f32.mrf.mxu0
    %3609 = vmatprep.mubr.f32.mxu0 0.0
    %3610 = vmatmul.mubr.f32.gmra.mxu0 %v3447
    %v3611 = vpop.f32.mrf.mxu0
    %v3612 = vadd.f32 0.0, %v3611
    %v3613 = vpop.f32.mrf.mxu0
    %3614 = vmatprep.mubr.f32.mxu0 0.0
    %3615 = vmatmul.mubr.f32.gmra.mxu0 %v3449
    %v3616 = vpop.f32.mrf.mxu0
    %v3617 = vadd.f32 0.0, %v3616
    %v3618 = vpop.f32.mrf.mxu0
    %3619 = vmatprep.mubr.f32.mxu0 0.0
    %3620 = vmatmul.mubr.f32.gmra.mxu0 %v3451
    %v3621 = vpop.f32.mrf.mxu0
    %v3622 = vadd.f32 0.0, %v3621
    %v3623 = vpop.f32.mrf.mxu0
    %3624 = vmatprep.mubr.f32.mxu0 0.0
    %3625 = vmatmul.mubr.f32.gmra.mxu0 %v3453
    %v3626 = vpop.f32.mrf.mxu0
    %v3627 = vadd.f32 0.0, %v3626
    %v3628 = vpop.f32.mrf.mxu0
    %3629 = vmatprep.mubr.f32.mxu0 0.0
    %3630 = vmatmul.mubr.f32.gmra.mxu0 %v3455
    %v3631 = vpop.f32.mrf.mxu0
    %v3632 = vadd.f32 0.0, %v3631
    %v3633 = vpop.f32.mrf.mxu0
    %3634 = vmatprep.mubr.f32.mxu0 0.0
    %3635 = vmatmul.mubr.f32.gmra.mxu0 %v3457
    %v3636 = vpop.f32.mrf.mxu0
    %v3637 = vadd.f32 0.0, %v3636
    %v3638 = vpop.f32.mrf.mxu0
    %3639 = vmatprep.mubr.f32.mxu0 0.0
    %3640 = vmatmul.mubr.f32.gmra.mxu0 %v3459
    %v3641 = vpop.f32.mrf.mxu0
    %v3642 = vadd.f32 0.0, %v3641
    %v3643 = vpop.f32.mrf.mxu0
    %3644 = vmatprep.mubr.f32.mxu0 0.0
    %3645 = vmatmul.mubr.f32.gmra.mxu0 %v3461
    %v3646 = vpop.f32.mrf.mxu0
    %v3647 = vadd.f32 0.0, %v3646
    %v3648 = vpop.f32.mrf.mxu0
    %3649 = vmatprep.mubr.f32.mxu0 0.0
    %3650 = vmatmul.mubr.f32.gmra.mxu0 %v3463
    %v3651 = vpop.f32.mrf.mxu0
    %v3652 = vadd.f32 0.0, %v3651
    %v3653 = vpop.f32.mrf.mxu0
    %3654 = vmatprep.mubr.f32.mxu0 0.0
    %3655 = vmatmul.mubr.f32.gmra.mxu0 %v3465
    %v3656 = vpop.f32.mrf.mxu0
    %v3657 = vadd.f32 0.0, %v3656
    %v3658 = vpop.f32.mrf.mxu0
    %3659 = vmatprep.mubr.f32.mxu0 0.0
    %3660 = vmatmul.mubr.f32.gmra.mxu0 %v3467
    %v3661 = vpop.f32.mrf.mxu0
    %v3662 = vadd.f32 0.0, %v3661
    %v3663 = vpop.f32.mrf.mxu0
    %3664 = vmatprep.mubr.f32.mxu0 0.0
    %3665 = vmatmul.mubr.f32.gmra.mxu0 %v3469
    %v3666 = vpop.f32.mrf.mxu0
    %v3667 = vadd.f32 0.0, %v3666
    %v3668 = vpop.f32.mrf.mxu0
    %3669 = vmatprep.mubr.f32.mxu0 0.0
    %3670 = vmatmul.mubr.f32.gmra.mxu0 %v3471
    %v3671 = vpop.f32.mrf.mxu0
    %v3672 = vadd.f32 0.0, %v3671
    %v3673 = vpop.f32.mrf.mxu0
    %3674 = vmatprep.mubr.f32.mxu0 0.0
    %3675 = vmatmul.mubr.f32.gmra.mxu0 %v3473
    %v3676 = vpop.f32.mrf.mxu0
    %v3677 = vadd.f32 0.0, %v3676
    %v3678 = vpop.f32.mrf.mxu0
    %3679 = vmatprep.mubr.f32.mxu0 0.0
    %3680 = vmatmul.mubr.f32.gmra.mxu0 %v3475
    %v3681 = vpop.f32.mrf.mxu0
    %v3682 = vadd.f32 0.0, %v3681
    %v3683 = vpop.f32.mrf.mxu0
    %3684 = vmatprep.mubr.f32.mxu0 0.0
    %3685 = vmatmul.mubr.f32.gmra.mxu0 %v3477
    %v3686 = vpop.f32.mrf.mxu0
    %v3687 = vadd.f32 0.0, %v3686
    %v3688 = vpop.f32.mrf.mxu0
    %3689 = vmatprep.mubr.f32.mxu0 0.0
    %3690 = vmatmul.mubr.f32.gmra.mxu0 %v3479
    %v3691 = vpop.f32.mrf.mxu0
    %v3692 = vadd.f32 0.0, %v3691
    %v3693 = vpop.f32.mrf.mxu0
    %3694 = vmatprep.mubr.f32.mxu0 0.0
    %3695 = vmatmul.mubr.f32.gmra.mxu0 %v3481
    %v3696 = vpop.f32.mrf.mxu0
    %v3697 = vadd.f32 0.0, %v3696
    %v3698 = vpop.f32.mrf.mxu0
    %3699 = vmatprep.mubr.f32.mxu0 0.0
    %3700 = vmatmul.mubr.f32.gmra.mxu0 %v3483
    %v3701 = vpop.f32.mrf.mxu0
    %v3702 = vadd.f32 0.0, %v3701
    %v3703 = vpop.f32.mrf.mxu0
    %3704 = vmatprep.mubr.f32.mxu0 0.0
    %3705 = vmatmul.mubr.f32.gmra.mxu0 %v3485
    %v3706 = vpop.f32.mrf.mxu0
    %v3707 = vadd.f32 0.0, %v3706
    %v3708 = vpop.f32.mrf.mxu0
    %3709 = vmatprep.mubr.f32.mxu0 0.0
    %3710 = vmatmul.mubr.f32.gmra.mxu0 %v3487
    %v3711 = vpop.f32.mrf.mxu0
    %v3712 = vadd.f32 0.0, %v3711
    %v3713 = vpop.f32.mrf.mxu0
    %3714 = vmatprep.mubr.f32.mxu0 0.0
    %3715 = vmatmul.mubr.f32.gmra.mxu0 %v3489
    %v3716 = vpop.f32.mrf.mxu0
    %v3717 = vadd.f32 0.0, %v3716
    %v3718 = vpop.f32.mrf.mxu0
    %3719 = vmatprep.mubr.f32.mxu0 0.0
    %3720 = vmatmul.mubr.f32.gmra.mxu0 %v3491
    %v3721 = vpop.f32.mrf.mxu0
    %v3722 = vadd.f32 0.0, %v3721
    %v3723 = vpop.f32.mrf.mxu0
    %3724 = vmatprep.mubr.f32.mxu0 0.0
    %3725 = vmatmul.mubr.f32.gmra.mxu0 %v3493
    %v3726 = vpop.f32.mrf.mxu0
    %v3727 = vadd.f32 0.0, %v3726
    %v3728 = vpop.f32.mrf.mxu0
    %3729 = vmatprep.mubr.f32.mxu0 0.0
    %3730 = vmatmul.mubr.f32.gmra.mxu0 %v3495
    %v3731 = vpop.f32.mrf.mxu0
    %v3732 = vadd.f32 0.0, %v3731
    %v3733 = vpop.f32.mrf.mxu0
    %3734 = vmatprep.mubr.f32.mxu0 0.0
    %3735 = vmatmul.mubr.f32.gmra.mxu0 %v3497
    %v3736 = vpop.f32.mrf.mxu0
    %v3737 = vadd.f32 0.0, %v3736
    %v3738 = vpop.f32.mrf.mxu0
    %3739 = vmatprep.mubr.f32.mxu0 0.0
    %3740 = vmatmul.mubr.f32.gmra.mxu0 %v3499
    %v3741 = vpop.f32.mrf.mxu0
    %v3742 = vadd.f32 0.0, %v3741
    %v3743 = vpop.f32.mrf.mxu0
    %3744 = vmatprep.mubr.f32.mxu0 0.0
    %3745 = vmatmul.mubr.f32.gmra.mxu0 %v3501
    %v3746 = vpop.f32.mrf.mxu0
    %v3747 = vadd.f32 0.0, %v3746
    %v3748 = vpop.f32.mrf.mxu0
    %3749 = vmatprep.mubr.f32.mxu0 0.0
    %3750 = vmatmul.mubr.f32.gmra.mxu0 %v3503
    %v3751 = vpop.f32.mrf.mxu0
    %v3752 = vadd.f32 0.0, %v3751
    %v3753 = vpop.f32.mrf.mxu0
    %3754 = vmatprep.mubr.f32.mxu0 0.0
    %3755 = vmatmul.mubr.f32.gmra.mxu0 %v3505
    %v3756 = vpop.f32.mrf.mxu0
    %v3757 = vadd.f32 0.0, %v3756
    %v3758 = vpop.f32.mrf.mxu0
    %3759 = vmatprep.mubr.f32.mxu0 0.0
    %3760 = vmatmul.mubr.f32.gmra.mxu0 %v3507
    %v3761 = vpop.f32.mrf.mxu0
    %v3762 = vadd.f32 0.0, %v3761
    %v3763 = vpop.f32.mrf.mxu0
    %3764 = vmatprep.mubr.f32.mxu0 0.0
    %3765 = vmatmul.mubr.f32.gmra.mxu0 %v3509
    %v3766 = vpop.f32.mrf.mxu0
    %v3767 = vadd.f32 0.0, %v3766
    %v3768 = vpop.f32.mrf.mxu0
    %3769 = vmatprep.mubr.f32.mxu0 0.0
    %3770 = vmatmul.mubr.f32.gmra.mxu0 %v3511
    %v3771 = vpop.f32.mrf.mxu0
    %v3772 = vadd.f32 0.0, %v3771
    %v3773 = vpop.f32.mrf.mxu0
    %3774 = vmatprep.mubr.f32.mxu0 0.0
    %3775 = vmatmul.mubr.f32.gmra.mxu0 %v3513
    %v3776 = vpop.f32.mrf.mxu0
    %v3777 = vadd.f32 0.0, %v3776
    %v3778 = vpop.f32.mrf.mxu0
    %3779 = vmatprep.mubr.f32.mxu0 0.0
    %3780 = vmatmul.mubr.f32.gmra.mxu0 %v3515
    %v3781 = vpop.f32.mrf.mxu0
    %v3782 = vadd.f32 0.0, %v3781
    %v3783 = vpop.f32.mrf.mxu0
    %3784 = vdwg.mxu0
    %v3785 = vadd.f32 %v3312, %v3587
    %v3786 = vadd.f32 %v3313, %v3592
    %v3787 = vadd.f32 %v3314, %v3597
    %v3788 = vadd.f32 %v3315, %v3602
    %v3789 = vadd.f32 %v3316, %v3607
    %v3790 = vadd.f32 %v3317, %v3612
    %v3791 = vadd.f32 %v3318, %v3617
    %v3792 = vadd.f32 %v3319, %v3622
    %v3793 = vadd.f32 %v3320, %v3627
    %v3794 = vadd.f32 %v3321, %v3632
    %v3795 = vadd.f32 %v3322, %v3637
    %v3796 = vadd.f32 %v3323, %v3642
    %v3797 = vadd.f32 %v3324, %v3647
    %v3798 = vadd.f32 %v3325, %v3652
    %v3799 = vadd.f32 %v3326, %v3657
    %v3800 = vadd.f32 %v3327, %v3662
    %v3801 = vadd.f32 %v3328, %v3667
    %v3802 = vadd.f32 %v3329, %v3672
    %v3803 = vadd.f32 %v3330, %v3677
    %v3804 = vadd.f32 %v3331, %v3682
    %v3805 = vadd.f32 %v3332, %v3687
    %v3806 = vadd.f32 %v3333, %v3692
    %v3807 = vadd.f32 %v3334, %v3697
    %v3808 = vadd.f32 %v3335, %v3702
    %v3809 = vadd.f32 %v3336, %v3707
    %v3810 = vadd.f32 %v3337, %v3712
    %v3811 = vadd.f32 %v3338, %v3717
    %v3812 = vadd.f32 %v3339, %v3722
    %v3813 = vadd.f32 %v3340, %v3727
    %v3814 = vadd.f32 %v3341, %v3732
    %v3815 = vadd.f32 %v3342, %v3737
    %v3816 = vadd.f32 %v3343, %v3742
    %v3817 = vadd.f32 %v3344, %v3747
    %v3818 = vadd.f32 %v3345, %v3752
    %v3819 = vadd.f32 %v3346, %v3757
    %v3820 = vadd.f32 %v3347, %v3762
    %v3821 = vadd.f32 %v3348, %v3767
    %v3822 = vadd.f32 %v3349, %v3772
    %v3823 = vadd.f32 %v3350, %v3777
    %v3824 = vadd.f32 %v3351, %v3782
    %v3825 = vsel %vm290, %v48, 0
    %v3827 = vsel %vm290, %v80, 0
    %v3829 = vsel %vm290, %v112, 0
    %v3831 = vsel %vm290, %v144, 0
    %v3834 = vsel %vm371, %v158, 0
    %3836 = vmatprep.subr.mxu0 0.0
    %3837 = vmatpush1.msra.mxu0 0.0
    %3838 = vmatprep.subr.mxu0 0.0
    %3839 = vmatpush1.msra.mxu0 0.0
    %3840 = vmatprep.subr.mxu0 0.0
    %3841 = vmatpush1.msra.mxu0 0.0
    %3842 = vmatprep.subr.mxu0 0.0
    %3843 = vmatpush1.msra.mxu0 0.0
    %3844 = vmatprep.subr.mxu0 0.0
    %3845 = vmatpush1.msra.mxu0 0.0
    %3846 = vmatprep.subr.mxu0 0.0
    %3847 = vmatpush1.msra.mxu0 0.0
    %3848 = vmatprep.subr.mxu0 0.0
    %3849 = vmatpush1.msra.mxu0 0.0
    %3850 = vmatprep.subr.mxu0 0.0
    %3851 = vmatpush1.msra.mxu0 0.0
    %3852 = vmatprep.subr.mxu0 0.0
    %3853 = vmatpush1.msra.mxu0 0.0
    %3854 = vmatprep.subr.mxu0 0.0
    %3855 = vmatpush1.msra.mxu0 0.0
    %3856 = vmatprep.subr.mxu0 0.0
    %3857 = vmatpush1.msra.mxu0 0.0
    %3858 = vmatprep.subr.mxu0 0.0
    %3859 = vmatpush1.msra.mxu0 0.0
    %3860 = vmatprep.subr.mxu0 0.0
    %3861 = vmatpush1.msra.mxu0 0.0
    %3862 = vmatprep.subr.mxu0 0.0
    %3863 = vmatpush1.msra.mxu0 0.0
    %3864 = vmatprep.subr.mxu0 0.0
    %3865 = vmatpush1.msra.mxu0 0.0
    %3866 = vmatprep.subr.mxu0 0.0
    %3867 = vmatpush1.msra.mxu0 %v3834
    %3868 = vmatprep.subr.mxu0 0.0
    %3869 = vmatpush2.msra.mxu0 0.0
    %3870 = vmatprep.subr.mxu0 0.0
    %3871 = vmatpush2.msra.mxu0 0.0
    %3872 = vmatprep.subr.mxu0 0.0
    %3873 = vmatpush2.msra.mxu0 0.0
    %3874 = vmatprep.subr.mxu0 0.0
    %3875 = vmatpush2.msra.mxu0 0.0
    %3876 = vmatprep.subr.mxu0 0.0
    %3877 = vmatpush2.msra.mxu0 0.0
    %3878 = vmatprep.subr.mxu0 0.0
    %3879 = vmatpush2.msra.mxu0 0.0
    %3880 = vmatprep.subr.mxu0 0.0
    %3881 = vmatpush2.msra.mxu0 0.0
    %3882 = vmatprep.subr.mxu0 0.0
    %3883 = vmatpush2.msra.mxu0 0.0
    %3884 = vmatprep.subr.mxu0 0.0
    %3885 = vmatpush2.msra.mxu0 0.0
    %3886 = vmatprep.subr.mxu0 0.0
    %3887 = vmatpush2.msra.mxu0 0.0
    %3888 = vmatprep.subr.mxu0 0.0
    %3889 = vmatpush2.msra.mxu0 0.0
    %3890 = vmatprep.subr.mxu0 0.0
    %3891 = vmatpush2.msra.mxu0 0.0
    %3892 = vmatprep.subr.mxu0 0.0
    %3893 = vmatpush2.msra.mxu0 0.0
    %3894 = vmatprep.subr.mxu0 0.0
    %3895 = vmatpush2.msra.mxu0 0.0
    %3896 = vmatprep.subr.mxu0 0.0
    %3897 = vmatpush2.msra.mxu0 0.0
    %3898 = vmatprep.subr.mxu0 0.0
    %3899 = vmatpush2.msra.mxu0 0.0
    %3900 = vmatprep.mubr.f32.mxu0 0.0
    %3901 = vmatmul.mubr.f32.gmra.mxu0 %v642
    %v3902 = vpop.f32.mrf.mxu0
    %v3903 = vadd.f32 0.0, %v3902
    %v3904 = vpop.f32.mrf.mxu0
    %3905 = vmatprep.mubr.f32.mxu0 0.0
    %3906 = vmatmul.mubr.f32.gmra.mxu0 %v644
    %v3907 = vpop.f32.mrf.mxu0
    %v3908 = vadd.f32 0.0, %v3907
    %v3909 = vpop.f32.mrf.mxu0
    %3910 = vmatprep.mubr.f32.mxu0 0.0
    %3911 = vmatmul.mubr.f32.gmra.mxu0 %v646
    %v3912 = vpop.f32.mrf.mxu0
    %v3913 = vadd.f32 0.0, %v3912
    %v3914 = vpop.f32.mrf.mxu0
    %3915 = vmatprep.mubr.f32.mxu0 0.0
    %3916 = vmatmul.mubr.f32.gmra.mxu0 %v648
    %v3917 = vpop.f32.mrf.mxu0
    %v3918 = vadd.f32 0.0, %v3917
    %v3919 = vpop.f32.mrf.mxu0
    %3920 = vmatprep.mubr.f32.mxu0 0.0
    %3921 = vmatmul.mubr.f32.gmra.mxu0 %v650
    %v3922 = vpop.f32.mrf.mxu0
    %v3923 = vadd.f32 0.0, %v3922
    %v3924 = vpop.f32.mrf.mxu0
    %3925 = vmatprep.mubr.f32.mxu0 0.0
    %3926 = vmatmul.mubr.f32.gmra.mxu0 %v652
    %v3927 = vpop.f32.mrf.mxu0
    %v3928 = vadd.f32 0.0, %v3927
    %v3929 = vpop.f32.mrf.mxu0
    %3930 = vmatprep.mubr.f32.mxu0 0.0
    %3931 = vmatmul.mubr.f32.gmra.mxu0 %v654
    %v3932 = vpop.f32.mrf.mxu0
    %v3933 = vadd.f32 0.0, %v3932
    %v3934 = vpop.f32.mrf.mxu0
    %3935 = vmatprep.mubr.f32.mxu0 0.0
    %3936 = vmatmul.mubr.f32.gmra.mxu0 %v656
    %v3937 = vpop.f32.mrf.mxu0
    %v3938 = vadd.f32 0.0, %v3937
    %v3939 = vpop.f32.mrf.mxu0
    %3940 = vmatprep.mubr.f32.mxu0 0.0
    %3941 = vmatmul.mubr.f32.gmra.mxu0 %v658
    %v3942 = vpop.f32.mrf.mxu0
    %v3943 = vadd.f32 0.0, %v3942
    %v3944 = vpop.f32.mrf.mxu0
    %3945 = vmatprep.mubr.f32.mxu0 0.0
    %3946 = vmatmul.mubr.f32.gmra.mxu0 %v3825
    %v3947 = vpop.f32.mrf.mxu0
    %v3948 = vadd.f32 0.0, %v3947
    %v3949 = vpop.f32.mrf.mxu0
    %3950 = vmatprep.mubr.f32.mxu0 0.0
    %3951 = vmatmul.mubr.f32.gmra.mxu0 %v662
    %v3952 = vpop.f32.mrf.mxu0
    %v3953 = vadd.f32 0.0, %v3952
    %v3954 = vpop.f32.mrf.mxu0
    %3955 = vmatprep.mubr.f32.mxu0 0.0
    %3956 = vmatmul.mubr.f32.gmra.mxu0 %v664
    %v3957 = vpop.f32.mrf.mxu0
    %v3958 = vadd.f32 0.0, %v3957
    %v3959 = vpop.f32.mrf.mxu0
    %3960 = vmatprep.mubr.f32.mxu0 0.0
    %3961 = vmatmul.mubr.f32.gmra.mxu0 %v666
    %v3962 = vpop.f32.mrf.mxu0
    %v3963 = vadd.f32 0.0, %v3962
    %v3964 = vpop.f32.mrf.mxu0
    %3965 = vmatprep.mubr.f32.mxu0 0.0
    %3966 = vmatmul.mubr.f32.gmra.mxu0 %v668
    %v3967 = vpop.f32.mrf.mxu0
    %v3968 = vadd.f32 0.0, %v3967
    %v3969 = vpop.f32.mrf.mxu0
    %3970 = vmatprep.mubr.f32.mxu0 0.0
    %3971 = vmatmul.mubr.f32.gmra.mxu0 %v670
    %v3972 = vpop.f32.mrf.mxu0
    %v3973 = vadd.f32 0.0, %v3972
    %v3974 = vpop.f32.mrf.mxu0
    %3975 = vmatprep.mubr.f32.mxu0 0.0
    %3976 = vmatmul.mubr.f32.gmra.mxu0 %v672
    %v3977 = vpop.f32.mrf.mxu0
    %v3978 = vadd.f32 0.0, %v3977
    %v3979 = vpop.f32.mrf.mxu0
    %3980 = vmatprep.mubr.f32.mxu0 0.0
    %3981 = vmatmul.mubr.f32.gmra.mxu0 %v674
    %v3982 = vpop.f32.mrf.mxu0
    %v3983 = vadd.f32 0.0, %v3982
    %v3984 = vpop.f32.mrf.mxu0
    %3985 = vmatprep.mubr.f32.mxu0 0.0
    %3986 = vmatmul.mubr.f32.gmra.mxu0 %v676
    %v3987 = vpop.f32.mrf.mxu0
    %v3988 = vadd.f32 0.0, %v3987
    %v3989 = vpop.f32.mrf.mxu0
    %3990 = vmatprep.mubr.f32.mxu0 0.0
    %3991 = vmatmul.mubr.f32.gmra.mxu0 %v678
    %v3992 = vpop.f32.mrf.mxu0
    %v3993 = vadd.f32 0.0, %v3992
    %v3994 = vpop.f32.mrf.mxu0
    %3995 = vmatprep.mubr.f32.mxu0 0.0
    %3996 = vmatmul.mubr.f32.gmra.mxu0 %v3827
    %v3997 = vpop.f32.mrf.mxu0
    %v3998 = vadd.f32 0.0, %v3997
    %v3999 = vpop.f32.mrf.mxu0
    %4000 = vmatprep.mubr.f32.mxu0 0.0
    %4001 = vmatmul.mubr.f32.gmra.mxu0 %v682
    %v4002 = vpop.f32.mrf.mxu0
    %v4003 = vadd.f32 0.0, %v4002
    %v4004 = vpop.f32.mrf.mxu0
    %4005 = vmatprep.mubr.f32.mxu0 0.0
    %4006 = vmatmul.mubr.f32.gmra.mxu0 %v684
    %v4007 = vpop.f32.mrf.mxu0
    %v4008 = vadd.f32 0.0, %v4007
    %v4009 = vpop.f32.mrf.mxu0
    %4010 = vmatprep.mubr.f32.mxu0 0.0
    %4011 = vmatmul.mubr.f32.gmra.mxu0 %v686
    %v4012 = vpop.f32.mrf.mxu0
    %v4013 = vadd.f32 0.0, %v4012
    %v4014 = vpop.f32.mrf.mxu0
    %4015 = vmatprep.mubr.f32.mxu0 0.0
    %4016 = vmatmul.mubr.f32.gmra.mxu0 %v688
    %v4017 = vpop.f32.mrf.mxu0
    %v4018 = vadd.f32 0.0, %v4017
    %v4019 = vpop.f32.mrf.mxu0
    %4020 = vmatprep.mubr.f32.mxu0 0.0
    %4021 = vmatmul.mubr.f32.gmra.mxu0 %v690
    %v4022 = vpop.f32.mrf.mxu0
    %v4023 = vadd.f32 0.0, %v4022
    %v4024 = vpop.f32.mrf.mxu0
    %4025 = vmatprep.mubr.f32.mxu0 0.0
    %4026 = vmatmul.mubr.f32.gmra.mxu0 %v692
    %v4027 = vpop.f32.mrf.mxu0
    %v4028 = vadd.f32 0.0, %v4027
    %v4029 = vpop.f32.mrf.mxu0
    %4030 = vmatprep.mubr.f32.mxu0 0.0
    %4031 = vmatmul.mubr.f32.gmra.mxu0 %v694
    %v4032 = vpop.f32.mrf.mxu0
    %v4033 = vadd.f32 0.0, %v4032
    %v4034 = vpop.f32.mrf.mxu0
    %4035 = vmatprep.mubr.f32.mxu0 0.0
    %4036 = vmatmul.mubr.f32.gmra.mxu0 %v696
    %v4037 = vpop.f32.mrf.mxu0
    %v4038 = vadd.f32 0.0, %v4037
    %v4039 = vpop.f32.mrf.mxu0
    %4040 = vmatprep.mubr.f32.mxu0 0.0
    %4041 = vmatmul.mubr.f32.gmra.mxu0 %v698
    %v4042 = vpop.f32.mrf.mxu0
    %v4043 = vadd.f32 0.0, %v4042
    %v4044 = vpop.f32.mrf.mxu0
    %4045 = vmatprep.mubr.f32.mxu0 0.0
    %4046 = vmatmul.mubr.f32.gmra.mxu0 %v3829
    %v4047 = vpop.f32.mrf.mxu0
    %v4048 = vadd.f32 0.0, %v4047
    %v4049 = vpop.f32.mrf.mxu0
    %4050 = vmatprep.mubr.f32.mxu0 0.0
    %4051 = vmatmul.mubr.f32.gmra.mxu0 %v702
    %v4052 = vpop.f32.mrf.mxu0
    %v4053 = vadd.f32 0.0, %v4052
    %v4054 = vpop.f32.mrf.mxu0
    %4055 = vmatprep.mubr.f32.mxu0 0.0
    %4056 = vmatmul.mubr.f32.gmra.mxu0 %v704
    %v4057 = vpop.f32.mrf.mxu0
    %v4058 = vadd.f32 0.0, %v4057
    %v4059 = vpop.f32.mrf.mxu0
    %4060 = vmatprep.mubr.f32.mxu0 0.0
    %4061 = vmatmul.mubr.f32.gmra.mxu0 %v706
    %v4062 = vpop.f32.mrf.mxu0
    %v4063 = vadd.f32 0.0, %v4062
    %v4064 = vpop.f32.mrf.mxu0
    %4065 = vmatprep.mubr.f32.mxu0 0.0
    %4066 = vmatmul.mubr.f32.gmra.mxu0 %v708
    %v4067 = vpop.f32.mrf.mxu0
    %v4068 = vadd.f32 0.0, %v4067
    %v4069 = vpop.f32.mrf.mxu0
    %4070 = vmatprep.mubr.f32.mxu0 0.0
    %4071 = vmatmul.mubr.f32.gmra.mxu0 %v710
    %v4072 = vpop.f32.mrf.mxu0
    %v4073 = vadd.f32 0.0, %v4072
    %v4074 = vpop.f32.mrf.mxu0
    %4075 = vmatprep.mubr.f32.mxu0 0.0
    %4076 = vmatmul.mubr.f32.gmra.mxu0 %v712
    %v4077 = vpop.f32.mrf.mxu0
    %v4078 = vadd.f32 0.0, %v4077
    %v4079 = vpop.f32.mrf.mxu0
    %4080 = vmatprep.mubr.f32.mxu0 0.0
    %4081 = vmatmul.mubr.f32.gmra.mxu0 %v714
    %v4082 = vpop.f32.mrf.mxu0
    %v4083 = vadd.f32 0.0, %v4082
    %v4084 = vpop.f32.mrf.mxu0
    %4085 = vmatprep.mubr.f32.mxu0 0.0
    %4086 = vmatmul.mubr.f32.gmra.mxu0 %v716
    %v4087 = vpop.f32.mrf.mxu0
    %v4088 = vadd.f32 0.0, %v4087
    %v4089 = vpop.f32.mrf.mxu0
    %4090 = vmatprep.mubr.f32.mxu0 0.0
    %4091 = vmatmul.mubr.f32.gmra.mxu0 %v718
    %v4092 = vpop.f32.mrf.mxu0
    %v4093 = vadd.f32 0.0, %v4092
    %v4094 = vpop.f32.mrf.mxu0
    %4095 = vmatprep.mubr.f32.mxu0 0.0
    %4096 = vmatmul.mubr.f32.gmra.mxu0 %v3831
    %v4097 = vpop.f32.mrf.mxu0
    %v4098 = vadd.f32 0.0, %v4097
    %v4099 = vpop.f32.mrf.mxu0
    %4100 = vdwg.mxu0
    %v4101 = vadd.f32 %v3785, %v3903
    %v4102 = vadd.f32 %v3786, %v3908
    %v4103 = vadd.f32 %v3787, %v3913
    %v4104 = vadd.f32 %v3788, %v3918
    %v4105 = vadd.f32 %v3789, %v3923
    %v4106 = vadd.f32 %v3790, %v3928
    %v4107 = vadd.f32 %v3791, %v3933
    %v4108 = vadd.f32 %v3792, %v3938
    %v4109 = vadd.f32 %v3793, %v3943
    %v4110 = vadd.f32 %v3794, %v3948
    %v4111 = vadd.f32 %v3795, %v3953
    %v4112 = vadd.f32 %v3796, %v3958
    %v4113 = vadd.f32 %v3797, %v3963
    %v4114 = vadd.f32 %v3798, %v3968
    %v4115 = vadd.f32 %v3799, %v3973
    %v4116 = vadd.f32 %v3800, %v3978
    %v4117 = vadd.f32 %v3801, %v3983
    %v4118 = vadd.f32 %v3802, %v3988
    %v4119 = vadd.f32 %v3803, %v3993
    %v4120 = vadd.f32 %v3804, %v3998
    %v4121 = vadd.f32 %v3805, %v4003
    %v4122 = vadd.f32 %v3806, %v4008
    %v4123 = vadd.f32 %v3807, %v4013
    %v4124 = vadd.f32 %v3808, %v4018
    %v4125 = vadd.f32 %v3809, %v4023
    %v4126 = vadd.f32 %v3810, %v4028
    %v4127 = vadd.f32 %v3811, %v4033
    %v4128 = vadd.f32 %v3812, %v4038
    %v4129 = vadd.f32 %v3813, %v4043
    %v4130 = vadd.f32 %v3814, %v4048
    %v4131 = vadd.f32 %v3815, %v4053
    %v4132 = vadd.f32 %v3816, %v4058
    %v4133 = vadd.f32 %v3817, %v4063
    %v4134 = vadd.f32 %v3818, %v4068
    %v4135 = vadd.f32 %v3819, %v4073
    %v4136 = vadd.f32 %v3820, %v4078
    %v4137 = vadd.f32 %v3821, %v4083
    %v4138 = vadd.f32 %v3822, %v4088
    %v4139 = vadd.f32 %v3823, %v4093
    %v4140 = vadd.f32 %v3824, %v4098
    %v4145 = vrot.slane %v49, 1
    %v4146 = vsel %vm205, %v225, %v4145
    %v4147 = vrot.slane %v81, 1
    %v4148 = vsel %vm205, %v246, %v4147
    %v4149 = vrot.slane %v113, 1
    %v4150 = vsel %vm205, %v267, %v4149
    %v4151 = vrot.slane %v145, 1
    %v4152 = vsel %vm205, %v288, %v4151
    %v4153 = vsel %vm290, %v4146, 0
    %v4155 = vsel %vm290, %v4148, 0
    %v4157 = vsel %vm290, %v4150, 0
    %v4159 = vsel %vm290, %v4152, 0
    %v4162 = vsel %vm371, %v159, 0
    %4164 = vmatprep.subr.mxu0 0.0
    %4165 = vmatpush1.msra.mxu0 0.0
    %4166 = vmatprep.subr.mxu0 0.0
    %4167 = vmatpush1.msra.mxu0 0.0
    %4168 = vmatprep.subr.mxu0 0.0
    %4169 = vmatpush1.msra.mxu0 0.0
    %4170 = vmatprep.subr.mxu0 0.0
    %4171 = vmatpush1.msra.mxu0 0.0
    %4172 = vmatprep.subr.mxu0 0.0
    %4173 = vmatpush1.msra.mxu0 0.0
    %4174 = vmatprep.subr.mxu0 0.0
    %4175 = vmatpush1.msra.mxu0 0.0
    %4176 = vmatprep.subr.mxu0 0.0
    %4177 = vmatpush1.msra.mxu0 0.0
    %4178 = vmatprep.subr.mxu0 0.0
    %4179 = vmatpush1.msra.mxu0 0.0
    %4180 = vmatprep.subr.mxu0 0.0
    %4181 = vmatpush1.msra.mxu0 0.0
    %4182 = vmatprep.subr.mxu0 0.0
    %4183 = vmatpush1.msra.mxu0 0.0
    %4184 = vmatprep.subr.mxu0 0.0
    %4185 = vmatpush1.msra.mxu0 0.0
    %4186 = vmatprep.subr.mxu0 0.0
    %4187 = vmatpush1.msra.mxu0 0.0
    %4188 = vmatprep.subr.mxu0 0.0
    %4189 = vmatpush1.msra.mxu0 0.0
    %4190 = vmatprep.subr.mxu0 0.0
    %4191 = vmatpush1.msra.mxu0 0.0
    %4192 = vmatprep.subr.mxu0 0.0
    %4193 = vmatpush1.msra.mxu0 0.0
    %4194 = vmatprep.subr.mxu0 0.0
    %4195 = vmatpush1.msra.mxu0 %v4162
    %4196 = vmatprep.subr.mxu0 0.0
    %4197 = vmatpush2.msra.mxu0 0.0
    %4198 = vmatprep.subr.mxu0 0.0
    %4199 = vmatpush2.msra.mxu0 0.0
    %4200 = vmatprep.subr.mxu0 0.0
    %4201 = vmatpush2.msra.mxu0 0.0
    %4202 = vmatprep.subr.mxu0 0.0
    %4203 = vmatpush2.msra.mxu0 0.0
    %4204 = vmatprep.subr.mxu0 0.0
    %4205 = vmatpush2.msra.mxu0 0.0
    %4206 = vmatprep.subr.mxu0 0.0
    %4207 = vmatpush2.msra.mxu0 0.0
    %4208 = vmatprep.subr.mxu0 0.0
    %4209 = vmatpush2.msra.mxu0 0.0
    %4210 = vmatprep.subr.mxu0 0.0
    %4211 = vmatpush2.msra.mxu0 0.0
    %4212 = vmatprep.subr.mxu0 0.0
    %4213 = vmatpush2.msra.mxu0 0.0
    %4214 = vmatprep.subr.mxu0 0.0
    %4215 = vmatpush2.msra.mxu0 0.0
    %4216 = vmatprep.subr.mxu0 0.0
    %4217 = vmatpush2.msra.mxu0 0.0
    %4218 = vmatprep.subr.mxu0 0.0
    %4219 = vmatpush2.msra.mxu0 0.0
    %4220 = vmatprep.subr.mxu0 0.0
    %4221 = vmatpush2.msra.mxu0 0.0
    %4222 = vmatprep.subr.mxu0 0.0
    %4223 = vmatpush2.msra.mxu0 0.0
    %4224 = vmatprep.subr.mxu0 0.0
    %4225 = vmatpush2.msra.mxu0 0.0
    %4226 = vmatprep.subr.mxu0 0.0
    %4227 = vmatpush2.msra.mxu0 0.0
    %4228 = vmatprep.mubr.f32.mxu0 0.0
    %4229 = vmatmul.mubr.f32.gmra.mxu0 %v293
    %v4230 = vpop.f32.mrf.mxu0
    %v4231 = vadd.f32 0.0, %v4230
    %v4232 = vpop.f32.mrf.mxu0
    %4233 = vmatprep.mubr.f32.mxu0 0.0
    %4234 = vmatmul.mubr.f32.gmra.mxu0 %v295
    %v4235 = vpop.f32.mrf.mxu0
    %v4236 = vadd.f32 0.0, %v4235
    %v4237 = vpop.f32.mrf.mxu0
    %4238 = vmatprep.mubr.f32.mxu0 0.0
    %4239 = vmatmul.mubr.f32.gmra.mxu0 %v297
    %v4240 = vpop.f32.mrf.mxu0
    %v4241 = vadd.f32 0.0, %v4240
    %v4242 = vpop.f32.mrf.mxu0
    %4243 = vmatprep.mubr.f32.mxu0 0.0
    %4244 = vmatmul.mubr.f32.gmra.mxu0 %v299
    %v4245 = vpop.f32.mrf.mxu0
    %v4246 = vadd.f32 0.0, %v4245
    %v4247 = vpop.f32.mrf.mxu0
    %4248 = vmatprep.mubr.f32.mxu0 0.0
    %4249 = vmatmul.mubr.f32.gmra.mxu0 %v301
    %v4250 = vpop.f32.mrf.mxu0
    %v4251 = vadd.f32 0.0, %v4250
    %v4252 = vpop.f32.mrf.mxu0
    %4253 = vmatprep.mubr.f32.mxu0 0.0
    %4254 = vmatmul.mubr.f32.gmra.mxu0 %v303
    %v4255 = vpop.f32.mrf.mxu0
    %v4256 = vadd.f32 0.0, %v4255
    %v4257 = vpop.f32.mrf.mxu0
    %4258 = vmatprep.mubr.f32.mxu0 0.0
    %4259 = vmatmul.mubr.f32.gmra.mxu0 %v305
    %v4260 = vpop.f32.mrf.mxu0
    %v4261 = vadd.f32 0.0, %v4260
    %v4262 = vpop.f32.mrf.mxu0
    %4263 = vmatprep.mubr.f32.mxu0 0.0
    %4264 = vmatmul.mubr.f32.gmra.mxu0 %v307
    %v4265 = vpop.f32.mrf.mxu0
    %v4266 = vadd.f32 0.0, %v4265
    %v4267 = vpop.f32.mrf.mxu0
    %4268 = vmatprep.mubr.f32.mxu0 0.0
    %4269 = vmatmul.mubr.f32.gmra.mxu0 %v309
    %v4270 = vpop.f32.mrf.mxu0
    %v4271 = vadd.f32 0.0, %v4270
    %v4272 = vpop.f32.mrf.mxu0
    %4273 = vmatprep.mubr.f32.mxu0 0.0
    %4274 = vmatmul.mubr.f32.gmra.mxu0 %v4153
    %v4275 = vpop.f32.mrf.mxu0
    %v4276 = vadd.f32 0.0, %v4275
    %v4277 = vpop.f32.mrf.mxu0
    %4278 = vmatprep.mubr.f32.mxu0 0.0
    %4279 = vmatmul.mubr.f32.gmra.mxu0 %v313
    %v4280 = vpop.f32.mrf.mxu0
    %v4281 = vadd.f32 0.0, %v4280
    %v4282 = vpop.f32.mrf.mxu0
    %4283 = vmatprep.mubr.f32.mxu0 0.0
    %4284 = vmatmul.mubr.f32.gmra.mxu0 %v315
    %v4285 = vpop.f32.mrf.mxu0
    %v4286 = vadd.f32 0.0, %v4285
    %v4287 = vpop.f32.mrf.mxu0
    %4288 = vmatprep.mubr.f32.mxu0 0.0
    %4289 = vmatmul.mubr.f32.gmra.mxu0 %v317
    %v4290 = vpop.f32.mrf.mxu0
    %v4291 = vadd.f32 0.0, %v4290
    %v4292 = vpop.f32.mrf.mxu0
    %4293 = vmatprep.mubr.f32.mxu0 0.0
    %4294 = vmatmul.mubr.f32.gmra.mxu0 %v319
    %v4295 = vpop.f32.mrf.mxu0
    %v4296 = vadd.f32 0.0, %v4295
    %v4297 = vpop.f32.mrf.mxu0
    %4298 = vmatprep.mubr.f32.mxu0 0.0
    %4299 = vmatmul.mubr.f32.gmra.mxu0 %v321
    %v4300 = vpop.f32.mrf.mxu0
    %v4301 = vadd.f32 0.0, %v4300
    %v4302 = vpop.f32.mrf.mxu0
    %4303 = vmatprep.mubr.f32.mxu0 0.0
    %4304 = vmatmul.mubr.f32.gmra.mxu0 %v323
    %v4305 = vpop.f32.mrf.mxu0
    %v4306 = vadd.f32 0.0, %v4305
    %v4307 = vpop.f32.mrf.mxu0
    %4308 = vmatprep.mubr.f32.mxu0 0.0
    %4309 = vmatmul.mubr.f32.gmra.mxu0 %v325
    %v4310 = vpop.f32.mrf.mxu0
    %v4311 = vadd.f32 0.0, %v4310
    %v4312 = vpop.f32.mrf.mxu0
    %4313 = vmatprep.mubr.f32.mxu0 0.0
    %4314 = vmatmul.mubr.f32.gmra.mxu0 %v327
    %v4315 = vpop.f32.mrf.mxu0
    %v4316 = vadd.f32 0.0, %v4315
    %v4317 = vpop.f32.mrf.mxu0
    %4318 = vmatprep.mubr.f32.mxu0 0.0
    %4319 = vmatmul.mubr.f32.gmra.mxu0 %v329
    %v4320 = vpop.f32.mrf.mxu0
    %v4321 = vadd.f32 0.0, %v4320
    %v4322 = vpop.f32.mrf.mxu0
    %4323 = vmatprep.mubr.f32.mxu0 0.0
    %4324 = vmatmul.mubr.f32.gmra.mxu0 %v4155
    %v4325 = vpop.f32.mrf.mxu0
    %v4326 = vadd.f32 0.0, %v4325
    %v4327 = vpop.f32.mrf.mxu0
    %4328 = vmatprep.mubr.f32.mxu0 0.0
    %4329 = vmatmul.mubr.f32.gmra.mxu0 %v333
    %v4330 = vpop.f32.mrf.mxu0
    %v4331 = vadd.f32 0.0, %v4330
    %v4332 = vpop.f32.mrf.mxu0
    %4333 = vmatprep.mubr.f32.mxu0 0.0
    %4334 = vmatmul.mubr.f32.gmra.mxu0 %v335
    %v4335 = vpop.f32.mrf.mxu0
    %v4336 = vadd.f32 0.0, %v4335
    %v4337 = vpop.f32.mrf.mxu0
    %4338 = vmatprep.mubr.f32.mxu0 0.0
    %4339 = vmatmul.mubr.f32.gmra.mxu0 %v337
    %v4340 = vpop.f32.mrf.mxu0
    %v4341 = vadd.f32 0.0, %v4340
    %v4342 = vpop.f32.mrf.mxu0
    %4343 = vmatprep.mubr.f32.mxu0 0.0
    %4344 = vmatmul.mubr.f32.gmra.mxu0 %v339
    %v4345 = vpop.f32.mrf.mxu0
    %v4346 = vadd.f32 0.0, %v4345
    %v4347 = vpop.f32.mrf.mxu0
    %4348 = vmatprep.mubr.f32.mxu0 0.0
    %4349 = vmatmul.mubr.f32.gmra.mxu0 %v341
    %v4350 = vpop.f32.mrf.mxu0
    %v4351 = vadd.f32 0.0, %v4350
    %v4352 = vpop.f32.mrf.mxu0
    %4353 = vmatprep.mubr.f32.mxu0 0.0
    %4354 = vmatmul.mubr.f32.gmra.mxu0 %v343
    %v4355 = vpop.f32.mrf.mxu0
    %v4356 = vadd.f32 0.0, %v4355
    %v4357 = vpop.f32.mrf.mxu0
    %4358 = vmatprep.mubr.f32.mxu0 0.0
    %4359 = vmatmul.mubr.f32.gmra.mxu0 %v345
    %v4360 = vpop.f32.mrf.mxu0
    %v4361 = vadd.f32 0.0, %v4360
    %v4362 = vpop.f32.mrf.mxu0
    %4363 = vmatprep.mubr.f32.mxu0 0.0
    %4364 = vmatmul.mubr.f32.gmra.mxu0 %v347
    %v4365 = vpop.f32.mrf.mxu0
    %v4366 = vadd.f32 0.0, %v4365
    %v4367 = vpop.f32.mrf.mxu0
    %4368 = vmatprep.mubr.f32.mxu0 0.0
    %4369 = vmatmul.mubr.f32.gmra.mxu0 %v349
    %v4370 = vpop.f32.mrf.mxu0
    %v4371 = vadd.f32 0.0, %v4370
    %v4372 = vpop.f32.mrf.mxu0
    %4373 = vmatprep.mubr.f32.mxu0 0.0
    %4374 = vmatmul.mubr.f32.gmra.mxu0 %v4157
    %v4375 = vpop.f32.mrf.mxu0
    %v4376 = vadd.f32 0.0, %v4375
    %v4377 = vpop.f32.mrf.mxu0
    %4378 = vmatprep.mubr.f32.mxu0 0.0
    %4379 = vmatmul.mubr.f32.gmra.mxu0 %v353
    %v4380 = vpop.f32.mrf.mxu0
    %v4381 = vadd.f32 0.0, %v4380
    %v4382 = vpop.f32.mrf.mxu0
    %4383 = vmatprep.mubr.f32.mxu0 0.0
    %4384 = vmatmul.mubr.f32.gmra.mxu0 %v355
    %v4385 = vpop.f32.mrf.mxu0
    %v4386 = vadd.f32 0.0, %v4385
    %v4387 = vpop.f32.mrf.mxu0
    %4388 = vmatprep.mubr.f32.mxu0 0.0
    %4389 = vmatmul.mubr.f32.gmra.mxu0 %v357
    %v4390 = vpop.f32.mrf.mxu0
    %v4391 = vadd.f32 0.0, %v4390
    %v4392 = vpop.f32.mrf.mxu0
    %4393 = vmatprep.mubr.f32.mxu0 0.0
    %4394 = vmatmul.mubr.f32.gmra.mxu0 %v359
    %v4395 = vpop.f32.mrf.mxu0
    %v4396 = vadd.f32 0.0, %v4395
    %v4397 = vpop.f32.mrf.mxu0
    %4398 = vmatprep.mubr.f32.mxu0 0.0
    %4399 = vmatmul.mubr.f32.gmra.mxu0 %v361
    %v4400 = vpop.f32.mrf.mxu0
    %v4401 = vadd.f32 0.0, %v4400
    %v4402 = vpop.f32.mrf.mxu0
    %4403 = vmatprep.mubr.f32.mxu0 0.0
    %4404 = vmatmul.mubr.f32.gmra.mxu0 %v363
    %v4405 = vpop.f32.mrf.mxu0
    %v4406 = vadd.f32 0.0, %v4405
    %v4407 = vpop.f32.mrf.mxu0
    %4408 = vmatprep.mubr.f32.mxu0 0.0
    %4409 = vmatmul.mubr.f32.gmra.mxu0 %v365
    %v4410 = vpop.f32.mrf.mxu0
    %v4411 = vadd.f32 0.0, %v4410
    %v4412 = vpop.f32.mrf.mxu0
    %4413 = vmatprep.mubr.f32.mxu0 0.0
    %4414 = vmatmul.mubr.f32.gmra.mxu0 %v367
    %v4415 = vpop.f32.mrf.mxu0
    %v4416 = vadd.f32 0.0, %v4415
    %v4417 = vpop.f32.mrf.mxu0
    %4418 = vmatprep.mubr.f32.mxu0 0.0
    %4419 = vmatmul.mubr.f32.gmra.mxu0 %v369
    %v4420 = vpop.f32.mrf.mxu0
    %v4421 = vadd.f32 0.0, %v4420
    %v4422 = vpop.f32.mrf.mxu0
    %4423 = vmatprep.mubr.f32.mxu0 0.0
    %4424 = vmatmul.mubr.f32.gmra.mxu0 %v4159
    %v4425 = vpop.f32.mrf.mxu0
    %v4426 = vadd.f32 0.0, %v4425
    %v4427 = vpop.f32.mrf.mxu0
    %4428 = vdwg.mxu0
    %v4429 = vadd.f32 %v4101, %v4231
    %v4430 = vadd.f32 %v4102, %v4236
    %v4431 = vadd.f32 %v4103, %v4241
    %v4432 = vadd.f32 %v4104, %v4246
    %v4433 = vadd.f32 %v4105, %v4251
    %v4434 = vadd.f32 %v4106, %v4256
    %v4435 = vadd.f32 %v4107, %v4261
    %v4436 = vadd.f32 %v4108, %v4266
    %v4437 = vadd.f32 %v4109, %v4271
    %v4438 = vadd.f32 %v4110, %v4276
    %v4439 = vadd.f32 %v4111, %v4281
    %v4440 = vadd.f32 %v4112, %v4286
    %v4441 = vadd.f32 %v4113, %v4291
    %v4442 = vadd.f32 %v4114, %v4296
    %v4443 = vadd.f32 %v4115, %v4301
    %v4444 = vadd.f32 %v4116, %v4306
    %v4445 = vadd.f32 %v4117, %v4311
    %v4446 = vadd.f32 %v4118, %v4316
    %v4447 = vadd.f32 %v4119, %v4321
    %v4448 = vadd.f32 %v4120, %v4326
    %v4449 = vadd.f32 %v4121, %v4331
    %v4450 = vadd.f32 %v4122, %v4336
    %v4451 = vadd.f32 %v4123, %v4341
    %v4452 = vadd.f32 %v4124, %v4346
    %v4453 = vadd.f32 %v4125, %v4351
    %v4454 = vadd.f32 %v4126, %v4356
    %v4455 = vadd.f32 %v4127, %v4361
    %v4456 = vadd.f32 %v4128, %v4366
    %v4457 = vadd.f32 %v4129, %v4371
    %v4458 = vadd.f32 %v4130, %v4376
    %v4459 = vadd.f32 %v4131, %v4381
    %v4460 = vadd.f32 %v4132, %v4386
    %v4461 = vadd.f32 %v4133, %v4391
    %v4462 = vadd.f32 %v4134, %v4396
    %v4463 = vadd.f32 %v4135, %v4401
    %v4464 = vadd.f32 %v4136, %v4406
    %v4465 = vadd.f32 %v4137, %v4411
    %v4466 = vadd.f32 %v4138, %v4416
    %v4467 = vadd.f32 %v4139, %v4421
    %v4468 = vadd.f32 %v4140, %v4426
    %v4470 = vlaneseq
    %v4471 = vshrl.u32 %v4470, 7
    %v4472 = vsub.s32 0, %v4471
    %v4473 = vrot.slane %v160, %v4472
    %v4475 = vadd.f32 %v4429, %v4473
    %v4476 = vadd.f32 %v4430, %v4473
    %v4477 = vadd.f32 %v4431, %v4473
    %v4478 = vadd.f32 %v4432, %v4473
    %v4479 = vadd.f32 %v4433, %v4473
    %v4480 = vadd.f32 %v4434, %v4473
    %v4481 = vadd.f32 %v4435, %v4473
    %v4482 = vadd.f32 %v4436, %v4473
    %v4483 = vadd.f32 %v4437, %v4473
    %v4484 = vadd.f32 %v4438, %v4473
    %v4485 = vadd.f32 %v4439, %v4473
    %v4486 = vadd.f32 %v4440, %v4473
    %v4487 = vadd.f32 %v4441, %v4473
    %v4488 = vadd.f32 %v4442, %v4473
    %v4489 = vadd.f32 %v4443, %v4473
    %v4490 = vadd.f32 %v4444, %v4473
    %v4491 = vadd.f32 %v4445, %v4473
    %v4492 = vadd.f32 %v4446, %v4473
    %v4493 = vadd.f32 %v4447, %v4473
    %v4494 = vadd.f32 %v4448, %v4473
    %v4495 = vadd.f32 %v4449, %v4473
    %v4496 = vadd.f32 %v4450, %v4473
    %v4497 = vadd.f32 %v4451, %v4473
    %v4498 = vadd.f32 %v4452, %v4473
    %v4499 = vadd.f32 %v4453, %v4473
    %v4500 = vadd.f32 %v4454, %v4473
    %v4501 = vadd.f32 %v4455, %v4473
    %v4502 = vadd.f32 %v4456, %v4473
    %v4503 = vadd.f32 %v4457, %v4473
    %v4504 = vadd.f32 %v4458, %v4473
    %v4505 = vadd.f32 %v4459, %v4473
    %v4506 = vadd.f32 %v4460, %v4473
    %v4507 = vadd.f32 %v4461, %v4473
    %v4508 = vadd.f32 %v4462, %v4473
    %v4509 = vadd.f32 %v4463, %v4473
    %v4510 = vadd.f32 %v4464, %v4473
    %v4511 = vadd.f32 %v4465, %v4473
    %v4512 = vadd.f32 %v4466, %v4473
    %v4513 = vadd.f32 %v4467, %v4473
    %v4514 = vadd.f32 %v4468, %v4473
    %v4515 = vmax.f32 %v4475, 0.0
    %v4516 = vmax.f32 %v4476, 0.0
    %v4517 = vmax.f32 %v4477, 0.0
    %v4518 = vmax.f32 %v4478, 0.0
    %v4519 = vmax.f32 %v4479, 0.0
    %v4520 = vmax.f32 %v4480, 0.0
    %v4521 = vmax.f32 %v4481, 0.0
    %v4522 = vmax.f32 %v4482, 0.0
    %v4523 = vmax.f32 %v4483, 0.0
    %v4524 = vmax.f32 %v4484, 0.0
    %v4525 = vmax.f32 %v4485, 0.0
    %v4526 = vmax.f32 %v4486, 0.0
    %v4527 = vmax.f32 %v4487, 0.0
    %v4528 = vmax.f32 %v4488, 0.0
    %v4529 = vmax.f32 %v4489, 0.0
    %v4530 = vmax.f32 %v4490, 0.0
    %v4531 = vmax.f32 %v4491, 0.0
    %v4532 = vmax.f32 %v4492, 0.0
    %v4533 = vmax.f32 %v4493, 0.0
    %v4534 = vmax.f32 %v4494, 0.0
    %v4535 = vmax.f32 %v4495, 0.0
    %v4536 = vmax.f32 %v4496, 0.0
    %v4537 = vmax.f32 %v4497, 0.0
    %v4538 = vmax.f32 %v4498, 0.0
    %v4539 = vmax.f32 %v4499, 0.0
    %v4540 = vmax.f32 %v4500, 0.0
    %v4541 = vmax.f32 %v4501, 0.0
    %v4542 = vmax.f32 %v4502, 0.0
    %v4543 = vmax.f32 %v4503, 0.0
    %v4544 = vmax.f32 %v4504, 0.0
    %v4545 = vmax.f32 %v4505, 0.0
    %v4546 = vmax.f32 %v4506, 0.0
    %v4547 = vmax.f32 %v4507, 0.0
    %v4548 = vmax.f32 %v4508, 0.0
    %v4549 = vmax.f32 %v4509, 0.0
    %v4550 = vmax.f32 %v4510, 0.0
    %v4551 = vmax.f32 %v4511, 0.0
    %v4552 = vmax.f32 %v4512, 0.0
    %v4553 = vmax.f32 %v4513, 0.0
    %v4554 = vmax.f32 %v4514, 0.0
    %v4595 = vcombine.high %v4515, %v4515
    %v4596 = vcombine.high %v4516, %v4516
    %v4597 = vcombine.high %v4517, %v4517
    %v4598 = vcombine.high %v4518, %v4518
    %v4599 = vcombine.high %v4519, %v4519
    %v4600 = vcombine.high %v4520, %v4520
    %v4601 = vcombine.high %v4521, %v4521
    %v4602 = vcombine.high %v4522, %v4522
    %v4603 = vcombine.high %v4523, %v4523
    %v4604 = vcombine.high %v4524, %v4524
    %v4605 = vcombine.high %v4525, %v4525
    %v4606 = vcombine.high %v4526, %v4526
    %v4607 = vcombine.high %v4527, %v4527
    %v4608 = vcombine.high %v4528, %v4528
    %v4609 = vcombine.high %v4529, %v4529
    %v4610 = vcombine.high %v4530, %v4530
    %v4611 = vcombine.high %v4531, %v4531
    %v4612 = vcombine.high %v4532, %v4532
    %v4613 = vcombine.high %v4533, %v4533
    %v4614 = vcombine.high %v4534, %v4534
    %v4615 = vcombine.high %v4535, %v4535
    %v4616 = vcombine.high %v4536, %v4536
    %v4617 = vcombine.high %v4537, %v4537
    %v4618 = vcombine.high %v4538, %v4538
    %v4619 = vcombine.high %v4539, %v4539
    %v4620 = vcombine.high %v4540, %v4540
    %v4621 = vcombine.high %v4541, %v4541
    %v4622 = vcombine.high %v4542, %v4542
    %v4623 = vcombine.high %v4543, %v4543
    %v4624 = vcombine.high %v4544, %v4544
    %v4625 = vcombine.high %v4545, %v4545
    %v4626 = vcombine.high %v4546, %v4546
    %v4627 = vcombine.high %v4547, %v4547
    %v4628 = vcombine.high %v4548, %v4548
    %v4629 = vcombine.high %v4549, %v4549
    %v4630 = vcombine.high %v4550, %v4550
    %v4631 = vcombine.high %v4551, %v4551
    %v4632 = vcombine.high %v4552, %v4552
    %v4633 = vcombine.high %v4553, %v4553
    %v4634 = vcombine.high %v4554, %v4554
    %v4643 = vcombine.low %v4515, %v4595
    %v4644 = vcombine.low %v4516, %v4596
    %v4645 = vcombine.low %v4525, %v4605
    %v4646 = vcombine.low %v4526, %v4606
    %v4647 = vcombine.low %v4535, %v4615
    %v4648 = vcombine.low %v4536, %v4616
    %v4649 = vcombine.low %v4545, %v4625
    %v4650 = vcombine.low %v4546, %v4626
    %vm4659 = vcmask 64512
    %v4660 = vsel %vm4659, %v4643, -inf
    %v4661 = vsel %vm4659, %v4644, -inf
    %v4662 = vmax.f32 %v4660, %v4661
    %vm4663 = vcmask 60416
    %v4664 = vsel %vm4663, %v4517, -inf
    %v4665 = vmax.f32 %v4662, %v4664
    %v4666 = vrot.slane %v4665, 4
    %v4667 = vmax.f32 %v4665, %v4666
    %v4668 = vrot.slane %v4667, 2
    %v4669 = vmax.f32 %v4667, %v4668
    %v4670 = vrot.slane %v4669, 1
    %v4671 = vmax.f32 %v4669, %v4670
    %v4672 = vsel %vm4659, %v4645, -inf
    %v4673 = vsel %vm4659, %v4646, -inf
    %v4674 = vmax.f32 %v4672, %v4673
    %v4675 = vsel %vm4663, %v4527, -inf
    %v4676 = vmax.f32 %v4674, %v4675
    %v4677 = vrot.slane %v4676, 4
    %v4678 = vmax.f32 %v4676, %v4677
    %v4679 = vrot.slane %v4678, 2
    %v4680 = vmax.f32 %v4678, %v4679
    %v4681 = vrot.slane %v4680, 1
    %v4682 = vmax.f32 %v4680, %v4681
    %v4683 = vsel %vm4659, %v4647, -inf
    %v4684 = vsel %vm4659, %v4648, -inf
    %v4685 = vmax.f32 %v4683, %v4684
    %v4686 = vsel %vm4663, %v4537, -inf
    %v4687 = vmax.f32 %v4685, %v4686
    %v4688 = vrot.slane %v4687, 4
    %v4689 = vmax.f32 %v4687, %v4688
    %v4690 = vrot.slane %v4689, 2
    %v4691 = vmax.f32 %v4689, %v4690
    %v4692 = vrot.slane %v4691, 1
    %v4693 = vmax.f32 %v4691, %v4692
    %v4694 = vsel %vm4659, %v4649, -inf
    %v4695 = vsel %vm4659, %v4650, -inf
    %v4696 = vmax.f32 %v4694, %v4695
    %v4697 = vsel %vm4663, %v4547, -inf
    %v4698 = vmax.f32 %v4696, %v4697
    %v4699 = vrot.slane %v4698, 4
    %v4700 = vmax.f32 %v4698, %v4699
    %v4701 = vrot.slane %v4700, 2
    %v4702 = vmax.f32 %v4700, %v4701
    %v4703 = vrot.slane %v4702, 1
    %v4704 = vmax.f32 %v4702, %v4703
    %v4705 = vcombine.low %v4597, %v4518
    %v4706 = vcombine.low %v4598, %v4519
    %v4707 = vcombine.low %v4607, %v4528
    %v4708 = vcombine.low %v4608, %v4529
    %v4709 = vcombine.low %v4617, %v4538
    %v4710 = vcombine.low %v4618, %v4539
    %v4711 = vcombine.low %v4627, %v4548
    %v4712 = vcombine.low %v4628, %v4549
    %v4721 = vsel %vm4659, %v4705, -inf
    %v4722 = vsel %vm4659, %v4706, -inf
    %v4723 = vmax.f32 %v4721, %v4722
    %v4724 = vsel %vm4663, %v4599, -inf
    %v4725 = vmax.f32 %v4723, %v4724
    %v4726 = vrot.slane %v4725, 4
    %v4727 = vmax.f32 %v4725, %v4726
    %v4728 = vrot.slane %v4727, 2
    %v4729 = vmax.f32 %v4727, %v4728
    %v4730 = vrot.slane %v4729, 1
    %v4731 = vmax.f32 %v4729, %v4730
    %v4732 = vsel %vm4659, %v4707, -inf
    %v4733 = vsel %vm4659, %v4708, -inf
    %v4734 = vmax.f32 %v4732, %v4733
    %v4735 = vsel %vm4663, %v4609, -inf
    %v4736 = vmax.f32 %v4734, %v4735
    %v4737 = vrot.slane %v4736, 4
    %v4738 = vmax.f32 %v4736, %v4737
    %v4739 = vrot.slane %v4738, 2
    %v4740 = vmax.f32 %v4738, %v4739
    %v4741 = vrot.slane %v4740, 1
    %v4742 = vmax.f32 %v4740, %v4741
    %v4743 = vsel %vm4659, %v4709, -inf
    %v4744 = vsel %vm4659, %v4710, -inf
    %v4745 = vmax.f32 %v4743, %v4744
    %v4746 = vsel %vm4663, %v4619, -inf
    %v4747 = vmax.f32 %v4745, %v4746
    %v4748 = vrot.slane %v4747, 4
    %v4749 = vmax.f32 %v4747, %v4748
    %v4750 = vrot.slane %v4749, 2
    %v4751 = vmax.f32 %v4749, %v4750
    %v4752 = vrot.slane %v4751, 1
    %v4753 = vmax.f32 %v4751, %v4752
    %v4754 = vsel %vm4659, %v4711, -inf
    %v4755 = vsel %vm4659, %v4712, -inf
    %v4756 = vmax.f32 %v4754, %v4755
    %v4757 = vsel %vm4663, %v4629, -inf
    %v4758 = vmax.f32 %v4756, %v4757
    %v4759 = vrot.slane %v4758, 4
    %v4760 = vmax.f32 %v4758, %v4759
    %v4761 = vrot.slane %v4760, 2
    %v4762 = vmax.f32 %v4760, %v4761
    %v4763 = vrot.slane %v4762, 1
    %v4764 = vmax.f32 %v4762, %v4763
    %v4765 = vcombine.low %v4520, %v4600
    %v4766 = vcombine.low %v4521, %v4601
    %v4767 = vcombine.low %v4530, %v4610
    %v4768 = vcombine.low %v4531, %v4611
    %v4769 = vcombine.low %v4540, %v4620
    %v4770 = vcombine.low %v4541, %v4621
    %v4771 = vcombine.low %v4550, %v4630
    %v4772 = vcombine.low %v4551, %v4631
    %v4781 = vsel %vm4659, %v4765, -inf
    %v4782 = vsel %vm4659, %v4766, -inf
    %v4783 = vmax.f32 %v4781, %v4782
    %v4784 = vsel %vm4663, %v4522, -inf
    %v4785 = vmax.f32 %v4783, %v4784
    %v4786 = vrot.slane %v4785, 4
    %v4787 = vmax.f32 %v4785, %v4786
    %v4788 = vrot.slane %v4787, 2
    %v4789 = vmax.f32 %v4787, %v4788
    %v4790 = vrot.slane %v4789, 1
    %v4791 = vmax.f32 %v4789, %v4790
    %v4792 = vsel %vm4659, %v4767, -inf
    %v4793 = vsel %vm4659, %v4768, -inf
    %v4794 = vmax.f32 %v4792, %v4793
    %v4795 = vsel %vm4663, %v4532, -inf
    %v4796 = vmax.f32 %v4794, %v4795
    %v4797 = vrot.slane %v4796, 4
    %v4798 = vmax.f32 %v4796, %v4797
    %v4799 = vrot.slane %v4798, 2
    %v4800 = vmax.f32 %v4798, %v4799
    %v4801 = vrot.slane %v4800, 1
    %v4802 = vmax.f32 %v4800, %v4801
    %v4803 = vsel %vm4659, %v4769, -inf
    %v4804 = vsel %vm4659, %v4770, -inf
    %v4805 = vmax.f32 %v4803, %v4804
    %v4806 = vsel %vm4663, %v4542, -inf
    %v4807 = vmax.f32 %v4805, %v4806
    %v4808 = vrot.slane %v4807, 4
    %v4809 = vmax.f32 %v4807, %v4808
    %v4810 = vrot.slane %v4809, 2
    %v4811 = vmax.f32 %v4809, %v4810
    %v4812 = vrot.slane %v4811, 1
    %v4813 = vmax.f32 %v4811, %v4812
    %v4814 = vsel %vm4659, %v4771, -inf
    %v4815 = vsel %vm4659, %v4772, -inf
    %v4816 = vmax.f32 %v4814, %v4815
    %v4817 = vsel %vm4663, %v4552, -inf
    %v4818 = vmax.f32 %v4816, %v4817
    %v4819 = vrot.slane %v4818, 4
    %v4820 = vmax.f32 %v4818, %v4819
    %v4821 = vrot.slane %v4820, 2
    %v4822 = vmax.f32 %v4820, %v4821
    %v4823 = vrot.slane %v4822, 1
    %v4824 = vmax.f32 %v4822, %v4823
    %v4825 = vcombine.low %v4602, %v4523
    %v4826 = vcombine.low %v4603, %v4524
    %v4827 = vcombine.low %v4612, %v4533
    %v4828 = vcombine.low %v4613, %v4534
    %v4829 = vcombine.low %v4622, %v4543
    %v4830 = vcombine.low %v4623, %v4544
    %v4831 = vcombine.low %v4632, %v4553
    %v4832 = vcombine.low %v4633, %v4554
    %v4841 = vsel %vm4659, %v4825, -inf
    %v4842 = vsel %vm4659, %v4826, -inf
    %v4843 = vmax.f32 %v4841, %v4842
    %v4844 = vsel %vm4663, %v4604, -inf
    %v4845 = vmax.f32 %v4843, %v4844
    %v4846 = vrot.slane %v4845, 4
    %v4847 = vmax.f32 %v4845, %v4846
    %v4848 = vrot.slane %v4847, 2
    %v4849 = vmax.f32 %v4847, %v4848
    %v4850 = vrot.slane %v4849, 1
    %v4851 = vmax.f32 %v4849, %v4850
    %v4852 = vsel %vm4659, %v4827, -inf
    %v4853 = vsel %vm4659, %v4828, -inf
    %v4854 = vmax.f32 %v4852, %v4853
    %v4855 = vsel %vm4663, %v4614, -inf
    %v4856 = vmax.f32 %v4854, %v4855
    %v4857 = vrot.slane %v4856, 4
    %v4858 = vmax.f32 %v4856, %v4857
    %v4859 = vrot.slane %v4858, 2
    %v4860 = vmax.f32 %v4858, %v4859
    %v4861 = vrot.slane %v4860, 1
    %v4862 = vmax.f32 %v4860, %v4861
    %v4863 = vsel %vm4659, %v4829, -inf
    %v4864 = vsel %vm4659, %v4830, -inf
    %v4865 = vmax.f32 %v4863, %v4864
    %v4866 = vsel %vm4663, %v4624, -inf
    %v4867 = vmax.f32 %v4865, %v4866
    %v4868 = vrot.slane %v4867, 4
    %v4869 = vmax.f32 %v4867, %v4868
    %v4870 = vrot.slane %v4869, 2
    %v4871 = vmax.f32 %v4869, %v4870
    %v4872 = vrot.slane %v4871, 1
    %v4873 = vmax.f32 %v4871, %v4872
    %v4874 = vsel %vm4659, %v4831, -inf
    %v4875 = vsel %vm4659, %v4832, -inf
    %v4876 = vmax.f32 %v4874, %v4875
    %v4877 = vsel %vm4663, %v4634, -inf
    %v4878 = vmax.f32 %v4876, %v4877
    %v4879 = vrot.slane %v4878, 4
    %v4880 = vmax.f32 %v4878, %v4879
    %v4881 = vrot.slane %v4880, 2
    %v4882 = vmax.f32 %v4880, %v4881
    %v4883 = vrot.slane %v4882, 1
    %v4884 = vmax.f32 %v4882, %v4883
    %v4901 = vrot.slane %v4682, 7
    %vm4902 = vcmask 1041409
    %v4903 = vsel %vm4902, %v4901, %v4671
    %v4904 = vrot.slane %v4742, 7
    %v4905 = vsel %vm4902, %v4904, %v4731
    %v4906 = vrot.slane %v4802, 7
    %v4907 = vsel %vm4902, %v4906, %v4791
    %v4908 = vrot.slane %v4862, 7
    %v4909 = vsel %vm4902, %v4908, %v4851
    %v4910 = vrot.slane %v4704, 7
    %v4911 = vsel %vm4902, %v4910, %v4693
    %v4912 = vrot.slane %v4764, 7
    %v4913 = vsel %vm4902, %v4912, %v4753
    %v4914 = vrot.slane %v4824, 7
    %v4915 = vsel %vm4902, %v4914, %v4813
    %v4916 = vrot.slane %v4884, 7
    %v4917 = vsel %vm4902, %v4916, %v4873
    %vm4926 = vcmask 58368
    %4927 = vst.msk [vmem:[#allocation2] sm:$0x3] %vm4926, %v4903
    %4928 = vst.msk [vmem:[#allocation2 + $0x2] sm:$0x3] %vm4926, %v4905
    %4929 = vst.msk [vmem:[#allocation2 + $0x4] sm:$0x3] %vm4926, %v4907
    %4930 = vst.msk [vmem:[#allocation2 + $0x6] sm:$0x3] %vm4926, %v4909
    %4931 = vst.msk [vmem:[#allocation2 + $0x8] sm:$0x3] %vm4926, %v4911
    %4932 = vst.msk [vmem:[#allocation2 + $0xa] sm:$0x3] %vm4926, %v4913
    %4933 = vst.msk [vmem:[#allocation2 + $0xc] sm:$0x3] %vm4926, %v4915
    %4934 = vst.msk [vmem:[#allocation2 + $0xe] sm:$0x3] %vm4926, %v4917
    // Predicated region
    $region18: #{conv_forward.1} parent=1 // pred_check
      _
    $region19: #{conv_forward.1} parent=1 // pred_check_branch
      %4936 = sbr.rel (0) target = $region21
    $region20: #{conv_forward.1} parent=1 // pred_region
      %s4938 = ssub.s32 256, 256
      %4939 = vsyncadd [#allocation3], %s4938
      %s4940 = sshll.u32 [#allocation2], 4
      %s4941 = int_to_ptr.vmem [resolvable:$true] %s4940
      %4946 = dma.vmem_to_hbm [thread:$0]  %s4941, 256, %s4, [#allocation3], 32, 32, 2
    $region21: #{conv_forward.1} parent=1 // pred_fallthru
      _
    // Predicated region
    $region22: #{conv_forward.1} parent=1 // pred_check
      _
    $region23: #{conv_forward.1} parent=1 // pred_check_branch
      %4948 = sbr.rel (0) target = $region25
    $region24: #{conv_forward.1} parent=1 // pred_region
      %4949 = dma.done [#allocation3], 256
    $region25: #{conv_forward.1} parent=1 // pred_fallthru
      _
    %4950 = vsyncpa [#allocation3], 1

</llo_original>
